<compile_context>
chip_gen: v6e
topology: v6e:2x2x1
jax: 0.10.0
libtpu: 0.0.40
codegen_flags: <defaults>
</compile_context>

<pallas_src>
import functools

import jax
import jax.numpy as jnp
from jax import lax
from jax.experimental import pallas as pl
from jax.experimental.pallas import tpu as pltpu

# ---------------------------------------------------------------------------
# Model dimensions (small but consistent with the module's hard-coded dims).
# ---------------------------------------------------------------------------
PATCH = 4            # swin_tiny_patch4 patch size
IN_CHANS = 3         # in_chans=3
EMBED = 96           # swin-tiny patch-embed dim
IMG_DIM = 768        # swin-tiny feature dim (num_classes=0 output)
TXT_DIM = 312        # rubert-tiny hidden size (final_ln: Linear(312, 768))
TXT_PAD = 384        # 312 padded to 3*128 lanes (zero pad, exact for matmuls)
VOCAB = 128          # small synthetic vocab
SEQ = 8              # small sequence length

# TODO(synk): full Swin-Tiny stages and the 3-layer rubert-tiny transformer are
# not implemented; deterministic shape-faithful stand-ins are used instead.
# TODO(synk): for a realistic vocab (~30K) the resident one-hot table must be
# replaced by a scalar-prefetch row gather (PrefetchScalarGridSpec + pl.Element
# index_map), and for real batch sizes a "parallel" grid axis over batch should
# be added so v7x can use both TensorCores.


# ---------------------------------------------------------------------------
# Fused forward kernel: visual stand-in + text stand-in + exact CLIP head.
# ---------------------------------------------------------------------------
def ruclip_fused_kernel(pooled_ref, wvis_ref, bvis_ref,
                        ids_ref, maskb_ref, tok_ref, pos_ref,
                        wqkv_ref, wo_ref, lng_ref, lnb_ref,
                        wfl_ref, bfl_ref, ls_ref,
                        li_ref):
    f32 = jnp.float32
    bf16 = jnp.bfloat16

    bt, S = maskb_ref.shape
    P = tok_ref.shape[1]                                          # padded hidden (384)

    # ---- visual encoder stand-in: pooled patches -> one fused linear --------
    img = jnp.dot(pooled_ref[...].astype(bf16), wvis_ref[...],
                  preferred_element_type=f32) + bvis_ref[...]     # [Bi, 768] f32

    # ---- text encoder stand-in ----------------------------------------------
    # Embedding gather as a single flat one-hot bf16 matmul (0/1 exact in bf16).
    iota_v = lax.broadcasted_iota(jnp.int32, (bt * S, VOCAB), 1)
    onehot = (ids_ref[...] == iota_v).astype(bf16)                # [Bt*S, V]
    emb = jnp.dot(onehot, tok_ref[...],
                  preferred_element_type=f32)                     # [Bt*S, P]
    x3 = emb.reshape(bt, S, P) + pos_ref[...][None, :, :]         # [Bt, S, P]; pad lanes 0
    x_flat = x3.reshape(bt * S, P)

    # Fused Q/K/V projection: one [Bt*S, 384] @ [384, 1152] bf16 MXU push.
    qkv = jnp.dot(x_flat.astype(bf16), wqkv_ref[...],
                  preferred_element_type=f32)                     # [Bt*S, 3P]
    qkv3 = qkv.reshape(bt, S, 3 * P)
    q_cls = qkv3[:, 0, 0:P]                                       # [Bt, P]   (only CLS query)
    k = qkv3[:, :, P:2 * P]                                       # [Bt, S, P]
    v = qkv3[:, :, 2 * P:]                                        # [Bt, S, P]

    # Masked single-head attention for the CLS query, done on the VPU/XLU
    # (q has a single row per batch -> MXU would be pure push/drain latency).
    s_l = jnp.sum(q_cls[:, None, :] * k, axis=-1)                 # [Bt, S] f32 (lane reduce)
    s_l = s_l * (TXT_DIM ** -0.5) + maskb_ref[...]                # additive mask bias
    s_l = s_l - jnp.max(s_l, axis=-1, keepdims=True)
    p_att = jnp.exp(s_l)
    # approx reciprocal (EUP slot); tiny relative error vs exact division.
    p_att = p_att * pl.reciprocal(jnp.sum(p_att, axis=-1, keepdims=True),
                                  approx=True)                    # [Bt, S]
    ctx = jnp.sum(p_att[:, :, None] * v, axis=1)                  # [Bt, P] (sublane reduce)
    attn_out = jnp.dot(ctx.astype(bf16), wo_ref[...],
                       preferred_element_type=f32)                # [Bt, P]

    # Residual + LayerNorm on the CLS row only (per-token LN => exact).
    # Pad lanes of h are exactly zero (zero-padded weights/table), so sum/312
    # is the true mean; the lane mask keeps the variance over the real lanes.
    h = x3[:, 0, :] + attn_out                                    # [Bt, P]
    mu = jnp.sum(h, axis=-1, keepdims=True) * (1.0 / TXT_DIM)
    lane = lax.broadcasted_iota(jnp.int32, h.shape, 1)
    lmask = (lane < TXT_DIM).astype(f32)
    cen = (h - mu) * lmask
    var = jnp.sum(cen * cen, axis=-1, keepdims=True) * (1.0 / TXT_DIM)
    # rubert-tiny / BERT layer_norm_eps = 1e-12 (PyTorch nn.LayerNorm default is 1e-5).
    cls_out = cen * lax.rsqrt(var + 1e-12) * lng_ref[...] + lnb_ref[...]

    # ---- CLIP head (exact ruCLIPSB.forward tail semantics) -------------------
    txt = jnp.dot(cls_out.astype(bf16), wfl_ref[...],
                  preferred_element_type=f32) + bfl_ref[...]      # [Bt, 768]

    eps = jnp.float32(1e-12)
    img_n = img * lax.rsqrt(jnp.sum(img * img, axis=-1, keepdims=True) + eps)
    txt_n = txt * lax.rsqrt(jnp.sum(txt * txt, axis=-1, keepdims=True) + eps)
    scale = ls_ref[0, 0]                                          # exp(logit_scale), precomputed
    dn = (((1,), (1,)), ((), ()))                                 # contract last dims, no transpose
    li_ref[...] = scale * lax.dot_general(img_n, txt_n, dn,
                                          preferred_element_type=f32)
    # logits_per_text = logits_per_image.T is taken in the wrapper (bit-exact).


# ---------------------------------------------------------------------------
# Deterministic "logical" parameters (synthetic stand-in for pretrained weights)
# and host-side preparation (fusion, 312->384 zero-padding, bf16 cast).
# ---------------------------------------------------------------------------
def init_params(key):
    ks = jax.random.split(key, 10)
    s = 0.02
    cpp = IN_CHANS * PATCH * PATCH
    return {
        "patch_w": s * jax.random.normal(ks[0], (cpp, EMBED), jnp.float32),
        "patch_b": jnp.zeros((1, EMBED), jnp.float32),
        "vis_head_w": s * jax.random.normal(ks[1], (EMBED, IMG_DIM), jnp.float32),
        "vis_head_b": jnp.zeros((1, IMG_DIM), jnp.float32),
        "tok_emb": s * jax.random.normal(ks[2], (VOCAB, TXT_DIM), jnp.float32),
        "pos_emb": s * jax.random.normal(ks[3], (SEQ, TXT_DIM), jnp.float32),
        "wq": s * jax.random.normal(ks[4], (TXT_DIM, TXT_DIM), jnp.float32),
        "wk": s * jax.random.normal(ks[5], (TXT_DIM, TXT_DIM), jnp.float32),
        "wv": s * jax.random.normal(ks[6], (TXT_DIM, TXT_DIM), jnp.float32),
        "wo": s * jax.random.normal(ks[7], (TXT_DIM, TXT_DIM), jnp.float32),
        "ln_g": jnp.ones((1, TXT_DIM), jnp.float32),
        "ln_b": jnp.zeros((1, TXT_DIM), jnp.float32),
        # final_ln: nn.Linear(312, 768); stored already transposed as [312, 768]
        "final_ln_w": s * jax.random.normal(ks[8], (TXT_DIM, IMG_DIM), jnp.float32),
        "final_ln_b": jnp.zeros((1, IMG_DIM), jnp.float32),
        # logit_scale = log(1 / 0.07), scalar parameter
        "logit_scale": jnp.full((1, 1), jnp.log(1.0 / 0.07), jnp.float32),
    }


def prepare_params(p):
    pad = TXT_PAD - TXT_DIM

    def pad_cols(x):
        return jnp.pad(x, ((0, 0), (0, pad)))

    def pad_both(x):
        return jnp.pad(x, ((0, pad), (0, pad)))

    def pad_rows(x):
        return jnp.pad(x, ((0, pad), (0, 0)))

    wqkv = jnp.concatenate([pad_both(p["wq"]), pad_both(p["wk"]),
                            pad_both(p["wv"])], axis=1)               # [384, 1152]
    return {
        # visual: fuse patch-embed + pooled head (mean commutes with linears)
        "wvis": (p["patch_w"] @ p["vis_head_w"]).astype(jnp.bfloat16),  # [48, 768]
        "bvis": p["patch_b"] @ p["vis_head_w"] + p["vis_head_b"],       # [1, 768] f32
        # text: zero-pad hidden dim 312 -> 384 (exact for contractions)
        "tok_emb": pad_cols(p["tok_emb"]).astype(jnp.bfloat16),         # [128, 384] bf16
        "pos_emb": pad_cols(p["pos_emb"]),                              # [8, 384] f32
        "wqkv": wqkv.astype(jnp.bfloat16),                              # [384, 1152]
        "wo": pad_both(p["wo"]).astype(jnp.bfloat16),                   # [384, 384]
        "ln_g": pad_cols(p["ln_g"]),                                    # [1, 384] f32
        "ln_b": pad_cols(p["ln_b"]),                                    # [1, 384] f32
        "final_w": pad_rows(p["final_ln_w"]).astype(jnp.bfloat16),      # [384, 768]
        "final_b": p["final_ln_b"],                                     # [1, 768] f32
        # exp(logit_scale) precomputed host-side -> no in-kernel transcendental
        "logit_scale_exp": jnp.exp(p["logit_scale"]),                   # [1, 1] f32
    }


# ---------------------------------------------------------------------------
# Forward pass: thin glue (patch unfolding, pooling, mask bias) + one fused
# Pallas kernel; logits_per_text is the (bit-exact) transpose in the wrapper.
# ---------------------------------------------------------------------------
def forward(prep, image, input_ids, attention_mask):
    b, c, h, w = image.shape                                # NCHW
    ph = h // PATCH
    pw = w // PATCH
    x = image.astype(jnp.float32).reshape(b, c, ph, PATCH, pw, PATCH)
    # -> [B, ph, pw, C, p, p] -> [B, Np, C*p*p] (matches flattened Conv2d weight)
    patches = x.transpose(0, 2, 4, 1, 3, 5).reshape(b, ph * pw, c * PATCH * PATCH)
    pooled = jnp.mean(patches, axis=1)                      # [B, 48] (mean-pool in wrapper)

    ids = input_ids.astype(jnp.int32)
    bt, seq = ids.shape
    ids_col = ids.reshape(bt * seq, 1)                      # flat ids for one-hot gather
    # Additive attention-mask bias: 0 where attended, -1e9 where masked.
    mask_bias = (attention_mask.astype(jnp.float32) - 1.0) * jnp.float32(1e9)

    vmem = pl.BlockSpec(memory_space=pltpu.MemorySpace.VMEM)
    smem = pl.BlockSpec(memory_space=pltpu.MemorySpace.SMEM)

    li = pl.pallas_call(
        ruclip_fused_kernel,
        out_shape=jax.ShapeDtypeStruct((b, bt), jnp.float32),
        in_specs=[vmem] * 13 + [smem],
        out_specs=vmem,
    )(pooled, prep["wvis"], prep["bvis"], ids_col, mask_bias,
      prep["tok_emb"], prep["pos_emb"], prep["wqkv"], prep["wo"],
      prep["ln_g"], prep["ln_b"], prep["final_w"], prep["final_b"],
      prep["logit_scale_exp"])
    lt = li.T                                               # logits_per_text (exact)
    return li, lt


if __name__ == "__main__":
    key = jax.random.PRNGKey(0)
    k_img, k_ids = jax.random.split(key, 2)

    B, H, W = 2, 16, 16
    image = jax.random.normal(k_img, (B, IN_CHANS, H, W), jnp.float32)
    input_ids = jax.random.randint(k_ids, (B, SEQ), 0, VOCAB, jnp.int32)
    attention_mask = jnp.ones((B, SEQ), jnp.int32).at[:, 6:].set(0)

    params = init_params(jax.random.PRNGKey(42))
    prep = prepare_params(params)

    fwd = jax.jit(functools.partial(forward, prep))
    logits_per_image, logits_per_text = fwd(image, input_ids, attention_mask)
    jax.block_until_ready((logits_per_image, logits_per_text))

    assert logits_per_image.shape == (B, B)
    assert logits_per_text.shape == (B, B)
    print("KERNEL_OK")
</pallas_src>

<mosaic_0001>
module attributes {stable_mosaic.version = 11 : i64} {
  func.func @ruclip_fused_kernel(%arg0: memref<2x48xf32, #tpu.memory_space<vmem>>, %arg1: memref<48x768xbf16, #tpu.memory_space<vmem>>, %arg2: memref<1x768xf32, #tpu.memory_space<vmem>>, %arg3: memref<16x1xi32, #tpu.memory_space<vmem>>, %arg4: memref<2x8xf32, #tpu.memory_space<vmem>>, %arg5: memref<128x384xbf16, #tpu.memory_space<vmem>>, %arg6: memref<8x384xf32, #tpu.memory_space<vmem>>, %arg7: memref<384x1152xbf16, #tpu.memory_space<vmem>>, %arg8: memref<384x384xbf16, #tpu.memory_space<vmem>>, %arg9: memref<1x384xf32, #tpu.memory_space<vmem>>, %arg10: memref<1x384xf32, #tpu.memory_space<vmem>>, %arg11: memref<384x768xbf16, #tpu.memory_space<vmem>>, %arg12: memref<1x768xf32, #tpu.memory_space<vmem>>, %arg13: memref<1x1xf32, #tpu.memory_space<smem>>, %arg14: memref<2x2xf32, #tpu.memory_space<vmem>>) attributes {dimension_semantics = [], scalar_prefetch = 0 : i64, scratch_operands = 0 : i64, tpu.core_type = #tpu.core_type<tc>} {
    %c0 = arith.constant 0 : index
    %c0_0 = arith.constant 0 : index
    %0 = vector.load %arg0[%c0, %c0_0] : memref<2x48xf32, #tpu.memory_space<vmem>>, vector<2x48xf32>
    %1 = arith.truncf %0 : vector<2x48xf32> to vector<2x48xbf16>
    %c0_1 = arith.constant 0 : index
    %c0_2 = arith.constant 0 : index
    %2 = vector.load %arg1[%c0_1, %c0_2] : memref<48x768xbf16, #tpu.memory_space<vmem>>, vector<48x768xbf16>
    %cst = arith.constant dense<0.000000e+00> : vector<2x768xf32>
    %3 = tpu.matmul %1, %2, %cst {dimension_numbers = #tpu.dot_dimension_numbers<[1], [0], [0], [1], [0, 0, 1, 1], [], []>} : vector<2x48xbf16>, vector<48x768xbf16>, vector<2x768xf32> -> vector<2x768xf32>
    %c0_3 = arith.constant 0 : index
    %c0_4 = arith.constant 0 : index
    %4 = vector.load %arg2[%c0_3, %c0_4] : memref<1x768xf32, #tpu.memory_space<vmem>>, vector<1x768xf32>
    %5 = vector.broadcast %4 : vector<1x768xf32> to vector<2x768xf32>
    %6 = arith.addf %3, %5 : vector<2x768xf32>
    %7 = tpu.iota {dimensions = array<i32: 1>} : vector<16x128xi32>
    %c0_5 = arith.constant 0 : index
    %c0_6 = arith.constant 0 : index
    %8 = vector.load %arg3[%c0_5, %c0_6] : memref<16x1xi32, #tpu.memory_space<vmem>>, vector<16x1xi32>
    %9 = vector.broadcast %8 : vector<16x1xi32> to vector<16x128xi32>
    %10 = arith.cmpi eq, %9, %7 : vector<16x128xi32>
    %11 = arith.extui %10 : vector<16x128xi1> to vector<16x128xi32>
    %12 = arith.sitofp %11 : vector<16x128xi32> to vector<16x128xf32>
    %13 = arith.truncf %12 : vector<16x128xf32> to vector<16x128xbf16>
    %c0_7 = arith.constant 0 : index
    %c0_8 = arith.constant 0 : index
    %14 = vector.load %arg5[%c0_7, %c0_8] : memref<128x384xbf16, #tpu.memory_space<vmem>>, vector<128x384xbf16>
    %cst_9 = arith.constant dense<0.000000e+00> : vector<16x384xf32>
    %15 = tpu.matmul %13, %14, %cst_9 {dimension_numbers = #tpu.dot_dimension_numbers<[1], [0], [0], [1], [0, 0, 1, 1], [], []>} : vector<16x128xbf16>, vector<128x384xbf16>, vector<16x384xf32> -> vector<16x384xf32>
    %16 = vector.shape_cast %15 : vector<16x384xf32> to vector<2x8x384xf32>
    %c0_10 = arith.constant 0 : index
    %c0_11 = arith.constant 0 : index
    %17 = vector.load %arg6[%c0_10, %c0_11] : memref<8x384xf32, #tpu.memory_space<vmem>>, vector<8x384xf32>
    %18 = vector.shape_cast %17 : vector<8x384xf32> to vector<1x8x384xf32>
    %19 = vector.broadcast %18 : vector<1x8x384xf32> to vector<2x8x384xf32>
    %20 = arith.addf %16, %19 : vector<2x8x384xf32>
    %21 = vector.shape_cast %20 : vector<2x8x384xf32> to vector<16x384xf32>
    %22 = arith.truncf %21 : vector<16x384xf32> to vector<16x384xbf16>
    %c0_12 = arith.constant 0 : index
    %c0_13 = arith.constant 0 : index
    %23 = vector.load %arg7[%c0_12, %c0_13] : memref<384x1152xbf16, #tpu.memory_space<vmem>>, vector<384x1152xbf16>
    %cst_14 = arith.constant dense<0.000000e+00> : vector<16x1152xf32>
    %24 = tpu.matmul %22, %23, %cst_14 {dimension_numbers = #tpu.dot_dimension_numbers<[1], [0], [0], [1], [0, 0, 1, 1], [], []>} : vector<16x384xbf16>, vector<384x1152xbf16>, vector<16x1152xf32> -> vector<16x1152xf32>
    %25 = vector.shape_cast %24 : vector<16x1152xf32> to vector<2x8x1152xf32>
    %26 = vector.extract_strided_slice %25 {offsets = [0, 0, 0], sizes = [2, 1, 384], strides = [1, 1, 1]} : vector<2x8x1152xf32> to vector<2x1x384xf32>
    %27 = vector.shape_cast %26 : vector<2x1x384xf32> to vector<2x384xf32>
    %28 = vector.extract_strided_slice %25 {offsets = [0, 0, 384], sizes = [2, 8, 384], strides = [1, 1, 1]} : vector<2x8x1152xf32> to vector<2x8x384xf32>
    %29 = vector.extract_strided_slice %25 {offsets = [0, 0, 768], sizes = [2, 8, 384], strides = [1, 1, 1]} : vector<2x8x1152xf32> to vector<2x8x384xf32>
    %30 = vector.shape_cast %27 : vector<2x384xf32> to vector<2x1x384xf32>
    %31 = vector.broadcast %30 : vector<2x1x384xf32> to vector<2x8x384xf32>
    %32 = arith.mulf %31, %28 : vector<2x8x384xf32>
    %cst_15 = arith.constant dense<0.000000e+00> : vector<2x8xf32>
    %33 = vector.multi_reduction <add>, %32, %cst_15 [2] : vector<2x8x384xf32> to vector<2x8xf32>
    %cst_16 = arith.constant 0.0566138513 : f32
    %34 = vector.broadcast %cst_16 : f32 to vector<2x8xf32>
    %35 = arith.mulf %33, %34 : vector<2x8xf32>
    %c0_17 = arith.constant 0 : index
    %c0_18 = arith.constant 0 : index
    %36 = vector.load %arg4[%c0_17, %c0_18] : memref<2x8xf32, #tpu.memory_space<vmem>>, vector<2x8xf32>
    %37 = arith.addf %35, %36 : vector<2x8xf32>
    %cst_19 = arith.constant dense<0xFF800000> : vector<2xf32>
    %38 = vector.multi_reduction <maximumf>, %37, %cst_19 [1] : vector<2x8xf32> to vector<2xf32>
    %39 = vector.shape_cast %38 : vector<2xf32> to vector<2x1xf32>
    %40 = vector.broadcast %39 : vector<2x1xf32> to vector<2x8xf32>
    %41 = arith.subf %37, %40 : vector<2x8xf32>
    %42 = math.exp %41 : vector<2x8xf32>
    %cst_20 = arith.constant dense<0.000000e+00> : vector<2xf32>
    %43 = vector.multi_reduction <add>, %42, %cst_20 [1] : vector<2x8xf32> to vector<2xf32>
    %44 = vector.shape_cast %43 : vector<2xf32> to vector<2x1xf32>
    %45 = tpu.reciprocal %44 {approx = true} : vector<2x1xf32> -> vector<2x1xf32>
    %46 = vector.broadcast %45 : vector<2x1xf32> to vector<2x8xf32>
    %47 = arith.mulf %42, %46 : vector<2x8xf32>
    %48 = vector.shape_cast %47 : vector<2x8xf32> to vector<2x8x1xf32>
    %49 = vector.broadcast %48 : vector<2x8x1xf32> to vector<2x8x384xf32>
    %50 = arith.mulf %49, %29 : vector<2x8x384xf32>
    %cst_21 = arith.constant dense<0.000000e+00> : vector<2x384xf32>
    %51 = vector.multi_reduction <add>, %50, %cst_21 [1] : vector<2x8x384xf32> to vector<2x384xf32>
    %52 = arith.truncf %51 : vector<2x384xf32> to vector<2x384xbf16>
    %c0_22 = arith.constant 0 : index
    %c0_23 = arith.constant 0 : index
    %53 = vector.load %arg8[%c0_22, %c0_23] : memref<384x384xbf16, #tpu.memory_space<vmem>>, vector<384x384xbf16>
    %cst_24 = arith.constant dense<0.000000e+00> : vector<2x384xf32>
    %54 = tpu.matmul %52, %53, %cst_24 {dimension_numbers = #tpu.dot_dimension_numbers<[1], [0], [0], [1], [0, 0, 1, 1], [], []>} : vector<2x384xbf16>, vector<384x384xbf16>, vector<2x384xf32> -> vector<2x384xf32>
    %55 = vector.extract_strided_slice %20 {offsets = [0, 0, 0], sizes = [2, 1, 384], strides = [1, 1, 1]} : vector<2x8x384xf32> to vector<2x1x384xf32>
    %56 = vector.shape_cast %55 : vector<2x1x384xf32> to vector<2x384xf32>
    %57 = arith.addf %56, %54 : vector<2x384xf32>
    %cst_25 = arith.constant dense<0.000000e+00> : vector<2xf32>
    %58 = vector.multi_reduction <add>, %57, %cst_25 [1] : vector<2x384xf32> to vector<2xf32>
    %59 = vector.shape_cast %58 : vector<2xf32> to vector<2x1xf32>
    %cst_26 = arith.constant 0.00320512825 : f32
    %60 = vector.broadcast %cst_26 : f32 to vector<2x1xf32>
    %61 = arith.mulf %59, %60 : vector<2x1xf32>
    %62 = tpu.iota {dimensions = array<i32: 1>} : vector<2x384xi32>
    %c312_i32 = arith.constant 312 : i32
    %63 = vector.broadcast %c312_i32 : i32 to vector<2x384xi32>
    %64 = arith.cmpi slt, %62, %63 : vector<2x384xi32>
    %65 = arith.extui %64 : vector<2x384xi1> to vector<2x384xi32>
    %66 = arith.sitofp %65 : vector<2x384xi32> to vector<2x384xf32>
    %67 = vector.broadcast %61 : vector<2x1xf32> to vector<2x384xf32>
    %68 = arith.subf %57, %67 : vector<2x384xf32>
    %69 = arith.mulf %68, %66 : vector<2x384xf32>
    %70 = arith.mulf %69, %69 : vector<2x384xf32>
    %cst_27 = arith.constant dense<0.000000e+00> : vector<2xf32>
    %71 = vector.multi_reduction <add>, %70, %cst_27 [1] : vector<2x384xf32> to vector<2xf32>
    %72 = vector.shape_cast %71 : vector<2xf32> to vector<2x1xf32>
    %cst_28 = arith.constant 0.00320512825 : f32
    %73 = vector.broadcast %cst_28 : f32 to vector<2x1xf32>
    %74 = arith.mulf %72, %73 : vector<2x1xf32>
    %cst_29 = arith.constant 9.99999996E-13 : f32
    %75 = vector.broadcast %cst_29 : f32 to vector<2x1xf32>
    %76 = arith.addf %74, %75 : vector<2x1xf32>
    %77 = math.rsqrt %76 : vector<2x1xf32>
    %78 = vector.broadcast %77 : vector<2x1xf32> to vector<2x384xf32>
    %79 = arith.mulf %69, %78 : vector<2x384xf32>
    %c0_30 = arith.constant 0 : index
    %c0_31 = arith.constant 0 : index
    %80 = vector.load %arg9[%c0_30, %c0_31] : memref<1x384xf32, #tpu.memory_space<vmem>>, vector<1x384xf32>
    %81 = vector.broadcast %80 : vector<1x384xf32> to vector<2x384xf32>
    %82 = arith.mulf %79, %81 : vector<2x384xf32>
    %c0_32 = arith.constant 0 : index
    %c0_33 = arith.constant 0 : index
    %83 = vector.load %arg10[%c0_32, %c0_33] : memref<1x384xf32, #tpu.memory_space<vmem>>, vector<1x384xf32>
    %84 = vector.broadcast %83 : vector<1x384xf32> to vector<2x384xf32>
    %85 = arith.addf %82, %84 : vector<2x384xf32>
    %86 = arith.truncf %85 : vector<2x384xf32> to vector<2x384xbf16>
    %c0_34 = arith.constant 0 : index
    %c0_35 = arith.constant 0 : index
    %87 = vector.load %arg11[%c0_34, %c0_35] : memref<384x768xbf16, #tpu.memory_space<vmem>>, vector<384x768xbf16>
    %cst_36 = arith.constant dense<0.000000e+00> : vector<2x768xf32>
    %88 = tpu.matmul %86, %87, %cst_36 {dimension_numbers = #tpu.dot_dimension_numbers<[1], [0], [0], [1], [0, 0, 1, 1], [], []>} : vector<2x384xbf16>, vector<384x768xbf16>, vector<2x768xf32> -> vector<2x768xf32>
    %c0_37 = arith.constant 0 : index
    %c0_38 = arith.constant 0 : index
    %89 = vector.load %arg12[%c0_37, %c0_38] : memref<1x768xf32, #tpu.memory_space<vmem>>, vector<1x768xf32>
    %90 = vector.broadcast %89 : vector<1x768xf32> to vector<2x768xf32>
    %91 = arith.addf %88, %90 : vector<2x768xf32>
    %92 = arith.mulf %6, %6 : vector<2x768xf32>
    %cst_39 = arith.constant dense<0.000000e+00> : vector<2xf32>
    %93 = vector.multi_reduction <add>, %92, %cst_39 [1] : vector<2x768xf32> to vector<2xf32>
    %94 = vector.shape_cast %93 : vector<2xf32> to vector<2x1xf32>
    %cst_40 = arith.constant 9.99999996E-13 : f32
    %95 = vector.broadcast %cst_40 : f32 to vector<2x1xf32>
    %96 = arith.addf %94, %95 : vector<2x1xf32>
    %97 = math.rsqrt %96 : vector<2x1xf32>
    %98 = vector.broadcast %97 : vector<2x1xf32> to vector<2x768xf32>
    %99 = arith.mulf %6, %98 : vector<2x768xf32>
    %100 = arith.mulf %91, %91 : vector<2x768xf32>
    %cst_41 = arith.constant dense<0.000000e+00> : vector<2xf32>
    %101 = vector.multi_reduction <add>, %100, %cst_41 [1] : vector<2x768xf32> to vector<2xf32>
    %102 = vector.shape_cast %101 : vector<2xf32> to vector<2x1xf32>
    %cst_42 = arith.constant 9.99999996E-13 : f32
    %103 = vector.broadcast %cst_42 : f32 to vector<2x1xf32>
    %104 = arith.addf %102, %103 : vector<2x1xf32>
    %105 = math.rsqrt %104 : vector<2x1xf32>
    %106 = vector.broadcast %105 : vector<2x1xf32> to vector<2x768xf32>
    %107 = arith.mulf %91, %106 : vector<2x768xf32>
    %c0_43 = arith.constant 0 : index
    %c0_44 = arith.constant 0 : index
    %108 = memref.load %arg13[%c0_43, %c0_44] : memref<1x1xf32, #tpu.memory_space<smem>>
    %cst_45 = arith.constant dense<0.000000e+00> : vector<2x2xf32>
    %109 = tpu.matmul %99, %107, %cst_45 {dimension_numbers = #tpu.dot_dimension_numbers<[1], [1], [0], [0], [0, 0, 1, 0], [], []>} : vector<2x768xf32>, vector<2x768xf32>, vector<2x2xf32> -> vector<2x2xf32>
    %110 = vector.broadcast %108 : f32 to vector<2x2xf32>
    %111 = arith.mulf %110, %109 : vector<2x2xf32>
    %c0_46 = arith.constant 0 : index
    %c0_47 = arith.constant 0 : index
    %112 = vector.load %arg14[%c0_46, %c0_47] : memref<2x2xf32, #tpu.memory_space<vmem>>, vector<2x2xf32>
    tpu.vector_store %arg14[%c0_46, %c0_47], %111 {strides = array<i32>} : memref<2x2xf32, #tpu.memory_space<vmem>>, vector<2x2xf32>,
    return
  }
}

</mosaic_0001>

<llo_original>
// kernel: forward.1
$region0: #{forward.1}
  #allocation0 [shape = 'u32[]', space=smem, size = 0x4, offset = 0x4, fixed_abs, tag = 'smem constant byte address 0x4 - core index']
  #allocation1 [shape = 'u32[144,128]{1,0:T(1,128)}', space=vmem, size = 0x12000, scoped, tag = 'internal scratch']
  #allocation2 [shape = 'f32[1,1]{1,0:T(1,128)S(6)}', space=smem, size = 0x200, scoped, tag = 'scoped memory for forward.1']
  %s0 = inlined_call_operand.vmem [shape: f32[2,48], index: 0, kind: input, shape index: {}]
  %s1 = inlined_call_operand.vmem [shape: bf16[48,768], index: 1, kind: input, shape index: {}]
  %s2 = inlined_call_operand.vmem [shape: f32[1,768], index: 2, kind: input, shape index: {}, may-alias: {2,12}]
  %s3 = inlined_call_operand.vmem [shape: s32[16,1], index: 3, kind: input, shape index: {}]
  %s4 = inlined_call_operand.vmem [shape: f32[2,8], index: 4, kind: input, shape index: {}]
  %s5 = inlined_call_operand.vmem [shape: bf16[128,384], index: 5, kind: input, shape index: {}]
  %s6 = inlined_call_operand.vmem [shape: f32[8,384], index: 6, kind: input, shape index: {}]
  %s7 = inlined_call_operand.hbm [shape: bf16[384,1152], index: 7, kind: input, shape index: {}]
  %s8 = inlined_call_operand.vmem [shape: bf16[384,384], index: 8, kind: input, shape index: {}]
  %s9 = inlined_call_operand.vmem [shape: f32[1,384], index: 9, kind: input, shape index: {}]
  %s10 = inlined_call_operand.vmem [shape: f32[1,384], index: 10, kind: input, shape index: {}]
  %s11 = inlined_call_operand.hbm [shape: bf16[384,768], index: 11, kind: input, shape index: {}]
  %s12 = inlined_call_operand.vmem [shape: f32[1,768], index: 12, kind: input, shape index: {}, may-alias: {2,12}]
  %s13 = inlined_call_operand.<no memory space> [shape: f32[1,1], index: 13, kind: input, shape index: {}]
  %s14 = inlined_call_operand.vmem [shape: f32[2,2], index: 14, kind: output, shape index: {}]
  %s15 = sld [smem:[#allocation0]]
  $region74: #{forward.1} parent=0
    _
  %s17 = ssub.s32 1, %s15
  %s18 = scalar_select 0, %s17, %s15
  %19 = sst [smem:[#allocation2]] %s13
  $region1: #{forward.1} parent=0
    #allocation3 [shape = 'u8[884736]{0}', space=vmem, size = 0xd8000, scoped, tag = 'input window, operand 7, single buffered']
    #allocation4 [shape = 's32[1]{0}', space=sflag, size = 0x4, scoped, tag = 'scoped memory for forward.1']
    #allocation5 [shape = 'u8[589824]{0}', space=vmem, size = 0x90000, scoped, tag = 'input window, operand 11, single buffered']
    #allocation6 [shape = 's32[1]{0}', space=sflag, size = 0x4, scoped, tag = 'scoped memory for forward.1']
    %20 = vsyncpa [#allocation4], 0
    %21 = vsyncpa [#allocation6], 0
    // Predicated region
    $region2: #{forward.1} parent=1 // pred_check
      _
    $region3: #{forward.1} parent=1 // pred_check_branch
      %23 = sbr.rel (0) target = $region5
    $region4: #{forward.1} parent=1 // pred_region
      _
    $region5: #{forward.1} parent=1 // pred_fallthru
      _
    // Predicated region
    $region6: #{forward.1} parent=1 // pred_check
      _
    $region7: #{forward.1} parent=1 // pred_check_branch
      %25 = sbr.rel (0) target = $region9
    $region8: #{forward.1} parent=1 // pred_region
      _
    $region9: #{forward.1} parent=1 // pred_fallthru
      _
    // Predicated region
    $region10: #{forward.1} parent=1 // pred_check
      _
    $region11: #{forward.1} parent=1 // pred_check_branch
      %27 = sbr.rel (0) target = $region13
    $region12: #{forward.1} parent=1 // pred_region
      _
    $region13: #{forward.1} parent=1 // pred_fallthru
      _
    // Predicated region
    $region14: #{forward.1} parent=1 // pred_check
      _
    $region15: #{forward.1} parent=1 // pred_check_branch
      %29 = sbr.rel (0) target = $region17
    $region16: #{forward.1} parent=1 // pred_region
      _
    $region17: #{forward.1} parent=1 // pred_fallthru
      _
    // Predicated region
    $region18: #{forward.1} parent=1 // pred_check
      _
    $region19: #{forward.1} parent=1 // pred_check_branch
      %31 = sbr.rel (0) target = $region21
    $region20: #{forward.1} parent=1 // pred_region
      _
    $region21: #{forward.1} parent=1 // pred_fallthru
      _
    // Predicated region
    $region22: #{forward.1} parent=1 // pred_check
      _
    $region23: #{forward.1} parent=1 // pred_check_branch
      %33 = sbr.rel (0) target = $region25
    $region24: #{forward.1} parent=1 // pred_region
      _
    $region25: #{forward.1} parent=1 // pred_fallthru
      _
    // Predicated region
    $region26: #{forward.1} parent=1 // pred_check
      _
    $region27: #{forward.1} parent=1 // pred_check_branch
      %35 = sbr.rel (0) target = $region29
    $region28: #{forward.1} parent=1 // pred_region
      _
    $region29: #{forward.1} parent=1 // pred_fallthru
      _
    // Predicated region
    $region30: #{forward.1} parent=1 // pred_check
      _
    $region31: #{forward.1} parent=1 // pred_check_branch
      %37 = sbr.rel (0) target = $region33
    $region32: #{forward.1} parent=1 // pred_region
      %s39 = ssub.s32 27648, 27648
      %40 = vsyncadd [#allocation4], %s39
      %s41 = sshll.u32 [#allocation3], 4
      %s42 = int_to_ptr.vmem [resolvable:$true] %s41
      %47 = dma.hbm_to_vmem [thread:$0]  %s7, 27648, %s42, [#allocation4], 576, 576, 36
    $region33: #{forward.1} parent=1 // pred_fallthru
      _
    // Predicated region
    $region34: #{forward.1} parent=1 // pred_check
      _
    $region35: #{forward.1} parent=1 // pred_check_branch
      %49 = sbr.rel (0) target = $region37
    $region36: #{forward.1} parent=1 // pred_region
      _
    $region37: #{forward.1} parent=1 // pred_fallthru
      _
    // Predicated region
    $region38: #{forward.1} parent=1 // pred_check
      _
    $region39: #{forward.1} parent=1 // pred_check_branch
      %51 = sbr.rel (0) target = $region41
    $region40: #{forward.1} parent=1 // pred_region
      _
    $region41: #{forward.1} parent=1 // pred_fallthru
      _
    // Predicated region
    $region42: #{forward.1} parent=1 // pred_check
      _
    $region43: #{forward.1} parent=1 // pred_check_branch
      %53 = sbr.rel (0) target = $region45
    $region44: #{forward.1} parent=1 // pred_region
      _
    $region45: #{forward.1} parent=1 // pred_fallthru
      _
    // Predicated region
    $region46: #{forward.1} parent=1 // pred_check
      _
    $region47: #{forward.1} parent=1 // pred_check_branch
      %55 = sbr.rel (0) target = $region49
    $region48: #{forward.1} parent=1 // pred_region
      %s57 = ssub.s32 18432, 18432
      %58 = vsyncadd [#allocation6], %s57
      %s59 = sshll.u32 [#allocation5], 4
      %s60 = int_to_ptr.vmem [resolvable:$true] %s59
      %65 = dma.hbm_to_vmem [thread:$0]  %s11, 18432, %s60, [#allocation6], 384, 384, 24
    $region49: #{forward.1} parent=1 // pred_fallthru
      _
    // Predicated region
    $region50: #{forward.1} parent=1 // pred_check
      _
    $region51: #{forward.1} parent=1 // pred_check_branch
      %67 = sbr.rel (0) target = $region53
    $region52: #{forward.1} parent=1 // pred_region
      _
    $region53: #{forward.1} parent=1 // pred_fallthru
      _
    // Predicated region
    $region54: #{forward.1} parent=1 // pred_check
      _
    $region55: #{forward.1} parent=1 // pred_check_branch
      %69 = sbr.rel (0) target = $region57
    $region56: #{forward.1} parent=1 // pred_region
      _
    $region57: #{forward.1} parent=1 // pred_fallthru
      _
    // Predicated region
    $region58: #{forward.1} parent=1 // pred_check
      _
    $region59: #{forward.1} parent=1 // pred_check_branch
      %71 = sbr.rel (0) target = $region61
    $region60: #{forward.1} parent=1 // pred_region
      %72 = dma.done [#allocation4], 27648
    $region61: #{forward.1} parent=1 // pred_fallthru
      _
    // Predicated region
    $region62: #{forward.1} parent=1 // pred_check
      _
    $region63: #{forward.1} parent=1 // pred_check_branch
      %74 = sbr.rel (0) target = $region65
    $region64: #{forward.1} parent=1 // pred_region
      %75 = dma.done [#allocation6], 18432
    $region65: #{forward.1} parent=1 // pred_fallthru
      _
    %v77 = vld [vmem:[%s0] sm:$0x3]
    %v78 = vpack.c.bf16 %v77, %v77
    %v79 = vld [vmem:[%s1] sm:$0xff]
    %v80 = vld [vmem:[%s1 + $0x8] sm:$0xff]
    %v81 = vld [vmem:[%s1 + $0x10] sm:$0xff]
    %v82 = vld [vmem:[%s1 + $0x18] sm:$0xff]
    %v83 = vld [vmem:[%s1 + $0x20] sm:$0xff]
    %v84 = vld [vmem:[%s1 + $0x28] sm:$0xff]
    %v85 = vld [vmem:[%s1 + $0x30] sm:$0xff]
    %v86 = vld [vmem:[%s1 + $0x38] sm:$0xff]
    %v87 = vld [vmem:[%s1 + $0x40] sm:$0xff]
    %v88 = vld [vmem:[%s1 + $0x48] sm:$0xff]
    %v89 = vld [vmem:[%s1 + $0x50] sm:$0xff]
    %v90 = vld [vmem:[%s1 + $0x58] sm:$0xff]
    %v91 = vld [vmem:[%s1 + $0x60] sm:$0xff]
    %v92 = vld [vmem:[%s1 + $0x68] sm:$0xff]
    %v93 = vld [vmem:[%s1 + $0x70] sm:$0xff]
    %v94 = vld [vmem:[%s1 + $0x78] sm:$0xff]
    %v95 = vld [vmem:[%s1 + $0x80] sm:$0xff]
    %v96 = vld [vmem:[%s1 + $0x88] sm:$0xff]
    %v97 = vld [vmem:[%s2] sm:$0x3f]
    %v99 = vlaneseq
    %v100 = vshrl.u32 %v99, 7
    %v101 = vsub.s32 0, %v100
    %v102 = vrot.slane %v97, %v101
    %v103 = vlaneseq
    %v104 = vshrl.u32 %v103, 7
    %v105 = vsub.s32 1, %v104
    %v106 = vrot.slane %v97, %v105
    %v107 = vlaneseq
    %v108 = vshrl.u32 %v107, 7
    %v109 = vsub.s32 2, %v108
    %v110 = vrot.slane %v97, %v109
    %v111 = vlaneseq
    %v112 = vshrl.u32 %v111, 7
    %v113 = vsub.s32 3, %v112
    %v114 = vrot.slane %v97, %v113
    %v115 = vlaneseq
    %v116 = vshrl.u32 %v115, 7
    %v117 = vsub.s32 4, %v116
    %v118 = vrot.slane %v97, %v117
    %v119 = vlaneseq
    %v120 = vshrl.u32 %v119, 7
    %v121 = vsub.s32 5, %v120
    %v122 = vrot.slane %v97, %v121
    %v147 = vunpack.c.l.b16 %v79
    %v148 = vunpack.c.h.b16 %v79
    %v149 = vunpack.c.l.b16 %v80
    %v150 = vunpack.c.h.b16 %v80
    %v151 = vunpack.c.l.b16 %v81
    %v152 = vunpack.c.h.b16 %v81
    %v153 = vunpack.c.l.b16 %v82
    %v154 = vunpack.c.h.b16 %v82
    %v155 = vunpack.c.l.b16 %v83
    %v156 = vunpack.c.h.b16 %v83
    %v157 = vunpack.c.l.b16 %v84
    %v158 = vunpack.c.h.b16 %v84
    %v159 = vunpack.c.l.b16 %v85
    %v160 = vunpack.c.h.b16 %v85
    %v161 = vunpack.c.l.b16 %v86
    %v162 = vunpack.c.h.b16 %v86
    %v163 = vunpack.c.l.b16 %v87
    %v164 = vunpack.c.h.b16 %v87
    %v165 = vunpack.c.l.b16 %v88
    %v166 = vunpack.c.h.b16 %v88
    %v167 = vunpack.c.l.b16 %v89
    %v168 = vunpack.c.h.b16 %v89
    %v169 = vunpack.c.l.b16 %v90
    %v170 = vunpack.c.h.b16 %v90
    %v171 = vunpack.c.l.b16 %v91
    %v172 = vunpack.c.h.b16 %v91
    %v173 = vunpack.c.l.b16 %v92
    %v174 = vunpack.c.h.b16 %v92
    %v175 = vunpack.c.l.b16 %v93
    %v176 = vunpack.c.h.b16 %v93
    %v177 = vunpack.c.l.b16 %v94
    %v178 = vunpack.c.h.b16 %v94
    %v179 = vunpack.c.l.b16 %v95
    %v180 = vunpack.c.h.b16 %v95
    %v181 = vunpack.c.l.b16 %v96
    %v182 = vunpack.c.h.b16 %v96
    %v183 = vpack.c.b16 %v153, %v147
    %v184 = vpack.c.b16 %v154, %v148
    %v185 = vpack.c.b16 %v155, %v149
    %v186 = vpack.c.b16 %v156, %v150
    %v187 = vpack.c.b16 %v157, %v151
    %v188 = vpack.c.b16 %v158, %v152
    %v189 = vpack.c.b16 %v165, %v159
    %v190 = vpack.c.b16 %v166, %v160
    %v191 = vpack.c.b16 %v167, %v161
    %v192 = vpack.c.b16 %v168, %v162
    %v193 = vpack.c.b16 %v169, %v163
    %v194 = vpack.c.b16 %v170, %v164
    %v195 = vpack.c.b16 %v177, %v171
    %v196 = vpack.c.b16 %v178, %v172
    %v197 = vpack.c.b16 %v179, %v173
    %v198 = vpack.c.b16 %v180, %v174
    %v199 = vpack.c.b16 %v181, %v175
    %v200 = vpack.c.b16 %v182, %v176
    %vm219 = vcmask 392192
    %v221 = vsel %vm219, %v78, 0
    %223 = vmatprep.subr.bf16.mxu0 0
    %224 = vmatpush1.bf16.msra.mxu0 0
    %225 = vmatprep.subr.bf16.mxu0 0
    %226 = vmatpush1.bf16.msra.mxu0 0
    %227 = vmatprep.subr.bf16.mxu0 0
    %228 = vmatpush1.bf16.msra.mxu0 0
    %229 = vmatprep.subr.bf16.mxu0 0
    %230 = vmatpush1.bf16.msra.mxu0 0
    %231 = vmatprep.subr.bf16.mxu0 0
    %232 = vmatpush1.bf16.msra.mxu0 0
    %233 = vmatprep.subr.bf16.mxu0 %v196
    %234 = vmatpush1.bf16.msra.mxu0 %v195
    %235 = vmatprep.subr.bf16.mxu0 %v190
    %236 = vmatpush1.bf16.msra.mxu0 %v189
    %237 = vmatprep.subr.bf16.mxu0 %v184
    %238 = vmatpush1.bf16.msra.mxu0 %v183
    %239 = vmatprep.subr.bf16.mxu0 0
    %240 = vmatpush2.bf16.msra.mxu0 0
    %241 = vmatprep.subr.bf16.mxu0 0
    %242 = vmatpush2.bf16.msra.mxu0 0
    %243 = vmatprep.subr.bf16.mxu0 0
    %244 = vmatpush2.bf16.msra.mxu0 0
    %245 = vmatprep.subr.bf16.mxu0 0
    %246 = vmatpush2.bf16.msra.mxu0 0
    %247 = vmatprep.subr.bf16.mxu0 0
    %248 = vmatpush2.bf16.msra.mxu0 0
    %249 = vmatprep.subr.bf16.mxu0 0
    %250 = vmatpush2.bf16.msra.mxu0 0
    %251 = vmatprep.subr.bf16.mxu0 0
    %252 = vmatpush2.bf16.msra.mxu0 0
    %253 = vmatprep.subr.bf16.mxu0 0
    %254 = vmatpush2.bf16.msra.mxu0 0
    %255 = vmatprep.mubr.bf16.mxu0 0
    %256 = vmatmul.mubr.bf16.gmra.mxu0 %v221
    %v257 = vpop.f32.mrf.mxu0
    %v258 = vadd.f32 %v102, %v257
    %v259 = vpop.f32.mrf.mxu0
    %v260 = vadd.f32 %v106, %v259
    %v261 = vpop.f32.mrf.mxu0
    %v262 = vpop.f32.mrf.mxu0
    %263 = vdwg.mxu0
    %264 = vmatprep.subr.bf16.mxu0 0
    %265 = vmatpush1.bf16.msra.mxu0 0
    %266 = vmatprep.subr.bf16.mxu0 0
    %267 = vmatpush1.bf16.msra.mxu0 0
    %268 = vmatprep.subr.bf16.mxu0 0
    %269 = vmatpush1.bf16.msra.mxu0 0
    %270 = vmatprep.subr.bf16.mxu0 0
    %271 = vmatpush1.bf16.msra.mxu0 0
    %272 = vmatprep.subr.bf16.mxu0 0
    %273 = vmatpush1.bf16.msra.mxu0 0
    %274 = vmatprep.subr.bf16.mxu0 %v198
    %275 = vmatpush1.bf16.msra.mxu0 %v197
    %276 = vmatprep.subr.bf16.mxu0 %v192
    %277 = vmatpush1.bf16.msra.mxu0 %v191
    %278 = vmatprep.subr.bf16.mxu0 %v186
    %279 = vmatpush1.bf16.msra.mxu0 %v185
    %280 = vmatprep.subr.bf16.mxu0 0
    %281 = vmatpush2.bf16.msra.mxu0 0
    %282 = vmatprep.subr.bf16.mxu0 0
    %283 = vmatpush2.bf16.msra.mxu0 0
    %284 = vmatprep.subr.bf16.mxu0 0
    %285 = vmatpush2.bf16.msra.mxu0 0
    %286 = vmatprep.subr.bf16.mxu0 0
    %287 = vmatpush2.bf16.msra.mxu0 0
    %288 = vmatprep.subr.bf16.mxu0 0
    %289 = vmatpush2.bf16.msra.mxu0 0
    %290 = vmatprep.subr.bf16.mxu0 0
    %291 = vmatpush2.bf16.msra.mxu0 0
    %292 = vmatprep.subr.bf16.mxu0 0
    %293 = vmatpush2.bf16.msra.mxu0 0
    %294 = vmatprep.subr.bf16.mxu0 0
    %295 = vmatpush2.bf16.msra.mxu0 0
    %296 = vmatprep.mubr.bf16.mxu0 0
    %297 = vmatmul.mubr.bf16.gmra.mxu0 %v221
    %v298 = vpop.f32.mrf.mxu0
    %v299 = vadd.f32 %v110, %v298
    %v300 = vpop.f32.mrf.mxu0
    %v301 = vadd.f32 %v114, %v300
    %v302 = vpop.f32.mrf.mxu0
    %v303 = vpop.f32.mrf.mxu0
    %304 = vdwg.mxu0
    %305 = vmatprep.subr.bf16.mxu0 0
    %306 = vmatpush1.bf16.msra.mxu0 0
    %307 = vmatprep.subr.bf16.mxu0 0
    %308 = vmatpush1.bf16.msra.mxu0 0
    %309 = vmatprep.subr.bf16.mxu0 0
    %310 = vmatpush1.bf16.msra.mxu0 0
    %311 = vmatprep.subr.bf16.mxu0 0
    %312 = vmatpush1.bf16.msra.mxu0 0
    %313 = vmatprep.subr.bf16.mxu0 0
    %314 = vmatpush1.bf16.msra.mxu0 0
    %315 = vmatprep.subr.bf16.mxu0 %v200
    %316 = vmatpush1.bf16.msra.mxu0 %v199
    %317 = vmatprep.subr.bf16.mxu0 %v194
    %318 = vmatpush1.bf16.msra.mxu0 %v193
    %319 = vmatprep.subr.bf16.mxu0 %v188
    %320 = vmatpush1.bf16.msra.mxu0 %v187
    %321 = vmatprep.subr.bf16.mxu0 0
    %322 = vmatpush2.bf16.msra.mxu0 0
    %323 = vmatprep.subr.bf16.mxu0 0
    %324 = vmatpush2.bf16.msra.mxu0 0
    %325 = vmatprep.subr.bf16.mxu0 0
    %326 = vmatpush2.bf16.msra.mxu0 0
    %327 = vmatprep.subr.bf16.mxu0 0
    %328 = vmatpush2.bf16.msra.mxu0 0
    %329 = vmatprep.subr.bf16.mxu0 0
    %330 = vmatpush2.bf16.msra.mxu0 0
    %331 = vmatprep.subr.bf16.mxu0 0
    %332 = vmatpush2.bf16.msra.mxu0 0
    %333 = vmatprep.subr.bf16.mxu0 0
    %334 = vmatpush2.bf16.msra.mxu0 0
    %335 = vmatprep.subr.bf16.mxu0 0
    %336 = vmatpush2.bf16.msra.mxu0 0
    %337 = vmatprep.mubr.bf16.mxu0 0
    %338 = vmatmul.mubr.bf16.gmra.mxu0 %v221
    %v339 = vpop.f32.mrf.mxu0
    %v340 = vadd.f32 %v118, %v339
    %v341 = vpop.f32.mrf.mxu0
    %v342 = vadd.f32 %v122, %v341
    %v343 = vpop.f32.mrf.mxu0
    %v344 = vpop.f32.mrf.mxu0
    %345 = vdwg.mxu0
    %v346 = vlaneseq
    %v347 = vand.u32 %v346, 127
    %v348 = vld [vmem:[%s3] sm:$0xff]
    %v349 = vld [vmem:[%s3 + $0x8] sm:$0xff]
    %350 = vset.pattern.permute.xlu0 0
    %351 = vperm.xlu0 %350, %v348
    %v352 = vpop.permute.xlu0 %351
    %353 = vset.pattern.permute.xlu0 0
    %354 = vperm.xlu0 %353, %v349
    %v355 = vpop.permute.xlu0 %354
    %vm356 = vcmp.eq.s32.totalorder %v352, %v347
    %vm357 = vcmp.eq.s32.totalorder %v355, %v347
    %v358 = vsel %vm356, 1, 0
    %v359 = vsel %vm357, 1, 0
    %v360 = vcvt.s32.f32 %v358
    %v361 = vcvt.s32.f32 %v359
    %v362 = vpack.c.bf16 %v361, %v360
    %v363 = vld [vmem:[%s5] sm:$0xff]
    %v364 = vld [vmem:[%s5 + $0x8] sm:$0xf]
    %v365 = vld [vmem:[%s5 + $0xc] sm:$0xff]
    %v366 = vld [vmem:[%s5 + $0x14] sm:$0xf]
    %v367 = vld [vmem:[%s5 + $0x18] sm:$0xff]
    %v368 = vld [vmem:[%s5 + $0x20] sm:$0xf]
    %v369 = vld [vmem:[%s5 + $0x24] sm:$0xff]
    %v370 = vld [vmem:[%s5 + $0x2c] sm:$0xf]
    %v371 = vld [vmem:[%s5 + $0x30] sm:$0xff]
    %v372 = vld [vmem:[%s5 + $0x38] sm:$0xf]
    %v373 = vld [vmem:[%s5 + $0x3c] sm:$0xff]
    %v374 = vld [vmem:[%s5 + $0x44] sm:$0xf]
    %v375 = vld [vmem:[%s5 + $0x48] sm:$0xff]
    %v376 = vld [vmem:[%s5 + $0x50] sm:$0xf]
    %v377 = vld [vmem:[%s5 + $0x54] sm:$0xff]
    %v378 = vld [vmem:[%s5 + $0x5c] sm:$0xf]
    %v379 = vld [vmem:[%s5 + $0x60] sm:$0xff]
    %v380 = vld [vmem:[%s5 + $0x68] sm:$0xf]
    %v381 = vld [vmem:[%s5 + $0x6c] sm:$0xff]
    %v382 = vld [vmem:[%s5 + $0x74] sm:$0xf]
    %v383 = vld [vmem:[%s5 + $0x78] sm:$0xff]
    %v384 = vld [vmem:[%s5 + $0x80] sm:$0xf]
    %v385 = vld [vmem:[%s5 + $0x84] sm:$0xff]
    %v386 = vld [vmem:[%s5 + $0x8c] sm:$0xf]
    %v387 = vld [vmem:[%s5 + $0x90] sm:$0xff]
    %v388 = vld [vmem:[%s5 + $0x98] sm:$0xf]
    %v389 = vld [vmem:[%s5 + $0x9c] sm:$0xff]
    %v390 = vld [vmem:[%s5 + $0xa4] sm:$0xf]
    %v391 = vld [vmem:[%s5 + $0xa8] sm:$0xff]
    %v392 = vld [vmem:[%s5 + $0xb0] sm:$0xf]
    %v393 = vld [vmem:[%s5 + $0xb4] sm:$0xff]
    %v394 = vld [vmem:[%s5 + $0xbc] sm:$0xf]
    %v427 = vunpack.c.l.b16 %v363
    %v428 = vunpack.c.h.b16 %v363
    %v429 = vunpack.c.l.b16 %v364
    %v430 = vunpack.c.l.b16 %v365
    %v431 = vunpack.c.h.b16 %v365
    %v432 = vunpack.c.l.b16 %v366
    %v433 = vunpack.c.l.b16 %v367
    %v434 = vunpack.c.h.b16 %v367
    %v435 = vunpack.c.l.b16 %v368
    %v436 = vunpack.c.l.b16 %v369
    %v437 = vunpack.c.h.b16 %v369
    %v438 = vunpack.c.l.b16 %v370
    %v439 = vunpack.c.l.b16 %v371
    %v440 = vunpack.c.h.b16 %v371
    %v441 = vunpack.c.l.b16 %v372
    %v442 = vunpack.c.l.b16 %v373
    %v443 = vunpack.c.h.b16 %v373
    %v444 = vunpack.c.l.b16 %v374
    %v445 = vunpack.c.l.b16 %v375
    %v446 = vunpack.c.h.b16 %v375
    %v447 = vunpack.c.l.b16 %v376
    %v448 = vunpack.c.l.b16 %v377
    %v449 = vunpack.c.h.b16 %v377
    %v450 = vunpack.c.l.b16 %v378
    %v451 = vunpack.c.l.b16 %v379
    %v452 = vunpack.c.h.b16 %v379
    %v453 = vunpack.c.l.b16 %v380
    %v454 = vunpack.c.l.b16 %v381
    %v455 = vunpack.c.h.b16 %v381
    %v456 = vunpack.c.l.b16 %v382
    %v457 = vunpack.c.l.b16 %v383
    %v458 = vunpack.c.h.b16 %v383
    %v459 = vunpack.c.l.b16 %v384
    %v460 = vunpack.c.l.b16 %v385
    %v461 = vunpack.c.h.b16 %v385
    %v462 = vunpack.c.l.b16 %v386
    %v463 = vunpack.c.l.b16 %v387
    %v464 = vunpack.c.h.b16 %v387
    %v465 = vunpack.c.l.b16 %v388
    %v466 = vunpack.c.l.b16 %v389
    %v467 = vunpack.c.h.b16 %v389
    %v468 = vunpack.c.l.b16 %v390
    %v469 = vunpack.c.l.b16 %v391
    %v470 = vunpack.c.h.b16 %v391
    %v471 = vunpack.c.l.b16 %v392
    %v472 = vunpack.c.l.b16 %v393
    %v473 = vunpack.c.h.b16 %v393
    %v474 = vunpack.c.l.b16 %v394
    %v475 = vpack.c.b16 %v430, %v427
    %v476 = vpack.c.b16 %v431, %v428
    %v477 = vpack.c.b16 %v432, %v429
    %v478 = vpack.c.b16 %v436, %v433
    %v479 = vpack.c.b16 %v437, %v434
    %v480 = vpack.c.b16 %v438, %v435
    %v481 = vpack.c.b16 %v442, %v439
    %v482 = vpack.c.b16 %v443, %v440
    %v483 = vpack.c.b16 %v444, %v441
    %v484 = vpack.c.b16 %v448, %v445
    %v485 = vpack.c.b16 %v449, %v446
    %v486 = vpack.c.b16 %v450, %v447
    %v487 = vpack.c.b16 %v454, %v451
    %v488 = vpack.c.b16 %v455, %v452
    %v489 = vpack.c.b16 %v456, %v453
    %v490 = vpack.c.b16 %v460, %v457
    %v491 = vpack.c.b16 %v461, %v458
    %v492 = vpack.c.b16 %v462, %v459
    %v493 = vpack.c.b16 %v466, %v463
    %v494 = vpack.c.b16 %v467, %v464
    %v495 = vpack.c.b16 %v468, %v465
    %v496 = vpack.c.b16 %v472, %v469
    %v497 = vpack.c.b16 %v473, %v470
    %v498 = vpack.c.b16 %v474, %v471
    %523 = vmatprep.subr.bf16.mxu0 %v497
    %524 = vmatpush1.bf16.msra.mxu0 %v496
    %525 = vmatprep.subr.bf16.mxu0 %v494
    %526 = vmatpush1.bf16.msra.mxu0 %v493
    %527 = vmatprep.subr.bf16.mxu0 %v491
    %528 = vmatpush1.bf16.msra.mxu0 %v490
    %529 = vmatprep.subr.bf16.mxu0 %v488
    %530 = vmatpush1.bf16.msra.mxu0 %v487
    %531 = vmatprep.subr.bf16.mxu0 %v485
    %532 = vmatpush1.bf16.msra.mxu0 %v484
    %533 = vmatprep.subr.bf16.mxu0 %v482
    %534 = vmatpush1.bf16.msra.mxu0 %v481
    %535 = vmatprep.subr.bf16.mxu0 %v479
    %536 = vmatpush1.bf16.msra.mxu0 %v478
    %537 = vmatprep.subr.bf16.mxu0 %v476
    %538 = vmatpush1.bf16.msra.mxu0 %v475
    %539 = vmatprep.subr.bf16.mxu0 0
    %540 = vmatpush2.bf16.msra.mxu0 0
    %541 = vmatprep.subr.bf16.mxu0 0
    %542 = vmatpush2.bf16.msra.mxu0 0
    %543 = vmatprep.subr.bf16.mxu0 0
    %544 = vmatpush2.bf16.msra.mxu0 0
    %545 = vmatprep.subr.bf16.mxu0 0
    %546 = vmatpush2.bf16.msra.mxu0 0
    %547 = vmatprep.subr.bf16.mxu0 0
    %548 = vmatpush2.bf16.msra.mxu0 0
    %549 = vmatprep.subr.bf16.mxu0 0
    %550 = vmatpush2.bf16.msra.mxu0 0
    %551 = vmatprep.subr.bf16.mxu0 0
    %552 = vmatpush2.bf16.msra.mxu0 0
    %553 = vmatprep.subr.bf16.mxu0 0
    %554 = vmatpush2.bf16.msra.mxu0 0
    %555 = vmatprep.mubr.bf16.mxu0 0
    %556 = vmatmul.mubr.bf16.gmra.mxu0 %v362
    %v557 = vpop.f32.mrf.mxu0
    %v558 = vadd.f32 0.0, %v557
    %v559 = vpop.f32.mrf.mxu0
    %v560 = vadd.f32 0.0, %v559
    %v561 = vpop.f32.mrf.mxu0
    %v562 = vadd.f32 0.0, %v561
    %v563 = vpop.f32.mrf.mxu0
    %v564 = vadd.f32 0.0, %v563
    %565 = vdwg.mxu0
    %566 = vmatprep.subr.bf16.mxu0 0
    %567 = vmatpush1.bf16.msra.mxu0 %v498
    %568 = vmatprep.subr.bf16.mxu0 0
    %569 = vmatpush1.bf16.msra.mxu0 %v495
    %570 = vmatprep.subr.bf16.mxu0 0
    %571 = vmatpush1.bf16.msra.mxu0 %v492
    %572 = vmatprep.subr.bf16.mxu0 0
    %573 = vmatpush1.bf16.msra.mxu0 %v489
    %574 = vmatprep.subr.bf16.mxu0 0
    %575 = vmatpush1.bf16.msra.mxu0 %v486
    %576 = vmatprep.subr.bf16.mxu0 0
    %577 = vmatpush1.bf16.msra.mxu0 %v483
    %578 = vmatprep.subr.bf16.mxu0 0
    %579 = vmatpush1.bf16.msra.mxu0 %v480
    %580 = vmatprep.subr.bf16.mxu0 0
    %581 = vmatpush1.bf16.msra.mxu0 %v477
    %582 = vmatprep.subr.bf16.mxu0 0
    %583 = vmatpush2.bf16.msra.mxu0 0
    %584 = vmatprep.subr.bf16.mxu0 0
    %585 = vmatpush2.bf16.msra.mxu0 0
    %586 = vmatprep.subr.bf16.mxu0 0
    %587 = vmatpush2.bf16.msra.mxu0 0
    %588 = vmatprep.subr.bf16.mxu0 0
    %589 = vmatpush2.bf16.msra.mxu0 0
    %590 = vmatprep.subr.bf16.mxu0 0
    %591 = vmatpush2.bf16.msra.mxu0 0
    %592 = vmatprep.subr.bf16.mxu0 0
    %593 = vmatpush2.bf16.msra.mxu0 0
    %594 = vmatprep.subr.bf16.mxu0 0
    %595 = vmatpush2.bf16.msra.mxu0 0
    %596 = vmatprep.subr.bf16.mxu0 0
    %597 = vmatpush2.bf16.msra.mxu0 0
    %598 = vmatprep.mubr.bf16.mxu0 0
    %599 = vmatmul.mubr.bf16.gmra.mxu0 %v362
    %v600 = vpop.f32.mrf.mxu0
    %v601 = vadd.f32 0.0, %v600
    %v602 = vpop.f32.mrf.mxu0
    %v603 = vpop.f32.mrf.mxu0
    %v604 = vadd.f32 0.0, %v603
    %v605 = vpop.f32.mrf.mxu0
    %606 = vdwg.mxu0
    %v607 = vld [vmem:[%s6] sm:$0xff]
    %v608 = vld [vmem:[%s6 + $0x8] sm:$0xff]
    %v609 = vld [vmem:[%s6 + $0x10] sm:$0xff]
    %v610 = vadd.f32 %v558, %v607
    %v611 = vadd.f32 %v560, %v608
    %v612 = vadd.f32 %v601, %v609
    %v613 = vadd.f32 %v562, %v607
    %v614 = vadd.f32 %v564, %v608
    %v615 = vadd.f32 %v604, %v609
    %v616 = vpack.c.bf16 %v613, %v610
    %v617 = vpack.c.bf16 %v614, %v611
    %v618 = vpack.c.bf16 %v615, %v612
    %v619 = vld [vmem:[#allocation3] sm:$0xff]
    %v620 = vld [vmem:[#allocation3 + $0x8] sm:$0xff]
    %v621 = vld [vmem:[#allocation3 + $0x10] sm:$0xff]
    %v622 = vld [vmem:[#allocation3 + $0x18] sm:$0xff]
    %v623 = vld [vmem:[#allocation3 + $0x20] sm:$0xf]
    %v624 = vld [vmem:[#allocation3 + $0x24] sm:$0xff]
    %v625 = vld [vmem:[#allocation3 + $0x2c] sm:$0xff]
    %v626 = vld [vmem:[#allocation3 + $0x34] sm:$0xff]
    %v627 = vld [vmem:[#allocation3 + $0x3c] sm:$0xff]
    %v628 = vld [vmem:[#allocation3 + $0x44] sm:$0xf]
    %v629 = vld [vmem:[#allocation3 + $0x48] sm:$0xff]
    %v630 = vld [vmem:[#allocation3 + $0x50] sm:$0xff]
    %v631 = vld [vmem:[#allocation3 + $0x58] sm:$0xff]
    %v632 = vld [vmem:[#allocation3 + $0x60] sm:$0xff]
    %v633 = vld [vmem:[#allocation3 + $0x68] sm:$0xf]
    %v634 = vld [vmem:[#allocation3 + $0x6c] sm:$0xff]
    %v635 = vld [vmem:[#allocation3 + $0x74] sm:$0xff]
    %v636 = vld [vmem:[#allocation3 + $0x7c] sm:$0xff]
    %v637 = vld [vmem:[#allocation3 + $0x84] sm:$0xff]
    %v638 = vld [vmem:[#allocation3 + $0x8c] sm:$0xf]
    %v639 = vld [vmem:[#allocation3 + $0x90] sm:$0xff]
    %v640 = vld [vmem:[#allocation3 + $0x98] sm:$0xff]
    %v641 = vld [vmem:[#allocation3 + $0xa0] sm:$0xff]
    %v642 = vld [vmem:[#allocation3 + $0xa8] sm:$0xff]
    %v643 = vld [vmem:[#allocation3 + $0xb0] sm:$0xf]
    %v644 = vld [vmem:[#allocation3 + $0xb4] sm:$0xff]
    %v645 = vld [vmem:[#allocation3 + $0xbc] sm:$0xff]
    %v646 = vld [vmem:[#allocation3 + $0xc4] sm:$0xff]
    %v647 = vld [vmem:[#allocation3 + $0xcc] sm:$0xff]
    %v648 = vld [vmem:[#allocation3 + $0xd4] sm:$0xf]
    %v649 = vld [vmem:[#allocation3 + $0xd8] sm:$0xff]
    %v650 = vld [vmem:[#allocation3 + $0xe0] sm:$0xff]
    %v651 = vld [vmem:[#allocation3 + $0xe8] sm:$0xff]
    %v652 = vld [vmem:[#allocation3 + $0xf0] sm:$0xff]
    %v653 = vld [vmem:[#allocation3 + $0xf8] sm:$0xf]
    %v654 = vld [vmem:[#allocation3 + $0xfc] sm:$0xff]
    %v655 = vld [vmem:[#allocation3 + $0x104] sm:$0xff]
    %v656 = vld [vmem:[#allocation3 + $0x10c] sm:$0xff]
    %v657 = vld [vmem:[#allocation3 + $0x114] sm:$0xff]
    %v658 = vld [vmem:[#allocation3 + $0x11c] sm:$0xf]
    %v659 = vld [vmem:[#allocation3 + $0x120] sm:$0xff]
    %v660 = vld [vmem:[#allocation3 + $0x128] sm:$0xff]
    %v661 = vld [vmem:[#allocation3 + $0x130] sm:$0xff]
    %v662 = vld [vmem:[#allocation3 + $0x138] sm:$0xff]
    %v663 = vld [vmem:[#allocation3 + $0x140] sm:$0xf]
    %v664 = vld [vmem:[#allocation3 + $0x144] sm:$0xff]
    %v665 = vld [vmem:[#allocation3 + $0x14c] sm:$0xff]
    %v666 = vld [vmem:[#allocation3 + $0x154] sm:$0xff]
    %v667 = vld [vmem:[#allocation3 + $0x15c] sm:$0xff]
    %v668 = vld [vmem:[#allocation3 + $0x164] sm:$0xf]
    %v669 = vld [vmem:[#allocation3 + $0x168] sm:$0xff]
    %v670 = vld [vmem:[#allocation3 + $0x170] sm:$0xff]
    %v671 = vld [vmem:[#allocation3 + $0x178] sm:$0xff]
    %v672 = vld [vmem:[#allocation3 + $0x180] sm:$0xff]
    %v673 = vld [vmem:[#allocation3 + $0x188] sm:$0xf]
    %v674 = vld [vmem:[#allocation3 + $0x18c] sm:$0xff]
    %v675 = vld [vmem:[#allocation3 + $0x194] sm:$0xff]
    %v676 = vld [vmem:[#allocation3 + $0x19c] sm:$0xff]
    %v677 = vld [vmem:[#allocation3 + $0x1a4] sm:$0xff]
    %v678 = vld [vmem:[#allocation3 + $0x1ac] sm:$0xf]
    %v679 = vld [vmem:[#allocation3 + $0x1b0] sm:$0xff]
    %v680 = vld [vmem:[#allocation3 + $0x1b8] sm:$0xff]
    %v681 = vld [vmem:[#allocation3 + $0x1c0] sm:$0xff]
    %v682 = vld [vmem:[#allocation3 + $0x1c8] sm:$0xff]
    %v683 = vld [vmem:[#allocation3 + $0x1d0] sm:$0xf]
    %v684 = vld [vmem:[#allocation3 + $0x1d4] sm:$0xff]
    %v685 = vld [vmem:[#allocation3 + $0x1dc] sm:$0xff]
    %v686 = vld [vmem:[#allocation3 + $0x1e4] sm:$0xff]
    %v687 = vld [vmem:[#allocation3 + $0x1ec] sm:$0xff]
    %v688 = vld [vmem:[#allocation3 + $0x1f4] sm:$0xf]
    %v689 = vld [vmem:[#allocation3 + $0x1f8] sm:$0xff]
    %v690 = vld [vmem:[#allocation3 + $0x200] sm:$0xff]
    %v691 = vld [vmem:[#allocation3 + $0x208] sm:$0xff]
    %v692 = vld [vmem:[#allocation3 + $0x210] sm:$0xff]
    %v693 = vld [vmem:[#allocation3 + $0x218] sm:$0xf]
    %v694 = vld [vmem:[#allocation3 + $0x21c] sm:$0xff]
    %v695 = vld [vmem:[#allocation3 + $0x224] sm:$0xff]
    %v696 = vld [vmem:[#allocation3 + $0x22c] sm:$0xff]
    %v697 = vld [vmem:[#allocation3 + $0x234] sm:$0xff]
    %v698 = vld [vmem:[#allocation3 + $0x23c] sm:$0xf]
    %v699 = vld [vmem:[#allocation3 + $0x240] sm:$0xff]
    %v700 = vld [vmem:[#allocation3 + $0x248] sm:$0xff]
    %v701 = vld [vmem:[#allocation3 + $0x250] sm:$0xff]
    %v702 = vld [vmem:[#allocation3 + $0x258] sm:$0xff]
    %v703 = vld [vmem:[#allocation3 + $0x260] sm:$0xf]
    %v704 = vld [vmem:[#allocation3 + $0x264] sm:$0xff]
    %v705 = vld [vmem:[#allocation3 + $0x26c] sm:$0xff]
    %v706 = vld [vmem:[#allocation3 + $0x274] sm:$0xff]
    %v707 = vld [vmem:[#allocation3 + $0x27c] sm:$0xff]
    %v708 = vld [vmem:[#allocation3 + $0x284] sm:$0xf]
    %v709 = vld [vmem:[#allocation3 + $0x288] sm:$0xff]
    %v710 = vld [vmem:[#allocation3 + $0x290] sm:$0xff]
    %v711 = vld [vmem:[#allocation3 + $0x298] sm:$0xff]
    %v712 = vld [vmem:[#allocation3 + $0x2a0] sm:$0xff]
    %v713 = vld [vmem:[#allocation3 + $0x2a8] sm:$0xf]
    %v714 = vld [vmem:[#allocation3 + $0x2ac] sm:$0xff]
    %v715 = vld [vmem:[#allocation3 + $0x2b4] sm:$0xff]
    %v716 = vld [vmem:[#allocation3 + $0x2bc] sm:$0xff]
    %v717 = vld [vmem:[#allocation3 + $0x2c4] sm:$0xff]
    %v718 = vld [vmem:[#allocation3 + $0x2cc] sm:$0xf]
    %v719 = vld [vmem:[#allocation3 + $0x2d0] sm:$0xff]
    %v720 = vld [vmem:[#allocation3 + $0x2d8] sm:$0xff]
    %v721 = vld [vmem:[#allocation3 + $0x2e0] sm:$0xff]
    %v722 = vld [vmem:[#allocation3 + $0x2e8] sm:$0xff]
    %v723 = vld [vmem:[#allocation3 + $0x2f0] sm:$0xf]
    %v724 = vld [vmem:[#allocation3 + $0x2f4] sm:$0xff]
    %v725 = vld [vmem:[#allocation3 + $0x2fc] sm:$0xff]
    %v726 = vld [vmem:[#allocation3 + $0x304] sm:$0xff]
    %v727 = vld [vmem:[#allocation3 + $0x30c] sm:$0xff]
    %v728 = vld [vmem:[#allocation3 + $0x314] sm:$0xf]
    %v729 = vld [vmem:[#allocation3 + $0x318] sm:$0xff]
    %v730 = vld [vmem:[#allocation3 + $0x320] sm:$0xff]
    %v731 = vld [vmem:[#allocation3 + $0x328] sm:$0xff]
    %v732 = vld [vmem:[#allocation3 + $0x330] sm:$0xff]
    %v733 = vld [vmem:[#allocation3 + $0x338] sm:$0xf]
    %v734 = vld [vmem:[#allocation3 + $0x33c] sm:$0xff]
    %v735 = vld [vmem:[#allocation3 + $0x344] sm:$0xff]
    %v736 = vld [vmem:[#allocation3 + $0x34c] sm:$0xff]
    %v737 = vld [vmem:[#allocation3 + $0x354] sm:$0xff]
    %v738 = vld [vmem:[#allocation3 + $0x35c] sm:$0xf]
    %v739 = vld [vmem:[#allocation3 + $0x360] sm:$0xff]
    %v740 = vld [vmem:[#allocation3 + $0x368] sm:$0xff]
    %v741 = vld [vmem:[#allocation3 + $0x370] sm:$0xff]
    %v742 = vld [vmem:[#allocation3 + $0x378] sm:$0xff]
    %v743 = vld [vmem:[#allocation3 + $0x380] sm:$0xf]
    %v744 = vld [vmem:[#allocation3 + $0x384] sm:$0xff]
    %v745 = vld [vmem:[#allocation3 + $0x38c] sm:$0xff]
    %v746 = vld [vmem:[#allocation3 + $0x394] sm:$0xff]
    %v747 = vld [vmem:[#allocation3 + $0x39c] sm:$0xff]
    %v748 = vld [vmem:[#allocation3 + $0x3a4] sm:$0xf]
    %v749 = vld [vmem:[#allocation3 + $0x3a8] sm:$0xff]
    %v750 = vld [vmem:[#allocation3 + $0x3b0] sm:$0xff]
    %v751 = vld [vmem:[#allocation3 + $0x3b8] sm:$0xff]
    %v752 = vld [vmem:[#allocation3 + $0x3c0] sm:$0xff]
    %v753 = vld [vmem:[#allocation3 + $0x3c8] sm:$0xf]
    %v754 = vld [vmem:[#allocation3 + $0x3cc] sm:$0xff]
    %v755 = vld [vmem:[#allocation3 + $0x3d4] sm:$0xff]
    %v756 = vld [vmem:[#allocation3 + $0x3dc] sm:$0xff]
    %v757 = vld [vmem:[#allocation3 + $0x3e4] sm:$0xff]
    %v758 = vld [vmem:[#allocation3 + $0x3ec] sm:$0xf]
    %v759 = vld [vmem:[#allocation3 + $0x3f0] sm:$0xff]
    %v760 = vld [vmem:[#allocation3 + $0x3f8] sm:$0xff]
    %v761 = vld [vmem:[#allocation3 + $0x400] sm:$0xff]
    %v762 = vld [vmem:[#allocation3 + $0x408] sm:$0xff]
    %v763 = vld [vmem:[#allocation3 + $0x410] sm:$0xf]
    %v764 = vld [vmem:[#allocation3 + $0x414] sm:$0xff]
    %v765 = vld [vmem:[#allocation3 + $0x41c] sm:$0xff]
    %v766 = vld [vmem:[#allocation3 + $0x424] sm:$0xff]
    %v767 = vld [vmem:[#allocation3 + $0x42c] sm:$0xff]
    %v768 = vld [vmem:[#allocation3 + $0x434] sm:$0xf]
    %v769 = vld [vmem:[#allocation3 + $0x438] sm:$0xff]
    %v770 = vld [vmem:[#allocation3 + $0x440] sm:$0xff]
    %v771 = vld [vmem:[#allocation3 + $0x448] sm:$0xff]
    %v772 = vld [vmem:[#allocation3 + $0x450] sm:$0xff]
    %v773 = vld [vmem:[#allocation3 + $0x458] sm:$0xf]
    %v774 = vld [vmem:[#allocation3 + $0x45c] sm:$0xff]
    %v775 = vld [vmem:[#allocation3 + $0x464] sm:$0xff]
    %v776 = vld [vmem:[#allocation3 + $0x46c] sm:$0xff]
    %v777 = vld [vmem:[#allocation3 + $0x474] sm:$0xff]
    %v778 = vld [vmem:[#allocation3 + $0x47c] sm:$0xf]
    %v779 = vld [vmem:[#allocation3 + $0x480] sm:$0xff]
    %v780 = vld [vmem:[#allocation3 + $0x488] sm:$0xff]
    %v781 = vld [vmem:[#allocation3 + $0x490] sm:$0xff]
    %v782 = vld [vmem:[#allocation3 + $0x498] sm:$0xff]
    %v783 = vld [vmem:[#allocation3 + $0x4a0] sm:$0xf]
    %v784 = vld [vmem:[#allocation3 + $0x4a4] sm:$0xff]
    %v785 = vld [vmem:[#allocation3 + $0x4ac] sm:$0xff]
    %v786 = vld [vmem:[#allocation3 + $0x4b4] sm:$0xff]
    %v787 = vld [vmem:[#allocation3 + $0x4bc] sm:$0xff]
    %v788 = vld [vmem:[#allocation3 + $0x4c4] sm:$0xf]
    %v789 = vld [vmem:[#allocation3 + $0x4c8] sm:$0xff]
    %v790 = vld [vmem:[#allocation3 + $0x4d0] sm:$0xff]
    %v791 = vld [vmem:[#allocation3 + $0x4d8] sm:$0xff]
    %v792 = vld [vmem:[#allocation3 + $0x4e0] sm:$0xff]
    %v793 = vld [vmem:[#allocation3 + $0x4e8] sm:$0xf]
    %v794 = vld [vmem:[#allocation3 + $0x4ec] sm:$0xff]
    %v795 = vld [vmem:[#allocation3 + $0x4f4] sm:$0xff]
    %v796 = vld [vmem:[#allocation3 + $0x4fc] sm:$0xff]
    %v797 = vld [vmem:[#allocation3 + $0x504] sm:$0xff]
    %v798 = vld [vmem:[#allocation3 + $0x50c] sm:$0xf]
    %v799 = vld [vmem:[#allocation3 + $0x510] sm:$0xff]
    %v800 = vld [vmem:[#allocation3 + $0x518] sm:$0xff]
    %v801 = vld [vmem:[#allocation3 + $0x520] sm:$0xff]
    %v802 = vld [vmem:[#allocation3 + $0x528] sm:$0xff]
    %v803 = vld [vmem:[#allocation3 + $0x530] sm:$0xf]
    %v804 = vld [vmem:[#allocation3 + $0x534] sm:$0xff]
    %v805 = vld [vmem:[#allocation3 + $0x53c] sm:$0xff]
    %v806 = vld [vmem:[#allocation3 + $0x544] sm:$0xff]
    %v807 = vld [vmem:[#allocation3 + $0x54c] sm:$0xff]
    %v808 = vld [vmem:[#allocation3 + $0x554] sm:$0xf]
    %v809 = vld [vmem:[#allocation3 + $0x558] sm:$0xff]
    %v810 = vld [vmem:[#allocation3 + $0x560] sm:$0xff]
    %v811 = vld [vmem:[#allocation3 + $0x568] sm:$0xff]
    %v812 = vld [vmem:[#allocation3 + $0x570] sm:$0xff]
    %v813 = vld [vmem:[#allocation3 + $0x578] sm:$0xf]
    %v814 = vld [vmem:[#allocation3 + $0x57c] sm:$0xff]
    %v815 = vld [vmem:[#allocation3 + $0x584] sm:$0xff]
    %v816 = vld [vmem:[#allocation3 + $0x58c] sm:$0xff]
    %v817 = vld [vmem:[#allocation3 + $0x594] sm:$0xff]
    %v818 = vld [vmem:[#allocation3 + $0x59c] sm:$0xf]
    %v819 = vld [vmem:[#allocation3 + $0x5a0] sm:$0xff]
    %v820 = vld [vmem:[#allocation3 + $0x5a8] sm:$0xff]
    %v821 = vld [vmem:[#allocation3 + $0x5b0] sm:$0xff]
    %v822 = vld [vmem:[#allocation3 + $0x5b8] sm:$0xff]
    %v823 = vld [vmem:[#allocation3 + $0x5c0] sm:$0xf]
    %v824 = vld [vmem:[#allocation3 + $0x5c4] sm:$0xff]
    %v825 = vld [vmem:[#allocation3 + $0x5cc] sm:$0xff]
    %v826 = vld [vmem:[#allocation3 + $0x5d4] sm:$0xff]
    %v827 = vld [vmem:[#allocation3 + $0x5dc] sm:$0xff]
    %v828 = vld [vmem:[#allocation3 + $0x5e4] sm:$0xf]
    %v829 = vld [vmem:[#allocation3 + $0x5e8] sm:$0xff]
    %v830 = vld [vmem:[#allocation3 + $0x5f0] sm:$0xff]
    %v831 = vld [vmem:[#allocation3 + $0x5f8] sm:$0xff]
    %v832 = vld [vmem:[#allocation3 + $0x600] sm:$0xff]
    %v833 = vld [vmem:[#allocation3 + $0x608] sm:$0xf]
    %v834 = vld [vmem:[#allocation3 + $0x60c] sm:$0xff]
    %v835 = vld [vmem:[#allocation3 + $0x614] sm:$0xff]
    %v836 = vld [vmem:[#allocation3 + $0x61c] sm:$0xff]
    %v837 = vld [vmem:[#allocation3 + $0x624] sm:$0xff]
    %v838 = vld [vmem:[#allocation3 + $0x62c] sm:$0xf]
    %v839 = vld [vmem:[#allocation3 + $0x630] sm:$0xff]
    %v840 = vld [vmem:[#allocation3 + $0x638] sm:$0xff]
    %v841 = vld [vmem:[#allocation3 + $0x640] sm:$0xff]
    %v842 = vld [vmem:[#allocation3 + $0x648] sm:$0xff]
    %v843 = vld [vmem:[#allocation3 + $0x650] sm:$0xf]
    %v844 = vld [vmem:[#allocation3 + $0x654] sm:$0xff]
    %v845 = vld [vmem:[#allocation3 + $0x65c] sm:$0xff]
    %v846 = vld [vmem:[#allocation3 + $0x664] sm:$0xff]
    %v847 = vld [vmem:[#allocation3 + $0x66c] sm:$0xff]
    %v848 = vld [vmem:[#allocation3 + $0x674] sm:$0xf]
    %v849 = vld [vmem:[#allocation3 + $0x678] sm:$0xff]
    %v850 = vld [vmem:[#allocation3 + $0x680] sm:$0xff]
    %v851 = vld [vmem:[#allocation3 + $0x688] sm:$0xff]
    %v852 = vld [vmem:[#allocation3 + $0x690] sm:$0xff]
    %v853 = vld [vmem:[#allocation3 + $0x698] sm:$0xf]
    %v854 = vld [vmem:[#allocation3 + $0x69c] sm:$0xff]
    %v855 = vld [vmem:[#allocation3 + $0x6a4] sm:$0xff]
    %v856 = vld [vmem:[#allocation3 + $0x6ac] sm:$0xff]
    %v857 = vld [vmem:[#allocation3 + $0x6b4] sm:$0xff]
    %v858 = vld [vmem:[#allocation3 + $0x6bc] sm:$0xf]
    %v1099 = vunpack.c.l.b16 %v619
    %v1100 = vunpack.c.h.b16 %v619
    %v1101 = vunpack.c.l.b16 %v620
    %v1102 = vunpack.c.h.b16 %v620
    %v1103 = vunpack.c.l.b16 %v621
    %v1104 = vunpack.c.h.b16 %v621
    %v1105 = vunpack.c.l.b16 %v622
    %v1106 = vunpack.c.h.b16 %v622
    %v1107 = vunpack.c.l.b16 %v623
    %v1108 = vunpack.c.l.b16 %v624
    %v1109 = vunpack.c.h.b16 %v624
    %v1110 = vunpack.c.l.b16 %v625
    %v1111 = vunpack.c.h.b16 %v625
    %v1112 = vunpack.c.l.b16 %v626
    %v1113 = vunpack.c.h.b16 %v626
    %v1114 = vunpack.c.l.b16 %v627
    %v1115 = vunpack.c.h.b16 %v627
    %v1116 = vunpack.c.l.b16 %v628
    %v1117 = vunpack.c.l.b16 %v629
    %v1118 = vunpack.c.h.b16 %v629
    %v1119 = vunpack.c.l.b16 %v630
    %v1120 = vunpack.c.h.b16 %v630
    %v1121 = vunpack.c.l.b16 %v631
    %v1122 = vunpack.c.h.b16 %v631
    %v1123 = vunpack.c.l.b16 %v632
    %v1124 = vunpack.c.h.b16 %v632
    %v1125 = vunpack.c.l.b16 %v633
    %v1126 = vunpack.c.l.b16 %v634
    %v1127 = vunpack.c.h.b16 %v634
    %v1128 = vunpack.c.l.b16 %v635
    %v1129 = vunpack.c.h.b16 %v635
    %v1130 = vunpack.c.l.b16 %v636
    %v1131 = vunpack.c.h.b16 %v636
    %v1132 = vunpack.c.l.b16 %v637
    %v1133 = vunpack.c.h.b16 %v637
    %v1134 = vunpack.c.l.b16 %v638
    %v1135 = vunpack.c.l.b16 %v639
    %v1136 = vunpack.c.h.b16 %v639
    %v1137 = vunpack.c.l.b16 %v640
    %v1138 = vunpack.c.h.b16 %v640
    %v1139 = vunpack.c.l.b16 %v641
    %v1140 = vunpack.c.h.b16 %v641
    %v1141 = vunpack.c.l.b16 %v642
    %v1142 = vunpack.c.h.b16 %v642
    %v1143 = vunpack.c.l.b16 %v643
    %v1144 = vunpack.c.l.b16 %v644
    %v1145 = vunpack.c.h.b16 %v644
    %v1146 = vunpack.c.l.b16 %v645
    %v1147 = vunpack.c.h.b16 %v645
    %v1148 = vunpack.c.l.b16 %v646
    %v1149 = vunpack.c.h.b16 %v646
    %v1150 = vunpack.c.l.b16 %v647
    %v1151 = vunpack.c.h.b16 %v647
    %v1152 = vunpack.c.l.b16 %v648
    %v1153 = vunpack.c.l.b16 %v649
    %v1154 = vunpack.c.h.b16 %v649
    %v1155 = vunpack.c.l.b16 %v650
    %v1156 = vunpack.c.h.b16 %v650
    %v1157 = vunpack.c.l.b16 %v651
    %v1158 = vunpack.c.h.b16 %v651
    %v1159 = vunpack.c.l.b16 %v652
    %v1160 = vunpack.c.h.b16 %v652
    %v1161 = vunpack.c.l.b16 %v653
    %v1162 = vunpack.c.l.b16 %v654
    %v1163 = vunpack.c.h.b16 %v654
    %v1164 = vunpack.c.l.b16 %v655
    %v1165 = vunpack.c.h.b16 %v655
    %v1166 = vunpack.c.l.b16 %v656
    %v1167 = vunpack.c.h.b16 %v656
    %v1168 = vunpack.c.l.b16 %v657
    %v1169 = vunpack.c.h.b16 %v657
    %v1170 = vunpack.c.l.b16 %v658
    %v1171 = vunpack.c.l.b16 %v659
    %v1172 = vunpack.c.h.b16 %v659
    %v1173 = vunpack.c.l.b16 %v660
    %v1174 = vunpack.c.h.b16 %v660
    %v1175 = vunpack.c.l.b16 %v661
    %v1176 = vunpack.c.h.b16 %v661
    %v1177 = vunpack.c.l.b16 %v662
    %v1178 = vunpack.c.h.b16 %v662
    %v1179 = vunpack.c.l.b16 %v663
    %v1180 = vunpack.c.l.b16 %v664
    %v1181 = vunpack.c.h.b16 %v664
    %v1182 = vunpack.c.l.b16 %v665
    %v1183 = vunpack.c.h.b16 %v665
    %v1184 = vunpack.c.l.b16 %v666
    %v1185 = vunpack.c.h.b16 %v666
    %v1186 = vunpack.c.l.b16 %v667
    %v1187 = vunpack.c.h.b16 %v667
    %v1188 = vunpack.c.l.b16 %v668
    %v1189 = vunpack.c.l.b16 %v669
    %v1190 = vunpack.c.h.b16 %v669
    %v1191 = vunpack.c.l.b16 %v670
    %v1192 = vunpack.c.h.b16 %v670
    %v1193 = vunpack.c.l.b16 %v671
    %v1194 = vunpack.c.h.b16 %v671
    %v1195 = vunpack.c.l.b16 %v672
    %v1196 = vunpack.c.h.b16 %v672
    %v1197 = vunpack.c.l.b16 %v673
    %v1198 = vunpack.c.l.b16 %v674
    %v1199 = vunpack.c.h.b16 %v674
    %v1200 = vunpack.c.l.b16 %v675
    %v1201 = vunpack.c.h.b16 %v675
    %v1202 = vunpack.c.l.b16 %v676
    %v1203 = vunpack.c.h.b16 %v676
    %v1204 = vunpack.c.l.b16 %v677
    %v1205 = vunpack.c.h.b16 %v677
    %v1206 = vunpack.c.l.b16 %v678
    %v1207 = vunpack.c.l.b16 %v679
    %v1208 = vunpack.c.h.b16 %v679
    %v1209 = vunpack.c.l.b16 %v680
    %v1210 = vunpack.c.h.b16 %v680
    %v1211 = vunpack.c.l.b16 %v681
    %v1212 = vunpack.c.h.b16 %v681
    %v1213 = vunpack.c.l.b16 %v682
    %v1214 = vunpack.c.h.b16 %v682
    %v1215 = vunpack.c.l.b16 %v683
    %v1216 = vunpack.c.l.b16 %v684
    %v1217 = vunpack.c.h.b16 %v684
    %v1218 = vunpack.c.l.b16 %v685
    %v1219 = vunpack.c.h.b16 %v685
    %v1220 = vunpack.c.l.b16 %v686
    %v1221 = vunpack.c.h.b16 %v686
    %v1222 = vunpack.c.l.b16 %v687
    %v1223 = vunpack.c.h.b16 %v687
    %v1224 = vunpack.c.l.b16 %v688
    %v1225 = vunpack.c.l.b16 %v689
    %v1226 = vunpack.c.h.b16 %v689
    %v1227 = vunpack.c.l.b16 %v690
    %v1228 = vunpack.c.h.b16 %v690
    %v1229 = vunpack.c.l.b16 %v691
    %v1230 = vunpack.c.h.b16 %v691
    %v1231 = vunpack.c.l.b16 %v692
    %v1232 = vunpack.c.h.b16 %v692
    %v1233 = vunpack.c.l.b16 %v693
    %v1234 = vunpack.c.l.b16 %v694
    %v1235 = vunpack.c.h.b16 %v694
    %v1236 = vunpack.c.l.b16 %v695
    %v1237 = vunpack.c.h.b16 %v695
    %v1238 = vunpack.c.l.b16 %v696
    %v1239 = vunpack.c.h.b16 %v696
    %v1240 = vunpack.c.l.b16 %v697
    %v1241 = vunpack.c.h.b16 %v697
    %v1242 = vunpack.c.l.b16 %v698
    %v1243 = vunpack.c.l.b16 %v699
    %v1244 = vunpack.c.h.b16 %v699
    %v1245 = vunpack.c.l.b16 %v700
    %v1246 = vunpack.c.h.b16 %v700
    %v1247 = vunpack.c.l.b16 %v701
    %v1248 = vunpack.c.h.b16 %v701
    %v1249 = vunpack.c.l.b16 %v702
    %v1250 = vunpack.c.h.b16 %v702
    %v1251 = vunpack.c.l.b16 %v703
    %v1252 = vunpack.c.l.b16 %v704
    %v1253 = vunpack.c.h.b16 %v704
    %v1254 = vunpack.c.l.b16 %v705
    %v1255 = vunpack.c.h.b16 %v705
    %v1256 = vunpack.c.l.b16 %v706
    %v1257 = vunpack.c.h.b16 %v706
    %v1258 = vunpack.c.l.b16 %v707
    %v1259 = vunpack.c.h.b16 %v707
    %v1260 = vunpack.c.l.b16 %v708
    %v1261 = vunpack.c.l.b16 %v709
    %v1262 = vunpack.c.h.b16 %v709
    %v1263 = vunpack.c.l.b16 %v710
    %v1264 = vunpack.c.h.b16 %v710
    %v1265 = vunpack.c.l.b16 %v711
    %v1266 = vunpack.c.h.b16 %v711
    %v1267 = vunpack.c.l.b16 %v712
    %v1268 = vunpack.c.h.b16 %v712
    %v1269 = vunpack.c.l.b16 %v713
    %v1270 = vunpack.c.l.b16 %v714
    %v1271 = vunpack.c.h.b16 %v714
    %v1272 = vunpack.c.l.b16 %v715
    %v1273 = vunpack.c.h.b16 %v715
    %v1274 = vunpack.c.l.b16 %v716
    %v1275 = vunpack.c.h.b16 %v716
    %v1276 = vunpack.c.l.b16 %v717
    %v1277 = vunpack.c.h.b16 %v717
    %v1278 = vunpack.c.l.b16 %v718
    %v1279 = vunpack.c.l.b16 %v719
    %v1280 = vunpack.c.h.b16 %v719
    %v1281 = vunpack.c.l.b16 %v720
    %v1282 = vunpack.c.h.b16 %v720
    %v1283 = vunpack.c.l.b16 %v721
    %v1284 = vunpack.c.h.b16 %v721
    %v1285 = vunpack.c.l.b16 %v722
    %v1286 = vunpack.c.h.b16 %v722
    %v1287 = vunpack.c.l.b16 %v723
    %v1288 = vunpack.c.l.b16 %v724
    %v1289 = vunpack.c.h.b16 %v724
    %v1290 = vunpack.c.l.b16 %v725
    %v1291 = vunpack.c.h.b16 %v725
    %v1292 = vunpack.c.l.b16 %v726
    %v1293 = vunpack.c.h.b16 %v726
    %v1294 = vunpack.c.l.b16 %v727
    %v1295 = vunpack.c.h.b16 %v727
    %v1296 = vunpack.c.l.b16 %v728
    %v1297 = vunpack.c.l.b16 %v729
    %v1298 = vunpack.c.h.b16 %v729
    %v1299 = vunpack.c.l.b16 %v730
    %v1300 = vunpack.c.h.b16 %v730
    %v1301 = vunpack.c.l.b16 %v731
    %v1302 = vunpack.c.h.b16 %v731
    %v1303 = vunpack.c.l.b16 %v732
    %v1304 = vunpack.c.h.b16 %v732
    %v1305 = vunpack.c.l.b16 %v733
    %v1306 = vunpack.c.l.b16 %v734
    %v1307 = vunpack.c.h.b16 %v734
    %v1308 = vunpack.c.l.b16 %v735
    %v1309 = vunpack.c.h.b16 %v735
    %v1310 = vunpack.c.l.b16 %v736
    %v1311 = vunpack.c.h.b16 %v736
    %v1312 = vunpack.c.l.b16 %v737
    %v1313 = vunpack.c.h.b16 %v737
    %v1314 = vunpack.c.l.b16 %v738
    %v1315 = vunpack.c.l.b16 %v739
    %v1316 = vunpack.c.h.b16 %v739
    %v1317 = vunpack.c.l.b16 %v740
    %v1318 = vunpack.c.h.b16 %v740
    %v1319 = vunpack.c.l.b16 %v741
    %v1320 = vunpack.c.h.b16 %v741
    %v1321 = vunpack.c.l.b16 %v742
    %v1322 = vunpack.c.h.b16 %v742
    %v1323 = vunpack.c.l.b16 %v743
    %v1324 = vunpack.c.l.b16 %v744
    %v1325 = vunpack.c.h.b16 %v744
    %v1326 = vunpack.c.l.b16 %v745
    %v1327 = vunpack.c.h.b16 %v745
    %v1328 = vunpack.c.l.b16 %v746
    %v1329 = vunpack.c.h.b16 %v746
    %v1330 = vunpack.c.l.b16 %v747
    %v1331 = vunpack.c.h.b16 %v747
    %v1332 = vunpack.c.l.b16 %v748
    %v1333 = vunpack.c.l.b16 %v749
    %v1334 = vunpack.c.h.b16 %v749
    %v1335 = vunpack.c.l.b16 %v750
    %v1336 = vunpack.c.h.b16 %v750
    %v1337 = vunpack.c.l.b16 %v751
    %v1338 = vunpack.c.h.b16 %v751
    %v1339 = vunpack.c.l.b16 %v752
    %v1340 = vunpack.c.h.b16 %v752
    %v1341 = vunpack.c.l.b16 %v753
    %v1342 = vunpack.c.l.b16 %v754
    %v1343 = vunpack.c.h.b16 %v754
    %v1344 = vunpack.c.l.b16 %v755
    %v1345 = vunpack.c.h.b16 %v755
    %v1346 = vunpack.c.l.b16 %v756
    %v1347 = vunpack.c.h.b16 %v756
    %v1348 = vunpack.c.l.b16 %v757
    %v1349 = vunpack.c.h.b16 %v757
    %v1350 = vunpack.c.l.b16 %v758
    %v1351 = vunpack.c.l.b16 %v759
    %v1352 = vunpack.c.h.b16 %v759
    %v1353 = vunpack.c.l.b16 %v760
    %v1354 = vunpack.c.h.b16 %v760
    %v1355 = vunpack.c.l.b16 %v761
    %v1356 = vunpack.c.h.b16 %v761
    %v1357 = vunpack.c.l.b16 %v762
    %v1358 = vunpack.c.h.b16 %v762
    %v1359 = vunpack.c.l.b16 %v763
    %v1360 = vunpack.c.l.b16 %v764
    %v1361 = vunpack.c.h.b16 %v764
    %v1362 = vunpack.c.l.b16 %v765
    %v1363 = vunpack.c.h.b16 %v765
    %v1364 = vunpack.c.l.b16 %v766
    %v1365 = vunpack.c.h.b16 %v766
    %v1366 = vunpack.c.l.b16 %v767
    %v1367 = vunpack.c.h.b16 %v767
    %v1368 = vunpack.c.l.b16 %v768
    %v1369 = vunpack.c.l.b16 %v769
    %v1370 = vunpack.c.h.b16 %v769
    %v1371 = vunpack.c.l.b16 %v770
    %v1372 = vunpack.c.h.b16 %v770
    %v1373 = vunpack.c.l.b16 %v771
    %v1374 = vunpack.c.h.b16 %v771
    %v1375 = vunpack.c.l.b16 %v772
    %v1376 = vunpack.c.h.b16 %v772
    %v1377 = vunpack.c.l.b16 %v773
    %v1378 = vunpack.c.l.b16 %v774
    %v1379 = vunpack.c.h.b16 %v774
    %v1380 = vunpack.c.l.b16 %v775
    %v1381 = vunpack.c.h.b16 %v775
    %v1382 = vunpack.c.l.b16 %v776
    %v1383 = vunpack.c.h.b16 %v776
    %v1384 = vunpack.c.l.b16 %v777
    %v1385 = vunpack.c.h.b16 %v777
    %v1386 = vunpack.c.l.b16 %v778
    %v1387 = vunpack.c.l.b16 %v779
    %v1388 = vunpack.c.h.b16 %v779
    %v1389 = vunpack.c.l.b16 %v780
    %v1390 = vunpack.c.h.b16 %v780
    %v1391 = vunpack.c.l.b16 %v781
    %v1392 = vunpack.c.h.b16 %v781
    %v1393 = vunpack.c.l.b16 %v782
    %v1394 = vunpack.c.h.b16 %v782
    %v1395 = vunpack.c.l.b16 %v783
    %v1396 = vunpack.c.l.b16 %v784
    %v1397 = vunpack.c.h.b16 %v784
    %v1398 = vunpack.c.l.b16 %v785
    %v1399 = vunpack.c.h.b16 %v785
    %v1400 = vunpack.c.l.b16 %v786
    %v1401 = vunpack.c.h.b16 %v786
    %v1402 = vunpack.c.l.b16 %v787
    %v1403 = vunpack.c.h.b16 %v787
    %v1404 = vunpack.c.l.b16 %v788
    %v1405 = vunpack.c.l.b16 %v789
    %v1406 = vunpack.c.h.b16 %v789
    %v1407 = vunpack.c.l.b16 %v790
    %v1408 = vunpack.c.h.b16 %v790
    %v1409 = vunpack.c.l.b16 %v791
    %v1410 = vunpack.c.h.b16 %v791
    %v1411 = vunpack.c.l.b16 %v792
    %v1412 = vunpack.c.h.b16 %v792
    %v1413 = vunpack.c.l.b16 %v793
    %v1414 = vunpack.c.l.b16 %v794
    %v1415 = vunpack.c.h.b16 %v794
    %v1416 = vunpack.c.l.b16 %v795
    %v1417 = vunpack.c.h.b16 %v795
    %v1418 = vunpack.c.l.b16 %v796
    %v1419 = vunpack.c.h.b16 %v796
    %v1420 = vunpack.c.l.b16 %v797
    %v1421 = vunpack.c.h.b16 %v797
    %v1422 = vunpack.c.l.b16 %v798
    %v1423 = vunpack.c.l.b16 %v799
    %v1424 = vunpack.c.h.b16 %v799
    %v1425 = vunpack.c.l.b16 %v800
    %v1426 = vunpack.c.h.b16 %v800
    %v1427 = vunpack.c.l.b16 %v801
    %v1428 = vunpack.c.h.b16 %v801
    %v1429 = vunpack.c.l.b16 %v802
    %v1430 = vunpack.c.h.b16 %v802
    %v1431 = vunpack.c.l.b16 %v803
    %v1432 = vunpack.c.l.b16 %v804
    %v1433 = vunpack.c.h.b16 %v804
    %v1434 = vunpack.c.l.b16 %v805
    %v1435 = vunpack.c.h.b16 %v805
    %v1436 = vunpack.c.l.b16 %v806
    %v1437 = vunpack.c.h.b16 %v806
    %v1438 = vunpack.c.l.b16 %v807
    %v1439 = vunpack.c.h.b16 %v807
    %v1440 = vunpack.c.l.b16 %v808
    %v1441 = vunpack.c.l.b16 %v809
    %v1442 = vunpack.c.h.b16 %v809
    %v1443 = vunpack.c.l.b16 %v810
    %v1444 = vunpack.c.h.b16 %v810
    %v1445 = vunpack.c.l.b16 %v811
    %v1446 = vunpack.c.h.b16 %v811
    %v1447 = vunpack.c.l.b16 %v812
    %v1448 = vunpack.c.h.b16 %v812
    %v1449 = vunpack.c.l.b16 %v813
    %v1450 = vunpack.c.l.b16 %v814
    %v1451 = vunpack.c.h.b16 %v814
    %v1452 = vunpack.c.l.b16 %v815
    %v1453 = vunpack.c.h.b16 %v815
    %v1454 = vunpack.c.l.b16 %v816
    %v1455 = vunpack.c.h.b16 %v816
    %v1456 = vunpack.c.l.b16 %v817
    %v1457 = vunpack.c.h.b16 %v817
    %v1458 = vunpack.c.l.b16 %v818
    %v1459 = vunpack.c.l.b16 %v819
    %v1460 = vunpack.c.h.b16 %v819
    %v1461 = vunpack.c.l.b16 %v820
    %v1462 = vunpack.c.h.b16 %v820
    %v1463 = vunpack.c.l.b16 %v821
    %v1464 = vunpack.c.h.b16 %v821
    %v1465 = vunpack.c.l.b16 %v822
    %v1466 = vunpack.c.h.b16 %v822
    %v1467 = vunpack.c.l.b16 %v823
    %v1468 = vunpack.c.l.b16 %v824
    %v1469 = vunpack.c.h.b16 %v824
    %v1470 = vunpack.c.l.b16 %v825
    %v1471 = vunpack.c.h.b16 %v825
    %v1472 = vunpack.c.l.b16 %v826
    %v1473 = vunpack.c.h.b16 %v826
    %v1474 = vunpack.c.l.b16 %v827
    %v1475 = vunpack.c.h.b16 %v827
    %v1476 = vunpack.c.l.b16 %v828
    %v1477 = vunpack.c.l.b16 %v829
    %v1478 = vunpack.c.h.b16 %v829
    %v1479 = vunpack.c.l.b16 %v830
    %v1480 = vunpack.c.h.b16 %v830
    %v1481 = vunpack.c.l.b16 %v831
    %v1482 = vunpack.c.h.b16 %v831
    %v1483 = vunpack.c.l.b16 %v832
    %v1484 = vunpack.c.h.b16 %v832
    %v1485 = vunpack.c.l.b16 %v833
    %v1486 = vunpack.c.l.b16 %v834
    %v1487 = vunpack.c.h.b16 %v834
    %v1488 = vunpack.c.l.b16 %v835
    %v1489 = vunpack.c.h.b16 %v835
    %v1490 = vunpack.c.l.b16 %v836
    %v1491 = vunpack.c.h.b16 %v836
    %v1492 = vunpack.c.l.b16 %v837
    %v1493 = vunpack.c.h.b16 %v837
    %v1494 = vunpack.c.l.b16 %v838
    %v1495 = vunpack.c.l.b16 %v839
    %v1496 = vunpack.c.h.b16 %v839
    %v1497 = vunpack.c.l.b16 %v840
    %v1498 = vunpack.c.h.b16 %v840
    %v1499 = vunpack.c.l.b16 %v841
    %v1500 = vunpack.c.h.b16 %v841
    %v1501 = vunpack.c.l.b16 %v842
    %v1502 = vunpack.c.h.b16 %v842
    %v1503 = vunpack.c.l.b16 %v843
    %v1504 = vunpack.c.l.b16 %v844
    %v1505 = vunpack.c.h.b16 %v844
    %v1506 = vunpack.c.l.b16 %v845
    %v1507 = vunpack.c.h.b16 %v845
    %v1508 = vunpack.c.l.b16 %v846
    %v1509 = vunpack.c.h.b16 %v846
    %v1510 = vunpack.c.l.b16 %v847
    %v1511 = vunpack.c.h.b16 %v847
    %v1512 = vunpack.c.l.b16 %v848
    %v1513 = vunpack.c.l.b16 %v849
    %v1514 = vunpack.c.h.b16 %v849
    %v1515 = vunpack.c.l.b16 %v850
    %v1516 = vunpack.c.h.b16 %v850
    %v1517 = vunpack.c.l.b16 %v851
    %v1518 = vunpack.c.h.b16 %v851
    %v1519 = vunpack.c.l.b16 %v852
    %v1520 = vunpack.c.h.b16 %v852
    %v1521 = vunpack.c.l.b16 %v853
    %v1522 = vunpack.c.l.b16 %v854
    %v1523 = vunpack.c.h.b16 %v854
    %v1524 = vunpack.c.l.b16 %v855
    %v1525 = vunpack.c.h.b16 %v855
    %v1526 = vunpack.c.l.b16 %v856
    %v1527 = vunpack.c.h.b16 %v856
    %v1528 = vunpack.c.l.b16 %v857
    %v1529 = vunpack.c.h.b16 %v857
    %v1530 = vunpack.c.l.b16 %v858
    %v1531 = vpack.c.b16 %v1108, %v1099
    %v1532 = vpack.c.b16 %v1109, %v1100
    %v1533 = vpack.c.b16 %v1110, %v1101
    %v1534 = vpack.c.b16 %v1111, %v1102
    %v1535 = vpack.c.b16 %v1112, %v1103
    %v1536 = vpack.c.b16 %v1113, %v1104
    %v1537 = vpack.c.b16 %v1114, %v1105
    %v1538 = vpack.c.b16 %v1115, %v1106
    %v1539 = vpack.c.b16 %v1116, %v1107
    %v1540 = vpack.c.b16 %v1126, %v1117
    %v1541 = vpack.c.b16 %v1127, %v1118
    %v1542 = vpack.c.b16 %v1128, %v1119
    %v1543 = vpack.c.b16 %v1129, %v1120
    %v1544 = vpack.c.b16 %v1130, %v1121
    %v1545 = vpack.c.b16 %v1131, %v1122
    %v1546 = vpack.c.b16 %v1132, %v1123
    %v1547 = vpack.c.b16 %v1133, %v1124
    %v1548 = vpack.c.b16 %v1134, %v1125
    %v1549 = vpack.c.b16 %v1144, %v1135
    %v1550 = vpack.c.b16 %v1145, %v1136
    %v1551 = vpack.c.b16 %v1146, %v1137
    %v1552 = vpack.c.b16 %v1147, %v1138
    %v1553 = vpack.c.b16 %v1148, %v1139
    %v1554 = vpack.c.b16 %v1149, %v1140
    %v1555 = vpack.c.b16 %v1150, %v1141
    %v1556 = vpack.c.b16 %v1151, %v1142
    %v1557 = vpack.c.b16 %v1152, %v1143
    %v1558 = vpack.c.b16 %v1162, %v1153
    %v1559 = vpack.c.b16 %v1163, %v1154
    %v1560 = vpack.c.b16 %v1164, %v1155
    %v1561 = vpack.c.b16 %v1165, %v1156
    %v1562 = vpack.c.b16 %v1166, %v1157
    %v1563 = vpack.c.b16 %v1167, %v1158
    %v1564 = vpack.c.b16 %v1168, %v1159
    %v1565 = vpack.c.b16 %v1169, %v1160
    %v1566 = vpack.c.b16 %v1170, %v1161
    %v1567 = vpack.c.b16 %v1180, %v1171
    %v1568 = vpack.c.b16 %v1181, %v1172
    %v1569 = vpack.c.b16 %v1182, %v1173
    %v1570 = vpack.c.b16 %v1183, %v1174
    %v1571 = vpack.c.b16 %v1184, %v1175
    %v1572 = vpack.c.b16 %v1185, %v1176
    %v1573 = vpack.c.b16 %v1186, %v1177
    %v1574 = vpack.c.b16 %v1187, %v1178
    %v1575 = vpack.c.b16 %v1188, %v1179
    %v1576 = vpack.c.b16 %v1198, %v1189
    %v1577 = vpack.c.b16 %v1199, %v1190
    %v1578 = vpack.c.b16 %v1200, %v1191
    %v1579 = vpack.c.b16 %v1201, %v1192
    %v1580 = vpack.c.b16 %v1202, %v1193
    %v1581 = vpack.c.b16 %v1203, %v1194
    %v1582 = vpack.c.b16 %v1204, %v1195
    %v1583 = vpack.c.b16 %v1205, %v1196
    %v1584 = vpack.c.b16 %v1206, %v1197
    %v1585 = vpack.c.b16 %v1216, %v1207
    %v1586 = vpack.c.b16 %v1217, %v1208
    %v1587 = vpack.c.b16 %v1218, %v1209
    %v1588 = vpack.c.b16 %v1219, %v1210
    %v1589 = vpack.c.b16 %v1220, %v1211
    %v1590 = vpack.c.b16 %v1221, %v1212
    %v1591 = vpack.c.b16 %v1222, %v1213
    %v1592 = vpack.c.b16 %v1223, %v1214
    %v1593 = vpack.c.b16 %v1224, %v1215
    %v1594 = vpack.c.b16 %v1234, %v1225
    %v1595 = vpack.c.b16 %v1235, %v1226
    %v1596 = vpack.c.b16 %v1236, %v1227
    %v1597 = vpack.c.b16 %v1237, %v1228
    %v1598 = vpack.c.b16 %v1238, %v1229
    %v1599 = vpack.c.b16 %v1239, %v1230
    %v1600 = vpack.c.b16 %v1240, %v1231
    %v1601 = vpack.c.b16 %v1241, %v1232
    %v1602 = vpack.c.b16 %v1242, %v1233
    %v1603 = vpack.c.b16 %v1252, %v1243
    %v1604 = vpack.c.b16 %v1253, %v1244
    %v1605 = vpack.c.b16 %v1254, %v1245
    %v1606 = vpack.c.b16 %v1255, %v1246
    %v1607 = vpack.c.b16 %v1256, %v1247
    %v1608 = vpack.c.b16 %v1257, %v1248
    %v1609 = vpack.c.b16 %v1258, %v1249
    %v1610 = vpack.c.b16 %v1259, %v1250
    %v1611 = vpack.c.b16 %v1260, %v1251
    %v1612 = vpack.c.b16 %v1270, %v1261
    %v1613 = vpack.c.b16 %v1271, %v1262
    %v1614 = vpack.c.b16 %v1272, %v1263
    %v1615 = vpack.c.b16 %v1273, %v1264
    %v1616 = vpack.c.b16 %v1274, %v1265
    %v1617 = vpack.c.b16 %v1275, %v1266
    %v1618 = vpack.c.b16 %v1276, %v1267
    %v1619 = vpack.c.b16 %v1277, %v1268
    %v1620 = vpack.c.b16 %v1278, %v1269
    %v1621 = vpack.c.b16 %v1288, %v1279
    %v1622 = vpack.c.b16 %v1289, %v1280
    %v1623 = vpack.c.b16 %v1290, %v1281
    %v1624 = vpack.c.b16 %v1291, %v1282
    %v1625 = vpack.c.b16 %v1292, %v1283
    %v1626 = vpack.c.b16 %v1293, %v1284
    %v1627 = vpack.c.b16 %v1294, %v1285
    %v1628 = vpack.c.b16 %v1295, %v1286
    %v1629 = vpack.c.b16 %v1296, %v1287
    %v1630 = vpack.c.b16 %v1306, %v1297
    %v1631 = vpack.c.b16 %v1307, %v1298
    %v1632 = vpack.c.b16 %v1308, %v1299
    %v1633 = vpack.c.b16 %v1309, %v1300
    %v1634 = vpack.c.b16 %v1310, %v1301
    %v1635 = vpack.c.b16 %v1311, %v1302
    %v1636 = vpack.c.b16 %v1312, %v1303
    %v1637 = vpack.c.b16 %v1313, %v1304
    %v1638 = vpack.c.b16 %v1314, %v1305
    %v1639 = vpack.c.b16 %v1324, %v1315
    %v1640 = vpack.c.b16 %v1325, %v1316
    %v1641 = vpack.c.b16 %v1326, %v1317
    %v1642 = vpack.c.b16 %v1327, %v1318
    %v1643 = vpack.c.b16 %v1328, %v1319
    %v1644 = vpack.c.b16 %v1329, %v1320
    %v1645 = vpack.c.b16 %v1330, %v1321
    %v1646 = vpack.c.b16 %v1331, %v1322
    %v1647 = vpack.c.b16 %v1332, %v1323
    %v1648 = vpack.c.b16 %v1342, %v1333
    %v1649 = vpack.c.b16 %v1343, %v1334
    %v1650 = vpack.c.b16 %v1344, %v1335
    %v1651 = vpack.c.b16 %v1345, %v1336
    %v1652 = vpack.c.b16 %v1346, %v1337
    %v1653 = vpack.c.b16 %v1347, %v1338
    %v1654 = vpack.c.b16 %v1348, %v1339
    %v1655 = vpack.c.b16 %v1349, %v1340
    %v1656 = vpack.c.b16 %v1350, %v1341
    %v1657 = vpack.c.b16 %v1360, %v1351
    %v1658 = vpack.c.b16 %v1361, %v1352
    %v1659 = vpack.c.b16 %v1362, %v1353
    %v1660 = vpack.c.b16 %v1363, %v1354
    %v1661 = vpack.c.b16 %v1364, %v1355
    %v1662 = vpack.c.b16 %v1365, %v1356
    %v1663 = vpack.c.b16 %v1366, %v1357
    %v1664 = vpack.c.b16 %v1367, %v1358
    %v1665 = vpack.c.b16 %v1368, %v1359
    %v1666 = vpack.c.b16 %v1378, %v1369
    %v1667 = vpack.c.b16 %v1379, %v1370
    %v1668 = vpack.c.b16 %v1380, %v1371
    %v1669 = vpack.c.b16 %v1381, %v1372
    %v1670 = vpack.c.b16 %v1382, %v1373
    %v1671 = vpack.c.b16 %v1383, %v1374
    %v1672 = vpack.c.b16 %v1384, %v1375
    %v1673 = vpack.c.b16 %v1385, %v1376
    %v1674 = vpack.c.b16 %v1386, %v1377
    %v1675 = vpack.c.b16 %v1396, %v1387
    %v1676 = vpack.c.b16 %v1397, %v1388
    %v1677 = vpack.c.b16 %v1398, %v1389
    %v1678 = vpack.c.b16 %v1399, %v1390
    %v1679 = vpack.c.b16 %v1400, %v1391
    %v1680 = vpack.c.b16 %v1401, %v1392
    %v1681 = vpack.c.b16 %v1402, %v1393
    %v1682 = vpack.c.b16 %v1403, %v1394
    %v1683 = vpack.c.b16 %v1404, %v1395
    %v1684 = vpack.c.b16 %v1414, %v1405
    %v1685 = vpack.c.b16 %v1415, %v1406
    %v1686 = vpack.c.b16 %v1416, %v1407
    %v1687 = vpack.c.b16 %v1417, %v1408
    %v1688 = vpack.c.b16 %v1418, %v1409
    %v1689 = vpack.c.b16 %v1419, %v1410
    %v1690 = vpack.c.b16 %v1420, %v1411
    %v1691 = vpack.c.b16 %v1421, %v1412
    %v1692 = vpack.c.b16 %v1422, %v1413
    %v1693 = vpack.c.b16 %v1432, %v1423
    %v1694 = vpack.c.b16 %v1433, %v1424
    %v1695 = vpack.c.b16 %v1434, %v1425
    %v1696 = vpack.c.b16 %v1435, %v1426
    %v1697 = vpack.c.b16 %v1436, %v1427
    %v1698 = vpack.c.b16 %v1437, %v1428
    %v1699 = vpack.c.b16 %v1438, %v1429
    %v1700 = vpack.c.b16 %v1439, %v1430
    %v1701 = vpack.c.b16 %v1440, %v1431
    %v1702 = vpack.c.b16 %v1450, %v1441
    %v1703 = vpack.c.b16 %v1451, %v1442
    %v1704 = vpack.c.b16 %v1452, %v1443
    %v1705 = vpack.c.b16 %v1453, %v1444
    %v1706 = vpack.c.b16 %v1454, %v1445
    %v1707 = vpack.c.b16 %v1455, %v1446
    %v1708 = vpack.c.b16 %v1456, %v1447
    %v1709 = vpack.c.b16 %v1457, %v1448
    %v1710 = vpack.c.b16 %v1458, %v1449
    %v1711 = vpack.c.b16 %v1468, %v1459
    %v1712 = vpack.c.b16 %v1469, %v1460
    %v1713 = vpack.c.b16 %v1470, %v1461
    %v1714 = vpack.c.b16 %v1471, %v1462
    %v1715 = vpack.c.b16 %v1472, %v1463
    %v1716 = vpack.c.b16 %v1473, %v1464
    %v1717 = vpack.c.b16 %v1474, %v1465
    %v1718 = vpack.c.b16 %v1475, %v1466
    %v1719 = vpack.c.b16 %v1476, %v1467
    %v1720 = vpack.c.b16 %v1486, %v1477
    %v1721 = vpack.c.b16 %v1487, %v1478
    %v1722 = vpack.c.b16 %v1488, %v1479
    %v1723 = vpack.c.b16 %v1489, %v1480
    %v1724 = vpack.c.b16 %v1490, %v1481
    %v1725 = vpack.c.b16 %v1491, %v1482
    %v1726 = vpack.c.b16 %v1492, %v1483
    %v1727 = vpack.c.b16 %v1493, %v1484
    %v1728 = vpack.c.b16 %v1494, %v1485
    %v1729 = vpack.c.b16 %v1504, %v1495
    %v1730 = vpack.c.b16 %v1505, %v1496
    %v1731 = vpack.c.b16 %v1506, %v1497
    %v1732 = vpack.c.b16 %v1507, %v1498
    %v1733 = vpack.c.b16 %v1508, %v1499
    %v1734 = vpack.c.b16 %v1509, %v1500
    %v1735 = vpack.c.b16 %v1510, %v1501
    %v1736 = vpack.c.b16 %v1511, %v1502
    %v1737 = vpack.c.b16 %v1512, %v1503
    %v1738 = vpack.c.b16 %v1522, %v1513
    %v1739 = vpack.c.b16 %v1523, %v1514
    %v1740 = vpack.c.b16 %v1524, %v1515
    %v1741 = vpack.c.b16 %v1525, %v1516
    %v1742 = vpack.c.b16 %v1526, %v1517
    %v1743 = vpack.c.b16 %v1527, %v1518
    %v1744 = vpack.c.b16 %v1528, %v1519
    %v1745 = vpack.c.b16 %v1529, %v1520
    %v1746 = vpack.c.b16 %v1530, %v1521
    %1963 = vmatprep.subr.bf16.mxu0 %v1595
    %1964 = vmatpush1.bf16.msra.mxu0 %v1594
    %1965 = vmatprep.subr.bf16.mxu0 %v1586
    %1966 = vmatpush1.bf16.msra.mxu0 %v1585
    %1967 = vmatprep.subr.bf16.mxu0 %v1577
    %1968 = vmatpush1.bf16.msra.mxu0 %v1576
    %1969 = vmatprep.subr.bf16.mxu0 %v1568
    %1970 = vmatpush1.bf16.msra.mxu0 %v1567
    %1971 = vmatprep.subr.bf16.mxu0 %v1559
    %1972 = vmatpush1.bf16.msra.mxu0 %v1558
    %1973 = vmatprep.subr.bf16.mxu0 %v1550
    %1974 = vmatpush1.bf16.msra.mxu0 %v1549
    %1975 = vmatprep.subr.bf16.mxu0 %v1541
    %1976 = vmatpush1.bf16.msra.mxu0 %v1540
    %1977 = vmatprep.subr.bf16.mxu0 %v1532
    %1978 = vmatpush1.bf16.msra.mxu0 %v1531
    %1979 = vmatprep.subr.bf16.mxu0 %v1667
    %1980 = vmatpush2.bf16.msra.mxu0 %v1666
    %1981 = vmatprep.subr.bf16.mxu0 %v1658
    %1982 = vmatpush2.bf16.msra.mxu0 %v1657
    %1983 = vmatprep.subr.bf16.mxu0 %v1649
    %1984 = vmatpush2.bf16.msra.mxu0 %v1648
    %1985 = vmatprep.subr.bf16.mxu0 %v1640
    %1986 = vmatpush2.bf16.msra.mxu0 %v1639
    %1987 = vmatprep.subr.bf16.mxu0 %v1631
    %1988 = vmatpush2.bf16.msra.mxu0 %v1630
    %1989 = vmatprep.subr.bf16.mxu0 %v1622
    %1990 = vmatpush2.bf16.msra.mxu0 %v1621
    %1991 = vmatprep.subr.bf16.mxu0 %v1613
    %1992 = vmatpush2.bf16.msra.mxu0 %v1612
    %1993 = vmatprep.subr.bf16.mxu0 %v1604
    %1994 = vmatpush2.bf16.msra.mxu0 %v1603
    %1995 = vmatprep.mubr.bf16.mxu0 %v617
    %1996 = vmatmul.mubr.bf16.gmra.mxu0 %v616
    %v1997 = vpop.f32.mrf.mxu0
    %v1998 = vadd.f32 0.0, %v1997
    %v1999 = vpop.f32.mrf.mxu0
    %v2000 = vadd.f32 0.0, %v1999
    %v2001 = vpop.f32.mrf.mxu0
    %v2002 = vadd.f32 0.0, %v2001
    %v2003 = vpop.f32.mrf.mxu0
    %v2004 = vadd.f32 0.0, %v2003
    %2005 = vdwg.mxu0
    %2006 = vmatprep.subr.bf16.mxu0 %v1739
    %2007 = vmatpush1.bf16.msra.mxu0 %v1738
    %2008 = vmatprep.subr.bf16.mxu0 %v1730
    %2009 = vmatpush1.bf16.msra.mxu0 %v1729
    %2010 = vmatprep.subr.bf16.mxu0 %v1721
    %2011 = vmatpush1.bf16.msra.mxu0 %v1720
    %2012 = vmatprep.subr.bf16.mxu0 %v1712
    %2013 = vmatpush1.bf16.msra.mxu0 %v1711
    %2014 = vmatprep.subr.bf16.mxu0 %v1703
    %2015 = vmatpush1.bf16.msra.mxu0 %v1702
    %2016 = vmatprep.subr.bf16.mxu0 %v1694
    %2017 = vmatpush1.bf16.msra.mxu0 %v1693
    %2018 = vmatprep.subr.bf16.mxu0 %v1685
    %2019 = vmatpush1.bf16.msra.mxu0 %v1684
    %2020 = vmatprep.subr.bf16.mxu0 %v1676
    %2021 = vmatpush1.bf16.msra.mxu0 %v1675
    %2022 = vmatprep.subr.bf16.mxu0 0
    %2023 = vmatpush2.bf16.msra.mxu0 0
    %2024 = vmatprep.subr.bf16.mxu0 0
    %2025 = vmatpush2.bf16.msra.mxu0 0
    %2026 = vmatprep.subr.bf16.mxu0 0
    %2027 = vmatpush2.bf16.msra.mxu0 0
    %2028 = vmatprep.subr.bf16.mxu0 0
    %2029 = vmatpush2.bf16.msra.mxu0 0
    %2030 = vmatprep.subr.bf16.mxu0 0
    %2031 = vmatpush2.bf16.msra.mxu0 0
    %2032 = vmatprep.subr.bf16.mxu0 0
    %2033 = vmatpush2.bf16.msra.mxu0 0
    %2034 = vmatprep.subr.bf16.mxu0 0
    %2035 = vmatpush2.bf16.msra.mxu0 0
    %2036 = vmatprep.subr.bf16.mxu0 0
    %2037 = vmatpush2.bf16.msra.mxu0 0
    %2038 = vmatprep.mubr.bf16.mxu0 0
    %2039 = vmatmul.mubr.bf16.gmra.mxu0 %v618
    %v2040 = vpop.f32.mrf.mxu0
    %v2041 = vadd.f32 %v1998, %v2040
    %v2042 = vpop.f32.mrf.mxu0
    %v2043 = vadd.f32 %v2000, %v2042
    %v2044 = vpop.f32.mrf.mxu0
    %v2045 = vadd.f32 %v2002, %v2044
    %v2046 = vpop.f32.mrf.mxu0
    %v2047 = vadd.f32 %v2004, %v2046
    %2048 = vdwg.mxu0
    %2049 = vmatprep.subr.bf16.mxu0 %v1597
    %2050 = vmatpush1.bf16.msra.mxu0 %v1596
    %2051 = vmatprep.subr.bf16.mxu0 %v1588
    %2052 = vmatpush1.bf16.msra.mxu0 %v1587
    %2053 = vmatprep.subr.bf16.mxu0 %v1579
    %2054 = vmatpush1.bf16.msra.mxu0 %v1578
    %2055 = vmatprep.subr.bf16.mxu0 %v1570
    %2056 = vmatpush1.bf16.msra.mxu0 %v1569
    %2057 = vmatprep.subr.bf16.mxu0 %v1561
    %2058 = vmatpush1.bf16.msra.mxu0 %v1560
    %2059 = vmatprep.subr.bf16.mxu0 %v1552
    %2060 = vmatpush1.bf16.msra.mxu0 %v1551
    %2061 = vmatprep.subr.bf16.mxu0 %v1543
    %2062 = vmatpush1.bf16.msra.mxu0 %v1542
    %2063 = vmatprep.subr.bf16.mxu0 %v1534
    %2064 = vmatpush1.bf16.msra.mxu0 %v1533
    %2065 = vmatprep.subr.bf16.mxu0 %v1669
    %2066 = vmatpush2.bf16.msra.mxu0 %v1668
    %2067 = vmatprep.subr.bf16.mxu0 %v1660
    %2068 = vmatpush2.bf16.msra.mxu0 %v1659
    %2069 = vmatprep.subr.bf16.mxu0 %v1651
    %2070 = vmatpush2.bf16.msra.mxu0 %v1650
    %2071 = vmatprep.subr.bf16.mxu0 %v1642
    %2072 = vmatpush2.bf16.msra.mxu0 %v1641
    %2073 = vmatprep.subr.bf16.mxu0 %v1633
    %2074 = vmatpush2.bf16.msra.mxu0 %v1632
    %2075 = vmatprep.subr.bf16.mxu0 %v1624
    %2076 = vmatpush2.bf16.msra.mxu0 %v1623
    %2077 = vmatprep.subr.bf16.mxu0 %v1615
    %2078 = vmatpush2.bf16.msra.mxu0 %v1614
    %2079 = vmatprep.subr.bf16.mxu0 %v1606
    %2080 = vmatpush2.bf16.msra.mxu0 %v1605
    %2081 = vmatprep.mubr.bf16.mxu0 %v617
    %2082 = vmatmul.mubr.bf16.gmra.mxu0 %v616
    %v2083 = vpop.f32.mrf.mxu0
    %v2084 = vadd.f32 0.0, %v2083
    %v2085 = vpop.f32.mrf.mxu0
    %v2086 = vadd.f32 0.0, %v2085
    %v2087 = vpop.f32.mrf.mxu0
    %v2088 = vadd.f32 0.0, %v2087
    %v2089 = vpop.f32.mrf.mxu0
    %v2090 = vadd.f32 0.0, %v2089
    %2091 = vdwg.mxu0
    %2092 = vmatprep.subr.bf16.mxu0 %v1741
    %2093 = vmatpush1.bf16.msra.mxu0 %v1740
    %2094 = vmatprep.subr.bf16.mxu0 %v1732
    %2095 = vmatpush1.bf16.msra.mxu0 %v1731
    %2096 = vmatprep.subr.bf16.mxu0 %v1723
    %2097 = vmatpush1.bf16.msra.mxu0 %v1722
    %2098 = vmatprep.subr.bf16.mxu0 %v1714
    %2099 = vmatpush1.bf16.msra.mxu0 %v1713
    %2100 = vmatprep.subr.bf16.mxu0 %v1705
    %2101 = vmatpush1.bf16.msra.mxu0 %v1704
    %2102 = vmatprep.subr.bf16.mxu0 %v1696
    %2103 = vmatpush1.bf16.msra.mxu0 %v1695
    %2104 = vmatprep.subr.bf16.mxu0 %v1687
    %2105 = vmatpush1.bf16.msra.mxu0 %v1686
    %2106 = vmatprep.subr.bf16.mxu0 %v1678
    %2107 = vmatpush1.bf16.msra.mxu0 %v1677
    %2108 = vmatprep.subr.bf16.mxu0 0
    %2109 = vmatpush2.bf16.msra.mxu0 0
    %2110 = vmatprep.subr.bf16.mxu0 0
    %2111 = vmatpush2.bf16.msra.mxu0 0
    %2112 = vmatprep.subr.bf16.mxu0 0
    %2113 = vmatpush2.bf16.msra.mxu0 0
    %2114 = vmatprep.subr.bf16.mxu0 0
    %2115 = vmatpush2.bf16.msra.mxu0 0
    %2116 = vmatprep.subr.bf16.mxu0 0
    %2117 = vmatpush2.bf16.msra.mxu0 0
    %2118 = vmatprep.subr.bf16.mxu0 0
    %2119 = vmatpush2.bf16.msra.mxu0 0
    %2120 = vmatprep.subr.bf16.mxu0 0
    %2121 = vmatpush2.bf16.msra.mxu0 0
    %2122 = vmatprep.subr.bf16.mxu0 0
    %2123 = vmatpush2.bf16.msra.mxu0 0
    %2124 = vmatprep.mubr.bf16.mxu0 0
    %2125 = vmatmul.mubr.bf16.gmra.mxu0 %v618
    %v2126 = vpop.f32.mrf.mxu0
    %v2127 = vadd.f32 %v2084, %v2126
    %v2128 = vpop.f32.mrf.mxu0
    %v2129 = vadd.f32 %v2086, %v2128
    %v2130 = vpop.f32.mrf.mxu0
    %v2131 = vadd.f32 %v2088, %v2130
    %v2132 = vpop.f32.mrf.mxu0
    %v2133 = vadd.f32 %v2090, %v2132
    %2134 = vdwg.mxu0
    %2135 = vmatprep.subr.bf16.mxu0 %v1599
    %2136 = vmatpush1.bf16.msra.mxu0 %v1598
    %2137 = vmatprep.subr.bf16.mxu0 %v1590
    %2138 = vmatpush1.bf16.msra.mxu0 %v1589
    %2139 = vmatprep.subr.bf16.mxu0 %v1581
    %2140 = vmatpush1.bf16.msra.mxu0 %v1580
    %2141 = vmatprep.subr.bf16.mxu0 %v1572
    %2142 = vmatpush1.bf16.msra.mxu0 %v1571
    %2143 = vmatprep.subr.bf16.mxu0 %v1563
    %2144 = vmatpush1.bf16.msra.mxu0 %v1562
    %2145 = vmatprep.subr.bf16.mxu0 %v1554
    %2146 = vmatpush1.bf16.msra.mxu0 %v1553
    %2147 = vmatprep.subr.bf16.mxu0 %v1545
    %2148 = vmatpush1.bf16.msra.mxu0 %v1544
    %2149 = vmatprep.subr.bf16.mxu0 %v1536
    %2150 = vmatpush1.bf16.msra.mxu0 %v1535
    %2151 = vmatprep.subr.bf16.mxu0 %v1671
    %2152 = vmatpush2.bf16.msra.mxu0 %v1670
    %2153 = vmatprep.subr.bf16.mxu0 %v1662
    %2154 = vmatpush2.bf16.msra.mxu0 %v1661
    %2155 = vmatprep.subr.bf16.mxu0 %v1653
    %2156 = vmatpush2.bf16.msra.mxu0 %v1652
    %2157 = vmatprep.subr.bf16.mxu0 %v1644
    %2158 = vmatpush2.bf16.msra.mxu0 %v1643
    %2159 = vmatprep.subr.bf16.mxu0 %v1635
    %2160 = vmatpush2.bf16.msra.mxu0 %v1634
    %2161 = vmatprep.subr.bf16.mxu0 %v1626
    %2162 = vmatpush2.bf16.msra.mxu0 %v1625
    %2163 = vmatprep.subr.bf16.mxu0 %v1617
    %2164 = vmatpush2.bf16.msra.mxu0 %v1616
    %2165 = vmatprep.subr.bf16.mxu0 %v1608
    %2166 = vmatpush2.bf16.msra.mxu0 %v1607
    %2167 = vmatprep.mubr.bf16.mxu0 %v617
    %2168 = vmatmul.mubr.bf16.gmra.mxu0 %v616
    %v2169 = vpop.f32.mrf.mxu0
    %v2170 = vadd.f32 0.0, %v2169
    %v2171 = vpop.f32.mrf.mxu0
    %v2172 = vadd.f32 0.0, %v2171
    %v2173 = vpop.f32.mrf.mxu0
    %v2174 = vadd.f32 0.0, %v2173
    %v2175 = vpop.f32.mrf.mxu0
    %v2176 = vadd.f32 0.0, %v2175
    %2177 = vdwg.mxu0
    %2178 = vmatprep.subr.bf16.mxu0 %v1743
    %2179 = vmatpush1.bf16.msra.mxu0 %v1742
    %2180 = vmatprep.subr.bf16.mxu0 %v1734
    %2181 = vmatpush1.bf16.msra.mxu0 %v1733
    %2182 = vmatprep.subr.bf16.mxu0 %v1725
    %2183 = vmatpush1.bf16.msra.mxu0 %v1724
    %2184 = vmatprep.subr.bf16.mxu0 %v1716
    %2185 = vmatpush1.bf16.msra.mxu0 %v1715
    %2186 = vmatprep.subr.bf16.mxu0 %v1707
    %2187 = vmatpush1.bf16.msra.mxu0 %v1706
    %2188 = vmatprep.subr.bf16.mxu0 %v1698
    %2189 = vmatpush1.bf16.msra.mxu0 %v1697
    %2190 = vmatprep.subr.bf16.mxu0 %v1689
    %2191 = vmatpush1.bf16.msra.mxu0 %v1688
    %2192 = vmatprep.subr.bf16.mxu0 %v1680
    %2193 = vmatpush1.bf16.msra.mxu0 %v1679
    %2194 = vmatprep.subr.bf16.mxu0 0
    %2195 = vmatpush2.bf16.msra.mxu0 0
    %2196 = vmatprep.subr.bf16.mxu0 0
    %2197 = vmatpush2.bf16.msra.mxu0 0
    %2198 = vmatprep.subr.bf16.mxu0 0
    %2199 = vmatpush2.bf16.msra.mxu0 0
    %2200 = vmatprep.subr.bf16.mxu0 0
    %2201 = vmatpush2.bf16.msra.mxu0 0
    %2202 = vmatprep.subr.bf16.mxu0 0
    %2203 = vmatpush2.bf16.msra.mxu0 0
    %2204 = vmatprep.subr.bf16.mxu0 0
    %2205 = vmatpush2.bf16.msra.mxu0 0
    %2206 = vmatprep.subr.bf16.mxu0 0
    %2207 = vmatpush2.bf16.msra.mxu0 0
    %2208 = vmatprep.subr.bf16.mxu0 0
    %2209 = vmatpush2.bf16.msra.mxu0 0
    %2210 = vmatprep.mubr.bf16.mxu0 0
    %2211 = vmatmul.mubr.bf16.gmra.mxu0 %v618
    %v2212 = vpop.f32.mrf.mxu0
    %v2213 = vadd.f32 %v2170, %v2212
    %v2214 = vpop.f32.mrf.mxu0
    %v2215 = vadd.f32 %v2172, %v2214
    %v2216 = vpop.f32.mrf.mxu0
    %v2217 = vadd.f32 %v2174, %v2216
    %v2218 = vpop.f32.mrf.mxu0
    %v2219 = vadd.f32 %v2176, %v2218
    %2220 = vdwg.mxu0
    %2221 = vmatprep.subr.bf16.mxu0 %v1601
    %2222 = vmatpush1.bf16.msra.mxu0 %v1600
    %2223 = vmatprep.subr.bf16.mxu0 %v1592
    %2224 = vmatpush1.bf16.msra.mxu0 %v1591
    %2225 = vmatprep.subr.bf16.mxu0 %v1583
    %2226 = vmatpush1.bf16.msra.mxu0 %v1582
    %2227 = vmatprep.subr.bf16.mxu0 %v1574
    %2228 = vmatpush1.bf16.msra.mxu0 %v1573
    %2229 = vmatprep.subr.bf16.mxu0 %v1565
    %2230 = vmatpush1.bf16.msra.mxu0 %v1564
    %2231 = vmatprep.subr.bf16.mxu0 %v1556
    %2232 = vmatpush1.bf16.msra.mxu0 %v1555
    %2233 = vmatprep.subr.bf16.mxu0 %v1547
    %2234 = vmatpush1.bf16.msra.mxu0 %v1546
    %2235 = vmatprep.subr.bf16.mxu0 %v1538
    %2236 = vmatpush1.bf16.msra.mxu0 %v1537
    %2237 = vmatprep.subr.bf16.mxu0 %v1673
    %2238 = vmatpush2.bf16.msra.mxu0 %v1672
    %2239 = vmatprep.subr.bf16.mxu0 %v1664
    %2240 = vmatpush2.bf16.msra.mxu0 %v1663
    %2241 = vmatprep.subr.bf16.mxu0 %v1655
    %2242 = vmatpush2.bf16.msra.mxu0 %v1654
    %2243 = vmatprep.subr.bf16.mxu0 %v1646
    %2244 = vmatpush2.bf16.msra.mxu0 %v1645
    %2245 = vmatprep.subr.bf16.mxu0 %v1637
    %2246 = vmatpush2.bf16.msra.mxu0 %v1636
    %2247 = vmatprep.subr.bf16.mxu0 %v1628
    %2248 = vmatpush2.bf16.msra.mxu0 %v1627
    %2249 = vmatprep.subr.bf16.mxu0 %v1619
    %2250 = vmatpush2.bf16.msra.mxu0 %v1618
    %2251 = vmatprep.subr.bf16.mxu0 %v1610
    %2252 = vmatpush2.bf16.msra.mxu0 %v1609
    %2253 = vmatprep.mubr.bf16.mxu0 %v617
    %2254 = vmatmul.mubr.bf16.gmra.mxu0 %v616
    %v2255 = vpop.f32.mrf.mxu0
    %v2256 = vadd.f32 0.0, %v2255
    %v2257 = vpop.f32.mrf.mxu0
    %v2258 = vadd.f32 0.0, %v2257
    %v2259 = vpop.f32.mrf.mxu0
    %v2260 = vadd.f32 0.0, %v2259
    %v2261 = vpop.f32.mrf.mxu0
    %v2262 = vadd.f32 0.0, %v2261
    %2263 = vdwg.mxu0
    %2264 = vmatprep.subr.bf16.mxu0 %v1745
    %2265 = vmatpush1.bf16.msra.mxu0 %v1744
    %2266 = vmatprep.subr.bf16.mxu0 %v1736
    %2267 = vmatpush1.bf16.msra.mxu0 %v1735
    %2268 = vmatprep.subr.bf16.mxu0 %v1727
    %2269 = vmatpush1.bf16.msra.mxu0 %v1726
    %2270 = vmatprep.subr.bf16.mxu0 %v1718
    %2271 = vmatpush1.bf16.msra.mxu0 %v1717
    %2272 = vmatprep.subr.bf16.mxu0 %v1709
    %2273 = vmatpush1.bf16.msra.mxu0 %v1708
    %2274 = vmatprep.subr.bf16.mxu0 %v1700
    %2275 = vmatpush1.bf16.msra.mxu0 %v1699
    %2276 = vmatprep.subr.bf16.mxu0 %v1691
    %2277 = vmatpush1.bf16.msra.mxu0 %v1690
    %2278 = vmatprep.subr.bf16.mxu0 %v1682
    %2279 = vmatpush1.bf16.msra.mxu0 %v1681
    %2280 = vmatprep.subr.bf16.mxu0 0
    %2281 = vmatpush2.bf16.msra.mxu0 0
    %2282 = vmatprep.subr.bf16.mxu0 0
    %2283 = vmatpush2.bf16.msra.mxu0 0
    %2284 = vmatprep.subr.bf16.mxu0 0
    %2285 = vmatpush2.bf16.msra.mxu0 0
    %2286 = vmatprep.subr.bf16.mxu0 0
    %2287 = vmatpush2.bf16.msra.mxu0 0
    %2288 = vmatprep.subr.bf16.mxu0 0
    %2289 = vmatpush2.bf16.msra.mxu0 0
    %2290 = vmatprep.subr.bf16.mxu0 0
    %2291 = vmatpush2.bf16.msra.mxu0 0
    %2292 = vmatprep.subr.bf16.mxu0 0
    %2293 = vmatpush2.bf16.msra.mxu0 0
    %2294 = vmatprep.subr.bf16.mxu0 0
    %2295 = vmatpush2.bf16.msra.mxu0 0
    %2296 = vmatprep.mubr.bf16.mxu0 0
    %2297 = vmatmul.mubr.bf16.gmra.mxu0 %v618
    %v2298 = vpop.f32.mrf.mxu0
    %v2299 = vadd.f32 %v2256, %v2298
    %v2300 = vpop.f32.mrf.mxu0
    %v2301 = vadd.f32 %v2258, %v2300
    %v2302 = vpop.f32.mrf.mxu0
    %v2303 = vadd.f32 %v2260, %v2302
    %v2304 = vpop.f32.mrf.mxu0
    %v2305 = vadd.f32 %v2262, %v2304
    %2306 = vdwg.mxu0
    %2307 = vmatprep.subr.bf16.mxu0 0
    %2308 = vmatpush1.bf16.msra.mxu0 %v1602
    %2309 = vmatprep.subr.bf16.mxu0 0
    %2310 = vmatpush1.bf16.msra.mxu0 %v1593
    %2311 = vmatprep.subr.bf16.mxu0 0
    %2312 = vmatpush1.bf16.msra.mxu0 %v1584
    %2313 = vmatprep.subr.bf16.mxu0 0
    %2314 = vmatpush1.bf16.msra.mxu0 %v1575
    %2315 = vmatprep.subr.bf16.mxu0 0
    %2316 = vmatpush1.bf16.msra.mxu0 %v1566
    %2317 = vmatprep.subr.bf16.mxu0 0
    %2318 = vmatpush1.bf16.msra.mxu0 %v1557
    %2319 = vmatprep.subr.bf16.mxu0 0
    %2320 = vmatpush1.bf16.msra.mxu0 %v1548
    %2321 = vmatprep.subr.bf16.mxu0 0
    %2322 = vmatpush1.bf16.msra.mxu0 %v1539
    %2323 = vmatprep.subr.bf16.mxu0 0
    %2324 = vmatpush2.bf16.msra.mxu0 %v1674
    %2325 = vmatprep.subr.bf16.mxu0 0
    %2326 = vmatpush2.bf16.msra.mxu0 %v1665
    %2327 = vmatprep.subr.bf16.mxu0 0
    %2328 = vmatpush2.bf16.msra.mxu0 %v1656
    %2329 = vmatprep.subr.bf16.mxu0 0
    %2330 = vmatpush2.bf16.msra.mxu0 %v1647
    %2331 = vmatprep.subr.bf16.mxu0 0
    %2332 = vmatpush2.bf16.msra.mxu0 %v1638
    %2333 = vmatprep.subr.bf16.mxu0 0
    %2334 = vmatpush2.bf16.msra.mxu0 %v1629
    %2335 = vmatprep.subr.bf16.mxu0 0
    %2336 = vmatpush2.bf16.msra.mxu0 %v1620
    %2337 = vmatprep.subr.bf16.mxu0 0
    %2338 = vmatpush2.bf16.msra.mxu0 %v1611
    %2339 = vmatprep.mubr.bf16.mxu0 %v617
    %2340 = vmatmul.mubr.bf16.gmra.mxu0 %v616
    %v2341 = vpop.f32.mrf.mxu0
    %v2342 = vadd.f32 0.0, %v2341
    %v2343 = vpop.f32.mrf.mxu0
    %v2344 = vpop.f32.mrf.mxu0
    %v2345 = vadd.f32 0.0, %v2344
    %v2346 = vpop.f32.mrf.mxu0
    %2347 = vdwg.mxu0
    %2348 = vmatprep.subr.bf16.mxu0 0
    %2349 = vmatpush1.bf16.msra.mxu0 %v1746
    %2350 = vmatprep.subr.bf16.mxu0 0
    %2351 = vmatpush1.bf16.msra.mxu0 %v1737
    %2352 = vmatprep.subr.bf16.mxu0 0
    %2353 = vmatpush1.bf16.msra.mxu0 %v1728
    %2354 = vmatprep.subr.bf16.mxu0 0
    %2355 = vmatpush1.bf16.msra.mxu0 %v1719
    %2356 = vmatprep.subr.bf16.mxu0 0
    %2357 = vmatpush1.bf16.msra.mxu0 %v1710
    %2358 = vmatprep.subr.bf16.mxu0 0
    %2359 = vmatpush1.bf16.msra.mxu0 %v1701
    %2360 = vmatprep.subr.bf16.mxu0 0
    %2361 = vmatpush1.bf16.msra.mxu0 %v1692
    %2362 = vmatprep.subr.bf16.mxu0 0
    %2363 = vmatpush1.bf16.msra.mxu0 %v1683
    %2364 = vmatprep.subr.bf16.mxu0 0
    %2365 = vmatpush2.bf16.msra.mxu0 0
    %2366 = vmatprep.subr.bf16.mxu0 0
    %2367 = vmatpush2.bf16.msra.mxu0 0
    %2368 = vmatprep.subr.bf16.mxu0 0
    %2369 = vmatpush2.bf16.msra.mxu0 0
    %2370 = vmatprep.subr.bf16.mxu0 0
    %2371 = vmatpush2.bf16.msra.mxu0 0
    %2372 = vmatprep.subr.bf16.mxu0 0
    %2373 = vmatpush2.bf16.msra.mxu0 0
    %2374 = vmatprep.subr.bf16.mxu0 0
    %2375 = vmatpush2.bf16.msra.mxu0 0
    %2376 = vmatprep.subr.bf16.mxu0 0
    %2377 = vmatpush2.bf16.msra.mxu0 0
    %2378 = vmatprep.subr.bf16.mxu0 0
    %2379 = vmatpush2.bf16.msra.mxu0 0
    %2380 = vmatprep.mubr.bf16.mxu0 0
    %2381 = vmatmul.mubr.bf16.gmra.mxu0 %v618
    %v2382 = vpop.f32.mrf.mxu0
    %v2383 = vadd.f32 %v2342, %v2382
    %v2384 = vpop.f32.mrf.mxu0
    %v2385 = vpop.f32.mrf.mxu0
    %v2386 = vadd.f32 %v2345, %v2385
    %v2387 = vpop.f32.mrf.mxu0
    %2388 = vdwg.mxu0
    %v2389 = vlaneseq
    %v2390 = vshrl.u32 %v2389, 7
    %v2391 = vsub.s32 0, %v2390
    %v2392 = vrot.slane %v2041, %v2391
    %v2393 = vlaneseq
    %v2394 = vshrl.u32 %v2393, 7
    %v2395 = vsub.s32 0, %v2394
    %v2396 = vrot.slane %v2043, %v2395
    %v2397 = vlaneseq
    %v2398 = vshrl.u32 %v2397, 7
    %v2399 = vsub.s32 0, %v2398
    %v2400 = vrot.slane %v2127, %v2399
    %v2401 = vlaneseq
    %v2402 = vshrl.u32 %v2401, 7
    %v2403 = vsub.s32 0, %v2402
    %v2404 = vrot.slane %v2045, %v2403
    %v2405 = vlaneseq
    %v2406 = vshrl.u32 %v2405, 7
    %v2407 = vsub.s32 0, %v2406
    %v2408 = vrot.slane %v2047, %v2407
    %v2409 = vlaneseq
    %v2410 = vshrl.u32 %v2409, 7
    %v2411 = vsub.s32 0, %v2410
    %v2412 = vrot.slane %v2131, %v2411
    %v2413 = vmul.f32 %v2392, %v2129
    %v2414 = vmul.f32 %v2396, %v2213
    %v2415 = vmul.f32 %v2400, %v2215
    %v2416 = vmul.f32 %v2404, %v2133
    %v2417 = vmul.f32 %v2408, %v2217
    %v2418 = vmul.f32 %v2412, %v2219
    %v2419 = vadd.f32 %v2413, %v2414
    %v2420 = vadd.f32 %v2419, %v2415
    %2421 = vadd.xlane.f32.xlu0 %v2420
    %v2422 = vpop.xlane.xlu0 %2421
    %v2423 = vadd.f32 %v2416, %v2417
    %v2424 = vadd.f32 %v2423, %v2418
    %2425 = vadd.xlane.f32.xlu0 %v2424
    %v2426 = vpop.xlane.xlu0 %2425
    %v2427 = vmul.f32 %v2422, 0.05661385
    %v2428 = vmul.f32 %v2426, 0.05661385
    %v2429 = vld [vmem:[%s4] sm:$0x3]
    %v2431 = vlaneseq
    %v2432 = vshrl.u32 %v2431, 7
    %v2433 = vsub.s32 0, %v2432
    %v2434 = vrot.slane %v2429, %v2433
    %2436 = vbcast.lane.b32.xlu0 %v2434, 256
    %v2437 = vpop.permute.xlu0 %2436
    %v2438 = vlaneseq
    %v2439 = vshrl.u32 %v2438, 7
    %v2440 = vsub.s32 1, %v2439
    %v2441 = vrot.slane %v2429, %v2440
    %2443 = vbcast.lane.b32.xlu0 %v2441, 256
    %v2444 = vpop.permute.xlu0 %2443
    %v2447 = vadd.f32 %v2427, %v2437
    %v2448 = vadd.f32 %v2428, %v2444
    %2451 = vset.pattern.permute.xlu0 0
    %2452 = vperm.xlu0 %2451, %v2447
    %v2453 = vpop.permute.xlu0 %2452
    %2454 = vset.pattern.permute.xlu0 0
    %2455 = vperm.xlu0 %2454, %v2448
    %v2456 = vpop.permute.xlu0 %2455
    %v2457 = vlaneseq
    %v2458 = vshrl.u32 %v2457, 7
    %v2459 = vsub.s32 %v347, %v2458
    %v2460 = vrot.slane %v2453, %v2459
    %v2461 = vlaneseq
    %v2462 = vshrl.u32 %v2461, 7
    %v2463 = vsub.s32 %v347, %v2462
    %v2464 = vrot.slane %v2456, %v2463
    %vm2465 = vcmask 1041409
    %v2466 = vsel %vm2465, %v2464, %v2460
    %vm2468 = vcmask 58368
    %v2469 = vsel %vm2468, %v2466, -inf
    %2470 = vmax.xlane.f32.xlu0 %v2469
    %v2471 = vpop.xlane.xlu0 %2470
    %v2473 = vlaneseq
    %v2474 = vshrl.u32 %v2473, 7
    %v2475 = vsub.s32 0, %v2474
    %v2476 = vrot.slane %v2471, %v2475
    %v2477 = vlaneseq
    %v2478 = vshrl.u32 %v2477, 7
    %v2479 = vsub.s32 1, %v2478
    %v2480 = vrot.slane %v2471, %v2479
    %v2483 = vsub.f32 %v2447, %v2476
    %v2484 = vsub.f32 %v2448, %v2480
    %v2485 = vmul.f32 %v2483, 1.442695
    %v2486 = vpow.pop %v2485
    %v2487 = vmul.f32 %v2484, 1.442695
    %v2488 = vpow.pop %v2487
    %2491 = vset.pattern.permute.xlu0 0
    %2492 = vperm.xlu0 %2491, %v2486
    %v2493 = vpop.permute.xlu0 %2492
    %2494 = vset.pattern.permute.xlu0 0
    %2495 = vperm.xlu0 %2494, %v2488
    %v2496 = vpop.permute.xlu0 %2495
    %v2497 = vlaneseq
    %v2498 = vshrl.u32 %v2497, 7
    %v2499 = vsub.s32 %v347, %v2498
    %v2500 = vrot.slane %v2493, %v2499
    %v2501 = vlaneseq
    %v2502 = vshrl.u32 %v2501, 7
    %v2503 = vsub.s32 %v347, %v2502
    %v2504 = vrot.slane %v2496, %v2503
    %v2505 = vsel %vm2465, %v2504, %v2500
    %v2507 = vsel %vm2468, %v2505, 0.0
    %2508 = vadd.xlane.f32.xlu0 %v2507
    %v2509 = vpop.xlane.xlu0 %2508
    %v2510 = vrcp.pop %v2509
    %v2512 = vlaneseq
    %v2513 = vshrl.u32 %v2512, 7
    %v2514 = vsub.s32 0, %v2513
    %v2515 = vrot.slane %v2510, %v2514
    %v2516 = vlaneseq
    %v2517 = vshrl.u32 %v2516, 7
    %v2518 = vsub.s32 1, %v2517
    %v2519 = vrot.slane %v2510, %v2518
    %v2522 = vmul.f32 %v2486, %v2515
    %v2523 = vmul.f32 %v2488, %v2519
    %2525 = vset.pattern.permute.xlu0 0
    %2526 = vperm.xlu0 %2525, %v2522
    %v2527 = vpop.permute.xlu0 %2526
    %2530 = vset.pattern.permute.xlu0 0
    %2531 = vperm.xlu0 %2530, %v2523
    %v2532 = vpop.permute.xlu0 %2531
    %v2534 = vmul.f32 %v2527, %v2299
    %v2535 = vmul.f32 %v2527, %v2301
    %v2536 = vmul.f32 %v2527, %v2383
    %v2537 = vmul.f32 %v2532, %v2303
    %v2538 = vmul.f32 %v2532, %v2305
    %v2539 = vmul.f32 %v2532, %v2386
    %v2540 = vrot.slane %v2534, 4
    %v2541 = vadd.f32 %v2534, %v2540
    %v2542 = vrot.slane %v2541, 2
    %v2543 = vadd.f32 %v2541, %v2542
    %v2544 = vrot.slane %v2543, 1
    %v2545 = vadd.f32 %v2543, %v2544
    %v2546 = vrot.slane %v2535, 4
    %v2547 = vadd.f32 %v2535, %v2546
    %v2548 = vrot.slane %v2547, 2
    %v2549 = vadd.f32 %v2547, %v2548
    %v2550 = vrot.slane %v2549, 1
    %v2551 = vadd.f32 %v2549, %v2550
    %v2552 = vrot.slane %v2536, 4
    %v2553 = vadd.f32 %v2536, %v2552
    %v2554 = vrot.slane %v2553, 2
    %v2555 = vadd.f32 %v2553, %v2554
    %v2556 = vrot.slane %v2555, 1
    %v2557 = vadd.f32 %v2555, %v2556
    %v2558 = vrot.slane %v2537, 4
    %v2559 = vadd.f32 %v2537, %v2558
    %v2560 = vrot.slane %v2559, 2
    %v2561 = vadd.f32 %v2559, %v2560
    %v2562 = vrot.slane %v2561, 1
    %v2563 = vadd.f32 %v2561, %v2562
    %v2564 = vrot.slane %v2538, 4
    %v2565 = vadd.f32 %v2538, %v2564
    %v2566 = vrot.slane %v2565, 2
    %v2567 = vadd.f32 %v2565, %v2566
    %v2568 = vrot.slane %v2567, 1
    %v2569 = vadd.f32 %v2567, %v2568
    %v2570 = vrot.slane %v2539, 4
    %v2571 = vadd.f32 %v2539, %v2570
    %v2572 = vrot.slane %v2571, 2
    %v2573 = vadd.f32 %v2571, %v2572
    %v2574 = vrot.slane %v2573, 1
    %v2575 = vadd.f32 %v2573, %v2574
    %v2576 = vpack.c.bf16 %v2545, %v2545
    %v2577 = vpack.c.bf16 %v2551, %v2551
    %v2578 = vpack.c.bf16 %v2557, %v2557
    %v2579 = vpack.c.bf16 %v2563, %v2563
    %v2580 = vpack.c.bf16 %v2569, %v2569
    %v2581 = vpack.c.bf16 %v2575, %v2575
    %v2582 = vld [vmem:[%s8] sm:$0xff]
    %v2583 = vld [vmem:[%s8 + $0x8] sm:$0xf]
    %v2584 = vld [vmem:[%s8 + $0xc] sm:$0xff]
    %v2585 = vld [vmem:[%s8 + $0x14] sm:$0xf]
    %v2586 = vld [vmem:[%s8 + $0x18] sm:$0xff]
    %v2587 = vld [vmem:[%s8 + $0x20] sm:$0xf]
    %v2588 = vld [vmem:[%s8 + $0x24] sm:$0xff]
    %v2589 = vld [vmem:[%s8 + $0x2c] sm:$0xf]
    %v2590 = vld [vmem:[%s8 + $0x30] sm:$0xff]
    %v2591 = vld [vmem:[%s8 + $0x38] sm:$0xf]
    %v2592 = vld [vmem:[%s8 + $0x3c] sm:$0xff]
    %v2593 = vld [vmem:[%s8 + $0x44] sm:$0xf]
    %v2594 = vld [vmem:[%s8 + $0x48] sm:$0xff]
    %v2595 = vld [vmem:[%s8 + $0x50] sm:$0xf]
    %v2596 = vld [vmem:[%s8 + $0x54] sm:$0xff]
    %v2597 = vld [vmem:[%s8 + $0x5c] sm:$0xf]
    %v2598 = vld [vmem:[%s8 + $0x60] sm:$0xff]
    %v2599 = vld [vmem:[%s8 + $0x68] sm:$0xf]
    %v2600 = vld [vmem:[%s8 + $0x6c] sm:$0xff]
    %v2601 = vld [vmem:[%s8 + $0x74] sm:$0xf]
    %v2602 = vld [vmem:[%s8 + $0x78] sm:$0xff]
    %v2603 = vld [vmem:[%s8 + $0x80] sm:$0xf]
    %v2604 = vld [vmem:[%s8 + $0x84] sm:$0xff]
    %v2605 = vld [vmem:[%s8 + $0x8c] sm:$0xf]
    %v2606 = vld [vmem:[%s8 + $0x90] sm:$0xff]
    %v2607 = vld [vmem:[%s8 + $0x98] sm:$0xf]
    %v2608 = vld [vmem:[%s8 + $0x9c] sm:$0xff]
    %v2609 = vld [vmem:[%s8 + $0xa4] sm:$0xf]
    %v2610 = vld [vmem:[%s8 + $0xa8] sm:$0xff]
    %v2611 = vld [vmem:[%s8 + $0xb0] sm:$0xf]
    %v2612 = vld [vmem:[%s8 + $0xb4] sm:$0xff]
    %v2613 = vld [vmem:[%s8 + $0xbc] sm:$0xf]
    %v2614 = vld [vmem:[%s8 + $0xc0] sm:$0xff]
    %v2615 = vld [vmem:[%s8 + $0xc8] sm:$0xf]
    %v2616 = vld [vmem:[%s8 + $0xcc] sm:$0xff]
    %v2617 = vld [vmem:[%s8 + $0xd4] sm:$0xf]
    %v2618 = vld [vmem:[%s8 + $0xd8] sm:$0xff]
    %v2619 = vld [vmem:[%s8 + $0xe0] sm:$0xf]
    %v2620 = vld [vmem:[%s8 + $0xe4] sm:$0xff]
    %v2621 = vld [vmem:[%s8 + $0xec] sm:$0xf]
    %v2622 = vld [vmem:[%s8 + $0xf0] sm:$0xff]
    %v2623 = vld [vmem:[%s8 + $0xf8] sm:$0xf]
    %v2624 = vld [vmem:[%s8 + $0xfc] sm:$0xff]
    %v2625 = vld [vmem:[%s8 + $0x104] sm:$0xf]
    %v2626 = vld [vmem:[%s8 + $0x108] sm:$0xff]
    %v2627 = vld [vmem:[%s8 + $0x110] sm:$0xf]
    %v2628 = vld [vmem:[%s8 + $0x114] sm:$0xff]
    %v2629 = vld [vmem:[%s8 + $0x11c] sm:$0xf]
    %v2630 = vld [vmem:[%s8 + $0x120] sm:$0xff]
    %v2631 = vld [vmem:[%s8 + $0x128] sm:$0xf]
    %v2632 = vld [vmem:[%s8 + $0x12c] sm:$0xff]
    %v2633 = vld [vmem:[%s8 + $0x134] sm:$0xf]
    %v2634 = vld [vmem:[%s8 + $0x138] sm:$0xff]
    %v2635 = vld [vmem:[%s8 + $0x140] sm:$0xf]
    %v2636 = vld [vmem:[%s8 + $0x144] sm:$0xff]
    %v2637 = vld [vmem:[%s8 + $0x14c] sm:$0xf]
    %v2638 = vld [vmem:[%s8 + $0x150] sm:$0xff]
    %v2639 = vld [vmem:[%s8 + $0x158] sm:$0xf]
    %v2640 = vld [vmem:[%s8 + $0x15c] sm:$0xff]
    %v2641 = vld [vmem:[%s8 + $0x164] sm:$0xf]
    %v2642 = vld [vmem:[%s8 + $0x168] sm:$0xff]
    %v2643 = vld [vmem:[%s8 + $0x170] sm:$0xf]
    %v2644 = vld [vmem:[%s8 + $0x174] sm:$0xff]
    %v2645 = vld [vmem:[%s8 + $0x17c] sm:$0xf]
    %v2646 = vld [vmem:[%s8 + $0x180] sm:$0xff]
    %v2647 = vld [vmem:[%s8 + $0x188] sm:$0xf]
    %v2648 = vld [vmem:[%s8 + $0x18c] sm:$0xff]
    %v2649 = vld [vmem:[%s8 + $0x194] sm:$0xf]
    %v2650 = vld [vmem:[%s8 + $0x198] sm:$0xff]
    %v2651 = vld [vmem:[%s8 + $0x1a0] sm:$0xf]
    %v2652 = vld [vmem:[%s8 + $0x1a4] sm:$0xff]
    %v2653 = vld [vmem:[%s8 + $0x1ac] sm:$0xf]
    %v2654 = vld [vmem:[%s8 + $0x1b0] sm:$0xff]
    %v2655 = vld [vmem:[%s8 + $0x1b8] sm:$0xf]
    %v2656 = vld [vmem:[%s8 + $0x1bc] sm:$0xff]
    %v2657 = vld [vmem:[%s8 + $0x1c4] sm:$0xf]
    %v2658 = vld [vmem:[%s8 + $0x1c8] sm:$0xff]
    %v2659 = vld [vmem:[%s8 + $0x1d0] sm:$0xf]
    %v2660 = vld [vmem:[%s8 + $0x1d4] sm:$0xff]
    %v2661 = vld [vmem:[%s8 + $0x1dc] sm:$0xf]
    %v2662 = vld [vmem:[%s8 + $0x1e0] sm:$0xff]
    %v2663 = vld [vmem:[%s8 + $0x1e8] sm:$0xf]
    %v2664 = vld [vmem:[%s8 + $0x1ec] sm:$0xff]
    %v2665 = vld [vmem:[%s8 + $0x1f4] sm:$0xf]
    %v2666 = vld [vmem:[%s8 + $0x1f8] sm:$0xff]
    %v2667 = vld [vmem:[%s8 + $0x200] sm:$0xf]
    %v2668 = vld [vmem:[%s8 + $0x204] sm:$0xff]
    %v2669 = vld [vmem:[%s8 + $0x20c] sm:$0xf]
    %v2670 = vld [vmem:[%s8 + $0x210] sm:$0xff]
    %v2671 = vld [vmem:[%s8 + $0x218] sm:$0xf]
    %v2672 = vld [vmem:[%s8 + $0x21c] sm:$0xff]
    %v2673 = vld [vmem:[%s8 + $0x224] sm:$0xf]
    %v2674 = vld [vmem:[%s8 + $0x228] sm:$0xff]
    %v2675 = vld [vmem:[%s8 + $0x230] sm:$0xf]
    %v2676 = vld [vmem:[%s8 + $0x234] sm:$0xff]
    %v2677 = vld [vmem:[%s8 + $0x23c] sm:$0xf]
    %v2684 = vunpack.c.l.b16 %v2576
    %v2685 = vunpack.c.l.b16 %v2577
    %v2686 = vunpack.c.l.b16 %v2578
    %v2687 = vunpack.c.l.b16 %v2579
    %v2688 = vunpack.c.l.b16 %v2580
    %v2689 = vunpack.c.l.b16 %v2581
    %v2690 = vsel %vm2465, %v2687, %v2684
    %v2691 = vsel %vm2465, %v2688, %v2685
    %v2692 = vsel %vm2465, %v2689, %v2686
    %v2693 = vpack.c.b16 %v2690, %v2690
    %v2694 = vpack.c.b16 %v2691, %v2691
    %v2695 = vpack.c.b16 %v2692, %v2692
    %v2795 = vunpack.c.l.b16 %v2582
    %v2796 = vunpack.c.h.b16 %v2582
    %v2797 = vunpack.c.l.b16 %v2583
    %v2798 = vunpack.c.l.b16 %v2584
    %v2799 = vunpack.c.h.b16 %v2584
    %v2800 = vunpack.c.l.b16 %v2585
    %v2801 = vunpack.c.l.b16 %v2586
    %v2802 = vunpack.c.h.b16 %v2586
    %v2803 = vunpack.c.l.b16 %v2587
    %v2804 = vunpack.c.l.b16 %v2588
    %v2805 = vunpack.c.h.b16 %v2588
    %v2806 = vunpack.c.l.b16 %v2589
    %v2807 = vunpack.c.l.b16 %v2590
    %v2808 = vunpack.c.h.b16 %v2590
    %v2809 = vunpack.c.l.b16 %v2591
    %v2810 = vunpack.c.l.b16 %v2592
    %v2811 = vunpack.c.h.b16 %v2592
    %v2812 = vunpack.c.l.b16 %v2593
    %v2813 = vunpack.c.l.b16 %v2594
    %v2814 = vunpack.c.h.b16 %v2594
    %v2815 = vunpack.c.l.b16 %v2595
    %v2816 = vunpack.c.l.b16 %v2596
    %v2817 = vunpack.c.h.b16 %v2596
    %v2818 = vunpack.c.l.b16 %v2597
    %v2819 = vunpack.c.l.b16 %v2598
    %v2820 = vunpack.c.h.b16 %v2598
    %v2821 = vunpack.c.l.b16 %v2599
    %v2822 = vunpack.c.l.b16 %v2600
    %v2823 = vunpack.c.h.b16 %v2600
    %v2824 = vunpack.c.l.b16 %v2601
    %v2825 = vunpack.c.l.b16 %v2602
    %v2826 = vunpack.c.h.b16 %v2602
    %v2827 = vunpack.c.l.b16 %v2603
    %v2828 = vunpack.c.l.b16 %v2604
    %v2829 = vunpack.c.h.b16 %v2604
    %v2830 = vunpack.c.l.b16 %v2605
    %v2831 = vunpack.c.l.b16 %v2606
    %v2832 = vunpack.c.h.b16 %v2606
    %v2833 = vunpack.c.l.b16 %v2607
    %v2834 = vunpack.c.l.b16 %v2608
    %v2835 = vunpack.c.h.b16 %v2608
    %v2836 = vunpack.c.l.b16 %v2609
    %v2837 = vunpack.c.l.b16 %v2610
    %v2838 = vunpack.c.h.b16 %v2610
    %v2839 = vunpack.c.l.b16 %v2611
    %v2840 = vunpack.c.l.b16 %v2612
    %v2841 = vunpack.c.h.b16 %v2612
    %v2842 = vunpack.c.l.b16 %v2613
    %v2843 = vunpack.c.l.b16 %v2614
    %v2844 = vunpack.c.h.b16 %v2614
    %v2845 = vunpack.c.l.b16 %v2615
    %v2846 = vunpack.c.l.b16 %v2616
    %v2847 = vunpack.c.h.b16 %v2616
    %v2848 = vunpack.c.l.b16 %v2617
    %v2849 = vunpack.c.l.b16 %v2618
    %v2850 = vunpack.c.h.b16 %v2618
    %v2851 = vunpack.c.l.b16 %v2619
    %v2852 = vunpack.c.l.b16 %v2620
    %v2853 = vunpack.c.h.b16 %v2620
    %v2854 = vunpack.c.l.b16 %v2621
    %v2855 = vunpack.c.l.b16 %v2622
    %v2856 = vunpack.c.h.b16 %v2622
    %v2857 = vunpack.c.l.b16 %v2623
    %v2858 = vunpack.c.l.b16 %v2624
    %v2859 = vunpack.c.h.b16 %v2624
    %v2860 = vunpack.c.l.b16 %v2625
    %v2861 = vunpack.c.l.b16 %v2626
    %v2862 = vunpack.c.h.b16 %v2626
    %v2863 = vunpack.c.l.b16 %v2627
    %v2864 = vunpack.c.l.b16 %v2628
    %v2865 = vunpack.c.h.b16 %v2628
    %v2866 = vunpack.c.l.b16 %v2629
    %v2867 = vunpack.c.l.b16 %v2630
    %v2868 = vunpack.c.h.b16 %v2630
    %v2869 = vunpack.c.l.b16 %v2631
    %v2870 = vunpack.c.l.b16 %v2632
    %v2871 = vunpack.c.h.b16 %v2632
    %v2872 = vunpack.c.l.b16 %v2633
    %v2873 = vunpack.c.l.b16 %v2634
    %v2874 = vunpack.c.h.b16 %v2634
    %v2875 = vunpack.c.l.b16 %v2635
    %v2876 = vunpack.c.l.b16 %v2636
    %v2877 = vunpack.c.h.b16 %v2636
    %v2878 = vunpack.c.l.b16 %v2637
    %v2879 = vunpack.c.l.b16 %v2638
    %v2880 = vunpack.c.h.b16 %v2638
    %v2881 = vunpack.c.l.b16 %v2639
    %v2882 = vunpack.c.l.b16 %v2640
    %v2883 = vunpack.c.h.b16 %v2640
    %v2884 = vunpack.c.l.b16 %v2641
    %v2885 = vunpack.c.l.b16 %v2642
    %v2886 = vunpack.c.h.b16 %v2642
    %v2887 = vunpack.c.l.b16 %v2643
    %v2888 = vunpack.c.l.b16 %v2644
    %v2889 = vunpack.c.h.b16 %v2644
    %v2890 = vunpack.c.l.b16 %v2645
    %v2891 = vunpack.c.l.b16 %v2646
    %v2892 = vunpack.c.h.b16 %v2646
    %v2893 = vunpack.c.l.b16 %v2647
    %v2894 = vunpack.c.l.b16 %v2648
    %v2895 = vunpack.c.h.b16 %v2648
    %v2896 = vunpack.c.l.b16 %v2649
    %v2897 = vunpack.c.l.b16 %v2650
    %v2898 = vunpack.c.h.b16 %v2650
    %v2899 = vunpack.c.l.b16 %v2651
    %v2900 = vunpack.c.l.b16 %v2652
    %v2901 = vunpack.c.h.b16 %v2652
    %v2902 = vunpack.c.l.b16 %v2653
    %v2903 = vunpack.c.l.b16 %v2654
    %v2904 = vunpack.c.h.b16 %v2654
    %v2905 = vunpack.c.l.b16 %v2655
    %v2906 = vunpack.c.l.b16 %v2656
    %v2907 = vunpack.c.h.b16 %v2656
    %v2908 = vunpack.c.l.b16 %v2657
    %v2909 = vunpack.c.l.b16 %v2658
    %v2910 = vunpack.c.h.b16 %v2658
    %v2911 = vunpack.c.l.b16 %v2659
    %v2912 = vunpack.c.l.b16 %v2660
    %v2913 = vunpack.c.h.b16 %v2660
    %v2914 = vunpack.c.l.b16 %v2661
    %v2915 = vunpack.c.l.b16 %v2662
    %v2916 = vunpack.c.h.b16 %v2662
    %v2917 = vunpack.c.l.b16 %v2663
    %v2918 = vunpack.c.l.b16 %v2664
    %v2919 = vunpack.c.h.b16 %v2664
    %v2920 = vunpack.c.l.b16 %v2665
    %v2921 = vunpack.c.l.b16 %v2666
    %v2922 = vunpack.c.h.b16 %v2666
    %v2923 = vunpack.c.l.b16 %v2667
    %v2924 = vunpack.c.l.b16 %v2668
    %v2925 = vunpack.c.h.b16 %v2668
    %v2926 = vunpack.c.l.b16 %v2669
    %v2927 = vunpack.c.l.b16 %v2670
    %v2928 = vunpack.c.h.b16 %v2670
    %v2929 = vunpack.c.l.b16 %v2671
    %v2930 = vunpack.c.l.b16 %v2672
    %v2931 = vunpack.c.h.b16 %v2672
    %v2932 = vunpack.c.l.b16 %v2673
    %v2933 = vunpack.c.l.b16 %v2674
    %v2934 = vunpack.c.h.b16 %v2674
    %v2935 = vunpack.c.l.b16 %v2675
    %v2936 = vunpack.c.l.b16 %v2676
    %v2937 = vunpack.c.h.b16 %v2676
    %v2938 = vunpack.c.l.b16 %v2677
    %v2939 = vpack.c.b16 %v2798, %v2795
    %v2940 = vpack.c.b16 %v2799, %v2796
    %v2941 = vpack.c.b16 %v2800, %v2797
    %v2942 = vpack.c.b16 %v2804, %v2801
    %v2943 = vpack.c.b16 %v2805, %v2802
    %v2944 = vpack.c.b16 %v2806, %v2803
    %v2945 = vpack.c.b16 %v2810, %v2807
    %v2946 = vpack.c.b16 %v2811, %v2808
    %v2947 = vpack.c.b16 %v2812, %v2809
    %v2948 = vpack.c.b16 %v2816, %v2813
    %v2949 = vpack.c.b16 %v2817, %v2814
    %v2950 = vpack.c.b16 %v2818, %v2815
    %v2951 = vpack.c.b16 %v2822, %v2819
    %v2952 = vpack.c.b16 %v2823, %v2820
    %v2953 = vpack.c.b16 %v2824, %v2821
    %v2954 = vpack.c.b16 %v2828, %v2825
    %v2955 = vpack.c.b16 %v2829, %v2826
    %v2956 = vpack.c.b16 %v2830, %v2827
    %v2957 = vpack.c.b16 %v2834, %v2831
    %v2958 = vpack.c.b16 %v2835, %v2832
    %v2959 = vpack.c.b16 %v2836, %v2833
    %v2960 = vpack.c.b16 %v2840, %v2837
    %v2961 = vpack.c.b16 %v2841, %v2838
    %v2962 = vpack.c.b16 %v2842, %v2839
    %v2963 = vpack.c.b16 %v2846, %v2843
    %v2964 = vpack.c.b16 %v2847, %v2844
    %v2965 = vpack.c.b16 %v2848, %v2845
    %v2966 = vpack.c.b16 %v2852, %v2849
    %v2967 = vpack.c.b16 %v2853, %v2850
    %v2968 = vpack.c.b16 %v2854, %v2851
    %v2969 = vpack.c.b16 %v2858, %v2855
    %v2970 = vpack.c.b16 %v2859, %v2856
    %v2971 = vpack.c.b16 %v2860, %v2857
    %v2972 = vpack.c.b16 %v2864, %v2861
    %v2973 = vpack.c.b16 %v2865, %v2862
    %v2974 = vpack.c.b16 %v2866, %v2863
    %v2975 = vpack.c.b16 %v2870, %v2867
    %v2976 = vpack.c.b16 %v2871, %v2868
    %v2977 = vpack.c.b16 %v2872, %v2869
    %v2978 = vpack.c.b16 %v2876, %v2873
    %v2979 = vpack.c.b16 %v2877, %v2874
    %v2980 = vpack.c.b16 %v2878, %v2875
    %v2981 = vpack.c.b16 %v2882, %v2879
    %v2982 = vpack.c.b16 %v2883, %v2880
    %v2983 = vpack.c.b16 %v2884, %v2881
    %v2984 = vpack.c.b16 %v2888, %v2885
    %v2985 = vpack.c.b16 %v2889, %v2886
    %v2986 = vpack.c.b16 %v2890, %v2887
    %v2987 = vpack.c.b16 %v2894, %v2891
    %v2988 = vpack.c.b16 %v2895, %v2892
    %v2989 = vpack.c.b16 %v2896, %v2893
    %v2990 = vpack.c.b16 %v2900, %v2897
    %v2991 = vpack.c.b16 %v2901, %v2898
    %v2992 = vpack.c.b16 %v2902, %v2899
    %v2993 = vpack.c.b16 %v2906, %v2903
    %v2994 = vpack.c.b16 %v2907, %v2904
    %v2995 = vpack.c.b16 %v2908, %v2905
    %v2996 = vpack.c.b16 %v2912, %v2909
    %v2997 = vpack.c.b16 %v2913, %v2910
    %v2998 = vpack.c.b16 %v2914, %v2911
    %v2999 = vpack.c.b16 %v2918, %v2915
    %v3000 = vpack.c.b16 %v2919, %v2916
    %v3001 = vpack.c.b16 %v2920, %v2917
    %v3002 = vpack.c.b16 %v2924, %v2921
    %v3003 = vpack.c.b16 %v2925, %v2922
    %v3004 = vpack.c.b16 %v2926, %v2923
    %v3005 = vpack.c.b16 %v2930, %v2927
    %v3006 = vpack.c.b16 %v2931, %v2928
    %v3007 = vpack.c.b16 %v2932, %v2929
    %v3008 = vpack.c.b16 %v2936, %v2933
    %v3009 = vpack.c.b16 %v2937, %v2934
    %v3010 = vpack.c.b16 %v2938, %v2935
    %3083 = vmatprep.subr.bf16.mxu0 %v2961
    %3084 = vmatpush1.bf16.msra.mxu0 %v2960
    %3085 = vmatprep.subr.bf16.mxu0 %v2958
    %3086 = vmatpush1.bf16.msra.mxu0 %v2957
    %3087 = vmatprep.subr.bf16.mxu0 %v2955
    %3088 = vmatpush1.bf16.msra.mxu0 %v2954
    %3089 = vmatprep.subr.bf16.mxu0 %v2952
    %3090 = vmatpush1.bf16.msra.mxu0 %v2951
    %3091 = vmatprep.subr.bf16.mxu0 %v2949
    %3092 = vmatpush1.bf16.msra.mxu0 %v2948
    %3093 = vmatprep.subr.bf16.mxu0 %v2946
    %3094 = vmatpush1.bf16.msra.mxu0 %v2945
    %3095 = vmatprep.subr.bf16.mxu0 %v2943
    %3096 = vmatpush1.bf16.msra.mxu0 %v2942
    %3097 = vmatprep.subr.bf16.mxu0 %v2940
    %3098 = vmatpush1.bf16.msra.mxu0 %v2939
    %3099 = vmatprep.subr.bf16.mxu0 %v2985
    %3100 = vmatpush2.bf16.msra.mxu0 %v2984
    %3101 = vmatprep.subr.bf16.mxu0 %v2982
    %3102 = vmatpush2.bf16.msra.mxu0 %v2981
    %3103 = vmatprep.subr.bf16.mxu0 %v2979
    %3104 = vmatpush2.bf16.msra.mxu0 %v2978
    %3105 = vmatprep.subr.bf16.mxu0 %v2976
    %3106 = vmatpush2.bf16.msra.mxu0 %v2975
    %3107 = vmatprep.subr.bf16.mxu0 %v2973
    %3108 = vmatpush2.bf16.msra.mxu0 %v2972
    %3109 = vmatprep.subr.bf16.mxu0 %v2970
    %3110 = vmatpush2.bf16.msra.mxu0 %v2969
    %3111 = vmatprep.subr.bf16.mxu0 %v2967
    %3112 = vmatpush2.bf16.msra.mxu0 %v2966
    %3113 = vmatprep.subr.bf16.mxu0 %v2964
    %3114 = vmatpush2.bf16.msra.mxu0 %v2963
    %3115 = vmatprep.mubr.bf16.mxu0 %v2694
    %3116 = vmatmul.mubr.bf16.gmra.mxu0 %v2693
    %v3117 = vpop.f32.mrf.mxu0
    %v3118 = vadd.f32 0.0, %v3117
    %v3119 = vpop.f32.mrf.mxu0
    %v3120 = vadd.f32 0.0, %v3119
    %v3121 = vpop.f32.mrf.mxu0
    %v3122 = vpop.f32.mrf.mxu0
    %3123 = vdwg.mxu0
    %3124 = vmatprep.subr.bf16.mxu0 %v3009
    %3125 = vmatpush1.bf16.msra.mxu0 %v3008
    %3126 = vmatprep.subr.bf16.mxu0 %v3006
    %3127 = vmatpush1.bf16.msra.mxu0 %v3005
    %3128 = vmatprep.subr.bf16.mxu0 %v3003
    %3129 = vmatpush1.bf16.msra.mxu0 %v3002
    %3130 = vmatprep.subr.bf16.mxu0 %v3000
    %3131 = vmatpush1.bf16.msra.mxu0 %v2999
    %3132 = vmatprep.subr.bf16.mxu0 %v2997
    %3133 = vmatpush1.bf16.msra.mxu0 %v2996
    %3134 = vmatprep.subr.bf16.mxu0 %v2994
    %3135 = vmatpush1.bf16.msra.mxu0 %v2993
    %3136 = vmatprep.subr.bf16.mxu0 %v2991
    %3137 = vmatpush1.bf16.msra.mxu0 %v2990
    %3138 = vmatprep.subr.bf16.mxu0 %v2988
    %3139 = vmatpush1.bf16.msra.mxu0 %v2987
    %3140 = vmatprep.subr.bf16.mxu0 0
    %3141 = vmatpush2.bf16.msra.mxu0 0
    %3142 = vmatprep.subr.bf16.mxu0 0
    %3143 = vmatpush2.bf16.msra.mxu0 0
    %3144 = vmatprep.subr.bf16.mxu0 0
    %3145 = vmatpush2.bf16.msra.mxu0 0
    %3146 = vmatprep.subr.bf16.mxu0 0
    %3147 = vmatpush2.bf16.msra.mxu0 0
    %3148 = vmatprep.subr.bf16.mxu0 0
    %3149 = vmatpush2.bf16.msra.mxu0 0
    %3150 = vmatprep.subr.bf16.mxu0 0
    %3151 = vmatpush2.bf16.msra.mxu0 0
    %3152 = vmatprep.subr.bf16.mxu0 0
    %3153 = vmatpush2.bf16.msra.mxu0 0
    %3154 = vmatprep.subr.bf16.mxu0 0
    %3155 = vmatpush2.bf16.msra.mxu0 0
    %3156 = vmatprep.mubr.bf16.mxu0 0
    %3157 = vmatmul.mubr.bf16.gmra.mxu0 %v2695
    %v3158 = vpop.f32.mrf.mxu0
    %v3159 = vadd.f32 %v3118, %v3158
    %v3160 = vpop.f32.mrf.mxu0
    %v3161 = vadd.f32 %v3120, %v3160
    %v3162 = vpop.f32.mrf.mxu0
    %v3163 = vpop.f32.mrf.mxu0
    %3164 = vdwg.mxu0
    %3165 = vmatprep.subr.bf16.mxu0 0
    %3166 = vmatpush1.bf16.msra.mxu0 %v2962
    %3167 = vmatprep.subr.bf16.mxu0 0
    %3168 = vmatpush1.bf16.msra.mxu0 %v2959
    %3169 = vmatprep.subr.bf16.mxu0 0
    %3170 = vmatpush1.bf16.msra.mxu0 %v2956
    %3171 = vmatprep.subr.bf16.mxu0 0
    %3172 = vmatpush1.bf16.msra.mxu0 %v2953
    %3173 = vmatprep.subr.bf16.mxu0 0
    %3174 = vmatpush1.bf16.msra.mxu0 %v2950
    %3175 = vmatprep.subr.bf16.mxu0 0
    %3176 = vmatpush1.bf16.msra.mxu0 %v2947
    %3177 = vmatprep.subr.bf16.mxu0 0
    %3178 = vmatpush1.bf16.msra.mxu0 %v2944
    %3179 = vmatprep.subr.bf16.mxu0 0
    %3180 = vmatpush1.bf16.msra.mxu0 %v2941
    %3181 = vmatprep.subr.bf16.mxu0 0
    %3182 = vmatpush2.bf16.msra.mxu0 %v2986
    %3183 = vmatprep.subr.bf16.mxu0 0
    %3184 = vmatpush2.bf16.msra.mxu0 %v2983
    %3185 = vmatprep.subr.bf16.mxu0 0
    %3186 = vmatpush2.bf16.msra.mxu0 %v2980
    %3187 = vmatprep.subr.bf16.mxu0 0
    %3188 = vmatpush2.bf16.msra.mxu0 %v2977
    %3189 = vmatprep.subr.bf16.mxu0 0
    %3190 = vmatpush2.bf16.msra.mxu0 %v2974
    %3191 = vmatprep.subr.bf16.mxu0 0
    %3192 = vmatpush2.bf16.msra.mxu0 %v2971
    %3193 = vmatprep.subr.bf16.mxu0 0
    %3194 = vmatpush2.bf16.msra.mxu0 %v2968
    %3195 = vmatprep.subr.bf16.mxu0 0
    %3196 = vmatpush2.bf16.msra.mxu0 %v2965
    %3197 = vmatprep.mubr.bf16.mxu0 %v2694
    %3198 = vmatmul.mubr.bf16.gmra.mxu0 %v2693
    %v3199 = vpop.f32.mrf.mxu0
    %v3200 = vadd.f32 0.0, %v3199
    %v3201 = vpop.f32.mrf.mxu0
    %v3202 = vpop.f32.mrf.mxu0
    %v3203 = vpop.f32.mrf.mxu0
    %3204 = vdwg.mxu0
    %3205 = vmatprep.subr.bf16.mxu0 0
    %3206 = vmatpush1.bf16.msra.mxu0 %v3010
    %3207 = vmatprep.subr.bf16.mxu0 0
    %3208 = vmatpush1.bf16.msra.mxu0 %v3007
    %3209 = vmatprep.subr.bf16.mxu0 0
    %3210 = vmatpush1.bf16.msra.mxu0 %v3004
    %3211 = vmatprep.subr.bf16.mxu0 0
    %3212 = vmatpush1.bf16.msra.mxu0 %v3001
    %3213 = vmatprep.subr.bf16.mxu0 0
    %3214 = vmatpush1.bf16.msra.mxu0 %v2998
    %3215 = vmatprep.subr.bf16.mxu0 0
    %3216 = vmatpush1.bf16.msra.mxu0 %v2995
    %3217 = vmatprep.subr.bf16.mxu0 0
    %3218 = vmatpush1.bf16.msra.mxu0 %v2992
    %3219 = vmatprep.subr.bf16.mxu0 0
    %3220 = vmatpush1.bf16.msra.mxu0 %v2989
    %3221 = vmatprep.subr.bf16.mxu0 0
    %3222 = vmatpush2.bf16.msra.mxu0 0
    %3223 = vmatprep.subr.bf16.mxu0 0
    %3224 = vmatpush2.bf16.msra.mxu0 0
    %3225 = vmatprep.subr.bf16.mxu0 0
    %3226 = vmatpush2.bf16.msra.mxu0 0
    %3227 = vmatprep.subr.bf16.mxu0 0
    %3228 = vmatpush2.bf16.msra.mxu0 0
    %3229 = vmatprep.subr.bf16.mxu0 0
    %3230 = vmatpush2.bf16.msra.mxu0 0
    %3231 = vmatprep.subr.bf16.mxu0 0
    %3232 = vmatpush2.bf16.msra.mxu0 0
    %3233 = vmatprep.subr.bf16.mxu0 0
    %3234 = vmatpush2.bf16.msra.mxu0 0
    %3235 = vmatprep.subr.bf16.mxu0 0
    %3236 = vmatpush2.bf16.msra.mxu0 0
    %3237 = vmatprep.mubr.bf16.mxu0 0
    %3238 = vmatmul.mubr.bf16.gmra.mxu0 %v2695
    %v3239 = vpop.f32.mrf.mxu0
    %v3240 = vadd.f32 %v3200, %v3239
    %v3241 = vpop.f32.mrf.mxu0
    %v3242 = vpop.f32.mrf.mxu0
    %v3243 = vpop.f32.mrf.mxu0
    %3244 = vdwg.mxu0
    %v3248 = vrot.slane %v3159, 1
    %v3249 = vrot.slane %v3161, 1
    %v3250 = vrot.slane %v3240, 1
    %v3257 = vadd.f32 %v610, %v3159
    %v3258 = vadd.f32 %v611, %v3161
    %v3259 = vadd.f32 %v612, %v3240
    %v3260 = vadd.f32 %v613, %v3248
    %v3261 = vadd.f32 %v614, %v3249
    %v3262 = vadd.f32 %v615, %v3250
    %v3269 = vrot.slane %v3260, 7
    %v3270 = vsel %vm2465, %v3269, %v3257
    %v3271 = vrot.slane %v3261, 7
    %v3272 = vsel %vm2465, %v3271, %v3258
    %v3273 = vrot.slane %v3262, 7
    %v3274 = vsel %vm2465, %v3273, %v3259
    %vm3278 = vcmask 1041408
    %v3279 = vsel %vm3278, %v3270, 0.0
    %v3280 = vsel %vm3278, %v3272, 0.0
    %v3281 = vadd.f32 %v3279, %v3280
    %v3282 = vsel %vm3278, %v3274, 0.0
    %v3283 = vadd.f32 %v3281, %v3282
    %3284 = vadd.xlane.f32.xlu0 %v3283
    %v3285 = vpop.xlane.xlu0 %3284
    %v3286 = vmul.f32 %v3285, 0.0032051282
    %v3287 = vadd.s32 %v347, 128
    %v3288 = vadd.s32 %v347, 256
    %vm3289 = vcmp.lt.s32.totalorder %v347, 312
    %vm3290 = vcmp.lt.s32.totalorder %v3287, 312
    %vm3291 = vcmp.lt.s32.totalorder %v3288, 312
    %v3292 = vsel %vm3289, 1, 0
    %v3293 = vsel %vm3290, 1, 0
    %v3294 = vsel %vm3291, 1, 0
    %v3295 = vcvt.s32.f32 %v3292
    %v3296 = vcvt.s32.f32 %v3293
    %v3297 = vcvt.s32.f32 %v3294
    %v3299 = vrot.slane %v3286, 1
    %v3302 = vsub.f32 %v3257, %v3286
    %v3303 = vsub.f32 %v3258, %v3286
    %v3304 = vsub.f32 %v3259, %v3286
    %v3305 = vsub.f32 %v3260, %v3299
    %v3306 = vsub.f32 %v3261, %v3299
    %v3307 = vsub.f32 %v3262, %v3299
    %v3308 = vmul.f32 %v3302, %v3295
    %v3309 = vmul.f32 %v3303, %v3296
    %v3310 = vmul.f32 %v3304, %v3297
    %v3311 = vmul.f32 %v3305, %v3295
    %v3312 = vmul.f32 %v3306, %v3296
    %v3313 = vmul.f32 %v3307, %v3297
    %v3314 = vmul.f32 %v3308, %v3308
    %v3315 = vmul.f32 %v3309, %v3309
    %v3316 = vmul.f32 %v3310, %v3310
    %v3317 = vmul.f32 %v3311, %v3311
    %v3318 = vmul.f32 %v3312, %v3312
    %v3319 = vmul.f32 %v3313, %v3313
    %v3326 = vrot.slane %v3317, 7
    %v3327 = vsel %vm2465, %v3326, %v3314
    %v3328 = vrot.slane %v3318, 7
    %v3329 = vsel %vm2465, %v3328, %v3315
    %v3330 = vrot.slane %v3319, 7
    %v3331 = vsel %vm2465, %v3330, %v3316
    %v3335 = vsel %vm3278, %v3327, 0.0
    %v3336 = vsel %vm3278, %v3329, 0.0
    %v3337 = vadd.f32 %v3335, %v3336
    %v3338 = vsel %vm3278, %v3331, 0.0
    %v3339 = vadd.f32 %v3337, %v3338
    %3340 = vadd.xlane.f32.xlu0 %v3339
    %v3341 = vpop.xlane.xlu0 %3340
    %v3342 = vmul.f32 %v3341, 0.0032051282
    %v3343 = vadd.f32 %v3342, 1e-12
    %v3344 = vrsqrt.pop %v3343
    %v3346 = vrot.slane %v3344, 1
    %v3349 = vmul.f32 %v3308, %v3344
    %v3350 = vmul.f32 %v3309, %v3344
    %v3351 = vmul.f32 %v3310, %v3344
    %v3352 = vmul.f32 %v3311, %v3346
    %v3353 = vmul.f32 %v3312, %v3346
    %v3354 = vmul.f32 %v3313, %v3346
    %v3355 = vld [vmem:[%s9] sm:$0x7]
    %v3357 = vlaneseq
    %v3358 = vshrl.u32 %v3357, 7
    %v3359 = vsub.s32 0, %v3358
    %v3360 = vrot.slane %v3355, %v3359
    %v3361 = vlaneseq
    %v3362 = vshrl.u32 %v3361, 7
    %v3363 = vsub.s32 1, %v3362
    %v3364 = vrot.slane %v3355, %v3363
    %v3365 = vlaneseq
    %v3366 = vshrl.u32 %v3365, 7
    %v3367 = vsub.s32 2, %v3366
    %v3368 = vrot.slane %v3355, %v3367
    %v3372 = vmul.f32 %v3349, %v3360
    %v3373 = vmul.f32 %v3350, %v3364
    %v3374 = vmul.f32 %v3351, %v3368
    %v3375 = vmul.f32 %v3352, %v3360
    %v3376 = vmul.f32 %v3353, %v3364
    %v3377 = vmul.f32 %v3354, %v3368
    %v3378 = vld [vmem:[%s10] sm:$0x7]
    %v3380 = vlaneseq
    %v3381 = vshrl.u32 %v3380, 7
    %v3382 = vsub.s32 0, %v3381
    %v3383 = vrot.slane %v3378, %v3382
    %v3384 = vlaneseq
    %v3385 = vshrl.u32 %v3384, 7
    %v3386 = vsub.s32 1, %v3385
    %v3387 = vrot.slane %v3378, %v3386
    %v3388 = vlaneseq
    %v3389 = vshrl.u32 %v3388, 7
    %v3390 = vsub.s32 2, %v3389
    %v3391 = vrot.slane %v3378, %v3390
    %v3395 = vadd.f32 %v3372, %v3383
    %v3396 = vadd.f32 %v3373, %v3387
    %v3397 = vadd.f32 %v3374, %v3391
    %v3398 = vadd.f32 %v3375, %v3383
    %v3399 = vadd.f32 %v3376, %v3387
    %v3400 = vadd.f32 %v3377, %v3391
    %v3401 = vpack.c.bf16 %v3395, %v3395
    %v3402 = vpack.c.bf16 %v3396, %v3396
    %v3403 = vpack.c.bf16 %v3397, %v3397
    %v3404 = vpack.c.bf16 %v3398, %v3398
    %v3405 = vpack.c.bf16 %v3399, %v3399
    %v3406 = vpack.c.bf16 %v3400, %v3400
    %v3407 = vld [vmem:[#allocation5] sm:$0xff]
    %v3408 = vld [vmem:[#allocation5 + $0x8] sm:$0xff]
    %v3409 = vld [vmem:[#allocation5 + $0x10] sm:$0xff]
    %v3410 = vld [vmem:[#allocation5 + $0x18] sm:$0xff]
    %v3411 = vld [vmem:[#allocation5 + $0x20] sm:$0xff]
    %v3412 = vld [vmem:[#allocation5 + $0x28] sm:$0xff]
    %v3413 = vld [vmem:[#allocation5 + $0x30] sm:$0xff]
    %v3414 = vld [vmem:[#allocation5 + $0x38] sm:$0xff]
    %v3415 = vld [vmem:[#allocation5 + $0x40] sm:$0xff]
    %v3416 = vld [vmem:[#allocation5 + $0x48] sm:$0xff]
    %v3417 = vld [vmem:[#allocation5 + $0x50] sm:$0xff]
    %v3418 = vld [vmem:[#allocation5 + $0x58] sm:$0xff]
    %v3419 = vld [vmem:[#allocation5 + $0x60] sm:$0xff]
    %v3420 = vld [vmem:[#allocation5 + $0x68] sm:$0xff]
    %v3421 = vld [vmem:[#allocation5 + $0x70] sm:$0xff]
    %v3422 = vld [vmem:[#allocation5 + $0x78] sm:$0xff]
    %v3423 = vld [vmem:[#allocation5 + $0x80] sm:$0xff]
    %v3424 = vld [vmem:[#allocation5 + $0x88] sm:$0xff]
    %v3425 = vld [vmem:[#allocation5 + $0x90] sm:$0xff]
    %v3426 = vld [vmem:[#allocation5 + $0x98] sm:$0xff]
    %v3427 = vld [vmem:[#allocation5 + $0xa0] sm:$0xff]
    %v3428 = vld [vmem:[#allocation5 + $0xa8] sm:$0xff]
    %v3429 = vld [vmem:[#allocation5 + $0xb0] sm:$0xff]
    %v3430 = vld [vmem:[#allocation5 + $0xb8] sm:$0xff]
    %v3431 = vld [vmem:[#allocation5 + $0xc0] sm:$0xff]
    %v3432 = vld [vmem:[#allocation5 + $0xc8] sm:$0xff]
    %v3433 = vld [vmem:[#allocation5 + $0xd0] sm:$0xff]
    %v3434 = vld [vmem:[#allocation5 + $0xd8] sm:$0xff]
    %v3435 = vld [vmem:[#allocation5 + $0xe0] sm:$0xff]
    %v3436 = vld [vmem:[#allocation5 + $0xe8] sm:$0xff]
    %v3437 = vld [vmem:[#allocation5 + $0xf0] sm:$0xff]
    %v3438 = vld [vmem:[#allocation5 + $0xf8] sm:$0xff]
    %v3439 = vld [vmem:[#allocation5 + $0x100] sm:$0xff]
    %v3440 = vld [vmem:[#allocation5 + $0x108] sm:$0xff]
    %v3441 = vld [vmem:[#allocation5 + $0x110] sm:$0xff]
    %v3442 = vld [vmem:[#allocation5 + $0x118] sm:$0xff]
    %v3443 = vld [vmem:[#allocation5 + $0x120] sm:$0xff]
    %v3444 = vld [vmem:[#allocation5 + $0x128] sm:$0xff]
    %v3445 = vld [vmem:[#allocation5 + $0x130] sm:$0xff]
    %v3446 = vld [vmem:[#allocation5 + $0x138] sm:$0xff]
    %v3447 = vld [vmem:[#allocation5 + $0x140] sm:$0xff]
    %v3448 = vld [vmem:[#allocation5 + $0x148] sm:$0xff]
    %v3449 = vld [vmem:[#allocation5 + $0x150] sm:$0xff]
    %v3450 = vld [vmem:[#allocation5 + $0x158] sm:$0xff]
    %v3451 = vld [vmem:[#allocation5 + $0x160] sm:$0xff]
    %v3452 = vld [vmem:[#allocation5 + $0x168] sm:$0xff]
    %v3453 = vld [vmem:[#allocation5 + $0x170] sm:$0xff]
    %v3454 = vld [vmem:[#allocation5 + $0x178] sm:$0xff]
    %v3455 = vld [vmem:[#allocation5 + $0x180] sm:$0xff]
    %v3456 = vld [vmem:[#allocation5 + $0x188] sm:$0xff]
    %v3457 = vld [vmem:[#allocation5 + $0x190] sm:$0xff]
    %v3458 = vld [vmem:[#allocation5 + $0x198] sm:$0xff]
    %v3459 = vld [vmem:[#allocation5 + $0x1a0] sm:$0xff]
    %v3460 = vld [vmem:[#allocation5 + $0x1a8] sm:$0xff]
    %v3461 = vld [vmem:[#allocation5 + $0x1b0] sm:$0xff]
    %v3462 = vld [vmem:[#allocation5 + $0x1b8] sm:$0xff]
    %v3463 = vld [vmem:[#allocation5 + $0x1c0] sm:$0xff]
    %v3464 = vld [vmem:[#allocation5 + $0x1c8] sm:$0xff]
    %v3465 = vld [vmem:[#allocation5 + $0x1d0] sm:$0xff]
    %v3466 = vld [vmem:[#allocation5 + $0x1d8] sm:$0xff]
    %v3467 = vld [vmem:[#allocation5 + $0x1e0] sm:$0xff]
    %v3468 = vld [vmem:[#allocation5 + $0x1e8] sm:$0xff]
    %v3469 = vld [vmem:[#allocation5 + $0x1f0] sm:$0xff]
    %v3470 = vld [vmem:[#allocation5 + $0x1f8] sm:$0xff]
    %v3471 = vld [vmem:[#allocation5 + $0x200] sm:$0xff]
    %v3472 = vld [vmem:[#allocation5 + $0x208] sm:$0xff]
    %v3473 = vld [vmem:[#allocation5 + $0x210] sm:$0xff]
    %v3474 = vld [vmem:[#allocation5 + $0x218] sm:$0xff]
    %v3475 = vld [vmem:[#allocation5 + $0x220] sm:$0xff]
    %v3476 = vld [vmem:[#allocation5 + $0x228] sm:$0xff]
    %v3477 = vld [vmem:[#allocation5 + $0x230] sm:$0xff]
    %v3478 = vld [vmem:[#allocation5 + $0x238] sm:$0xff]
    %v3479 = vld [vmem:[#allocation5 + $0x240] sm:$0xff]
    %v3480 = vld [vmem:[#allocation5 + $0x248] sm:$0xff]
    %v3481 = vld [vmem:[#allocation5 + $0x250] sm:$0xff]
    %v3482 = vld [vmem:[#allocation5 + $0x258] sm:$0xff]
    %v3483 = vld [vmem:[#allocation5 + $0x260] sm:$0xff]
    %v3484 = vld [vmem:[#allocation5 + $0x268] sm:$0xff]
    %v3485 = vld [vmem:[#allocation5 + $0x270] sm:$0xff]
    %v3486 = vld [vmem:[#allocation5 + $0x278] sm:$0xff]
    %v3487 = vld [vmem:[#allocation5 + $0x280] sm:$0xff]
    %v3488 = vld [vmem:[#allocation5 + $0x288] sm:$0xff]
    %v3489 = vld [vmem:[#allocation5 + $0x290] sm:$0xff]
    %v3490 = vld [vmem:[#allocation5 + $0x298] sm:$0xff]
    %v3491 = vld [vmem:[#allocation5 + $0x2a0] sm:$0xff]
    %v3492 = vld [vmem:[#allocation5 + $0x2a8] sm:$0xff]
    %v3493 = vld [vmem:[#allocation5 + $0x2b0] sm:$0xff]
    %v3494 = vld [vmem:[#allocation5 + $0x2b8] sm:$0xff]
    %v3495 = vld [vmem:[#allocation5 + $0x2c0] sm:$0xff]
    %v3496 = vld [vmem:[#allocation5 + $0x2c8] sm:$0xff]
    %v3497 = vld [vmem:[#allocation5 + $0x2d0] sm:$0xff]
    %v3498 = vld [vmem:[#allocation5 + $0x2d8] sm:$0xff]
    %v3499 = vld [vmem:[#allocation5 + $0x2e0] sm:$0xff]
    %v3500 = vld [vmem:[#allocation5 + $0x2e8] sm:$0xff]
    %v3501 = vld [vmem:[#allocation5 + $0x2f0] sm:$0xff]
    %v3502 = vld [vmem:[#allocation5 + $0x2f8] sm:$0xff]
    %v3503 = vld [vmem:[#allocation5 + $0x300] sm:$0xff]
    %v3504 = vld [vmem:[#allocation5 + $0x308] sm:$0xff]
    %v3505 = vld [vmem:[#allocation5 + $0x310] sm:$0xff]
    %v3506 = vld [vmem:[#allocation5 + $0x318] sm:$0xff]
    %v3507 = vld [vmem:[#allocation5 + $0x320] sm:$0xff]
    %v3508 = vld [vmem:[#allocation5 + $0x328] sm:$0xff]
    %v3509 = vld [vmem:[#allocation5 + $0x330] sm:$0xff]
    %v3510 = vld [vmem:[#allocation5 + $0x338] sm:$0xff]
    %v3511 = vld [vmem:[#allocation5 + $0x340] sm:$0xff]
    %v3512 = vld [vmem:[#allocation5 + $0x348] sm:$0xff]
    %v3513 = vld [vmem:[#allocation5 + $0x350] sm:$0xff]
    %v3514 = vld [vmem:[#allocation5 + $0x358] sm:$0xff]
    %v3515 = vld [vmem:[#allocation5 + $0x360] sm:$0xff]
    %v3516 = vld [vmem:[#allocation5 + $0x368] sm:$0xff]
    %v3517 = vld [vmem:[#allocation5 + $0x370] sm:$0xff]
    %v3518 = vld [vmem:[#allocation5 + $0x378] sm:$0xff]
    %v3519 = vld [vmem:[#allocation5 + $0x380] sm:$0xff]
    %v3520 = vld [vmem:[#allocation5 + $0x388] sm:$0xff]
    %v3521 = vld [vmem:[#allocation5 + $0x390] sm:$0xff]
    %v3522 = vld [vmem:[#allocation5 + $0x398] sm:$0xff]
    %v3523 = vld [vmem:[#allocation5 + $0x3a0] sm:$0xff]
    %v3524 = vld [vmem:[#allocation5 + $0x3a8] sm:$0xff]
    %v3525 = vld [vmem:[#allocation5 + $0x3b0] sm:$0xff]
    %v3526 = vld [vmem:[#allocation5 + $0x3b8] sm:$0xff]
    %v3527 = vld [vmem:[#allocation5 + $0x3c0] sm:$0xff]
    %v3528 = vld [vmem:[#allocation5 + $0x3c8] sm:$0xff]
    %v3529 = vld [vmem:[#allocation5 + $0x3d0] sm:$0xff]
    %v3530 = vld [vmem:[#allocation5 + $0x3d8] sm:$0xff]
    %v3531 = vld [vmem:[#allocation5 + $0x3e0] sm:$0xff]
    %v3532 = vld [vmem:[#allocation5 + $0x3e8] sm:$0xff]
    %v3533 = vld [vmem:[#allocation5 + $0x3f0] sm:$0xff]
    %v3534 = vld [vmem:[#allocation5 + $0x3f8] sm:$0xff]
    %v3535 = vld [vmem:[#allocation5 + $0x400] sm:$0xff]
    %v3536 = vld [vmem:[#allocation5 + $0x408] sm:$0xff]
    %v3537 = vld [vmem:[#allocation5 + $0x410] sm:$0xff]
    %v3538 = vld [vmem:[#allocation5 + $0x418] sm:$0xff]
    %v3539 = vld [vmem:[#allocation5 + $0x420] sm:$0xff]
    %v3540 = vld [vmem:[#allocation5 + $0x428] sm:$0xff]
    %v3541 = vld [vmem:[#allocation5 + $0x430] sm:$0xff]
    %v3542 = vld [vmem:[#allocation5 + $0x438] sm:$0xff]
    %v3543 = vld [vmem:[#allocation5 + $0x440] sm:$0xff]
    %v3544 = vld [vmem:[#allocation5 + $0x448] sm:$0xff]
    %v3545 = vld [vmem:[#allocation5 + $0x450] sm:$0xff]
    %v3546 = vld [vmem:[#allocation5 + $0x458] sm:$0xff]
    %v3547 = vld [vmem:[#allocation5 + $0x460] sm:$0xff]
    %v3548 = vld [vmem:[#allocation5 + $0x468] sm:$0xff]
    %v3549 = vld [vmem:[#allocation5 + $0x470] sm:$0xff]
    %v3550 = vld [vmem:[#allocation5 + $0x478] sm:$0xff]
    %v3551 = vld [vmem:[%s12] sm:$0x3f]
    %v3553 = vlaneseq
    %v3554 = vshrl.u32 %v3553, 7
    %v3555 = vsub.s32 0, %v3554
    %v3556 = vrot.slane %v3551, %v3555
    %v3557 = vlaneseq
    %v3558 = vshrl.u32 %v3557, 7
    %v3559 = vsub.s32 1, %v3558
    %v3560 = vrot.slane %v3551, %v3559
    %v3561 = vlaneseq
    %v3562 = vshrl.u32 %v3561, 7
    %v3563 = vsub.s32 2, %v3562
    %v3564 = vrot.slane %v3551, %v3563
    %v3565 = vlaneseq
    %v3566 = vshrl.u32 %v3565, 7
    %v3567 = vsub.s32 3, %v3566
    %v3568 = vrot.slane %v3551, %v3567
    %v3569 = vlaneseq
    %v3570 = vshrl.u32 %v3569, 7
    %v3571 = vsub.s32 4, %v3570
    %v3572 = vrot.slane %v3551, %v3571
    %v3573 = vlaneseq
    %v3574 = vshrl.u32 %v3573, 7
    %v3575 = vsub.s32 5, %v3574
    %v3576 = vrot.slane %v3551, %v3575
    %v3589 = vunpack.c.l.b16 %v3401
    %v3590 = vunpack.c.l.b16 %v3402
    %v3591 = vunpack.c.l.b16 %v3403
    %v3592 = vunpack.c.l.b16 %v3404
    %v3593 = vunpack.c.l.b16 %v3405
    %v3594 = vunpack.c.l.b16 %v3406
    %v3595 = vrot.slane %v3592, 7
    %v3596 = vsel %vm2465, %v3595, %v3589
    %v3597 = vrot.slane %v3593, 7
    %v3598 = vsel %vm2465, %v3597, %v3590
    %v3599 = vrot.slane %v3594, 7
    %v3600 = vsel %vm2465, %v3599, %v3591
    %v3601 = vpack.c.b16 %v3596, %v3596
    %v3602 = vpack.c.b16 %v3598, %v3598
    %v3603 = vpack.c.b16 %v3600, %v3600
    %v3751 = vunpack.c.l.b16 %v3407
    %v3752 = vunpack.c.h.b16 %v3407
    %v3753 = vunpack.c.l.b16 %v3408
    %v3754 = vunpack.c.h.b16 %v3408
    %v3755 = vunpack.c.l.b16 %v3409
    %v3756 = vunpack.c.h.b16 %v3409
    %v3757 = vunpack.c.l.b16 %v3410
    %v3758 = vunpack.c.h.b16 %v3410
    %v3759 = vunpack.c.l.b16 %v3411
    %v3760 = vunpack.c.h.b16 %v3411
    %v3761 = vunpack.c.l.b16 %v3412
    %v3762 = vunpack.c.h.b16 %v3412
    %v3763 = vunpack.c.l.b16 %v3413
    %v3764 = vunpack.c.h.b16 %v3413
    %v3765 = vunpack.c.l.b16 %v3414
    %v3766 = vunpack.c.h.b16 %v3414
    %v3767 = vunpack.c.l.b16 %v3415
    %v3768 = vunpack.c.h.b16 %v3415
    %v3769 = vunpack.c.l.b16 %v3416
    %v3770 = vunpack.c.h.b16 %v3416
    %v3771 = vunpack.c.l.b16 %v3417
    %v3772 = vunpack.c.h.b16 %v3417
    %v3773 = vunpack.c.l.b16 %v3418
    %v3774 = vunpack.c.h.b16 %v3418
    %v3775 = vunpack.c.l.b16 %v3419
    %v3776 = vunpack.c.h.b16 %v3419
    %v3777 = vunpack.c.l.b16 %v3420
    %v3778 = vunpack.c.h.b16 %v3420
    %v3779 = vunpack.c.l.b16 %v3421
    %v3780 = vunpack.c.h.b16 %v3421
    %v3781 = vunpack.c.l.b16 %v3422
    %v3782 = vunpack.c.h.b16 %v3422
    %v3783 = vunpack.c.l.b16 %v3423
    %v3784 = vunpack.c.h.b16 %v3423
    %v3785 = vunpack.c.l.b16 %v3424
    %v3786 = vunpack.c.h.b16 %v3424
    %v3787 = vunpack.c.l.b16 %v3425
    %v3788 = vunpack.c.h.b16 %v3425
    %v3789 = vunpack.c.l.b16 %v3426
    %v3790 = vunpack.c.h.b16 %v3426
    %v3791 = vunpack.c.l.b16 %v3427
    %v3792 = vunpack.c.h.b16 %v3427
    %v3793 = vunpack.c.l.b16 %v3428
    %v3794 = vunpack.c.h.b16 %v3428
    %v3795 = vunpack.c.l.b16 %v3429
    %v3796 = vunpack.c.h.b16 %v3429
    %v3797 = vunpack.c.l.b16 %v3430
    %v3798 = vunpack.c.h.b16 %v3430
    %v3799 = vunpack.c.l.b16 %v3431
    %v3800 = vunpack.c.h.b16 %v3431
    %v3801 = vunpack.c.l.b16 %v3432
    %v3802 = vunpack.c.h.b16 %v3432
    %v3803 = vunpack.c.l.b16 %v3433
    %v3804 = vunpack.c.h.b16 %v3433
    %v3805 = vunpack.c.l.b16 %v3434
    %v3806 = vunpack.c.h.b16 %v3434
    %v3807 = vunpack.c.l.b16 %v3435
    %v3808 = vunpack.c.h.b16 %v3435
    %v3809 = vunpack.c.l.b16 %v3436
    %v3810 = vunpack.c.h.b16 %v3436
    %v3811 = vunpack.c.l.b16 %v3437
    %v3812 = vunpack.c.h.b16 %v3437
    %v3813 = vunpack.c.l.b16 %v3438
    %v3814 = vunpack.c.h.b16 %v3438
    %v3815 = vunpack.c.l.b16 %v3439
    %v3816 = vunpack.c.h.b16 %v3439
    %v3817 = vunpack.c.l.b16 %v3440
    %v3818 = vunpack.c.h.b16 %v3440
    %v3819 = vunpack.c.l.b16 %v3441
    %v3820 = vunpack.c.h.b16 %v3441
    %v3821 = vunpack.c.l.b16 %v3442
    %v3822 = vunpack.c.h.b16 %v3442
    %v3823 = vunpack.c.l.b16 %v3443
    %v3824 = vunpack.c.h.b16 %v3443
    %v3825 = vunpack.c.l.b16 %v3444
    %v3826 = vunpack.c.h.b16 %v3444
    %v3827 = vunpack.c.l.b16 %v3445
    %v3828 = vunpack.c.h.b16 %v3445
    %v3829 = vunpack.c.l.b16 %v3446
    %v3830 = vunpack.c.h.b16 %v3446
    %v3831 = vunpack.c.l.b16 %v3447
    %v3832 = vunpack.c.h.b16 %v3447
    %v3833 = vunpack.c.l.b16 %v3448
    %v3834 = vunpack.c.h.b16 %v3448
    %v3835 = vunpack.c.l.b16 %v3449
    %v3836 = vunpack.c.h.b16 %v3449
    %v3837 = vunpack.c.l.b16 %v3450
    %v3838 = vunpack.c.h.b16 %v3450
    %v3839 = vunpack.c.l.b16 %v3451
    %v3840 = vunpack.c.h.b16 %v3451
    %v3841 = vunpack.c.l.b16 %v3452
    %v3842 = vunpack.c.h.b16 %v3452
    %v3843 = vunpack.c.l.b16 %v3453
    %v3844 = vunpack.c.h.b16 %v3453
    %v3845 = vunpack.c.l.b16 %v3454
    %v3846 = vunpack.c.h.b16 %v3454
    %v3847 = vunpack.c.l.b16 %v3455
    %v3848 = vunpack.c.h.b16 %v3455
    %v3849 = vunpack.c.l.b16 %v3456
    %v3850 = vunpack.c.h.b16 %v3456
    %v3851 = vunpack.c.l.b16 %v3457
    %v3852 = vunpack.c.h.b16 %v3457
    %v3853 = vunpack.c.l.b16 %v3458
    %v3854 = vunpack.c.h.b16 %v3458
    %v3855 = vunpack.c.l.b16 %v3459
    %v3856 = vunpack.c.h.b16 %v3459
    %v3857 = vunpack.c.l.b16 %v3460
    %v3858 = vunpack.c.h.b16 %v3460
    %v3859 = vunpack.c.l.b16 %v3461
    %v3860 = vunpack.c.h.b16 %v3461
    %v3861 = vunpack.c.l.b16 %v3462
    %v3862 = vunpack.c.h.b16 %v3462
    %v3863 = vunpack.c.l.b16 %v3463
    %v3864 = vunpack.c.h.b16 %v3463
    %v3865 = vunpack.c.l.b16 %v3464
    %v3866 = vunpack.c.h.b16 %v3464
    %v3867 = vunpack.c.l.b16 %v3465
    %v3868 = vunpack.c.h.b16 %v3465
    %v3869 = vunpack.c.l.b16 %v3466
    %v3870 = vunpack.c.h.b16 %v3466
    %v3871 = vunpack.c.l.b16 %v3467
    %v3872 = vunpack.c.h.b16 %v3467
    %v3873 = vunpack.c.l.b16 %v3468
    %v3874 = vunpack.c.h.b16 %v3468
    %v3875 = vunpack.c.l.b16 %v3469
    %v3876 = vunpack.c.h.b16 %v3469
    %v3877 = vunpack.c.l.b16 %v3470
    %v3878 = vunpack.c.h.b16 %v3470
    %v3879 = vunpack.c.l.b16 %v3471
    %v3880 = vunpack.c.h.b16 %v3471
    %v3881 = vunpack.c.l.b16 %v3472
    %v3882 = vunpack.c.h.b16 %v3472
    %v3883 = vunpack.c.l.b16 %v3473
    %v3884 = vunpack.c.h.b16 %v3473
    %v3885 = vunpack.c.l.b16 %v3474
    %v3886 = vunpack.c.h.b16 %v3474
    %v3887 = vunpack.c.l.b16 %v3475
    %v3888 = vunpack.c.h.b16 %v3475
    %v3889 = vunpack.c.l.b16 %v3476
    %v3890 = vunpack.c.h.b16 %v3476
    %v3891 = vunpack.c.l.b16 %v3477
    %v3892 = vunpack.c.h.b16 %v3477
    %v3893 = vunpack.c.l.b16 %v3478
    %v3894 = vunpack.c.h.b16 %v3478
    %v3895 = vunpack.c.l.b16 %v3479
    %v3896 = vunpack.c.h.b16 %v3479
    %v3897 = vunpack.c.l.b16 %v3480
    %v3898 = vunpack.c.h.b16 %v3480
    %v3899 = vunpack.c.l.b16 %v3481
    %v3900 = vunpack.c.h.b16 %v3481
    %v3901 = vunpack.c.l.b16 %v3482
    %v3902 = vunpack.c.h.b16 %v3482
    %v3903 = vunpack.c.l.b16 %v3483
    %v3904 = vunpack.c.h.b16 %v3483
    %v3905 = vunpack.c.l.b16 %v3484
    %v3906 = vunpack.c.h.b16 %v3484
    %v3907 = vunpack.c.l.b16 %v3485
    %v3908 = vunpack.c.h.b16 %v3485
    %v3909 = vunpack.c.l.b16 %v3486
    %v3910 = vunpack.c.h.b16 %v3486
    %v3911 = vunpack.c.l.b16 %v3487
    %v3912 = vunpack.c.h.b16 %v3487
    %v3913 = vunpack.c.l.b16 %v3488
    %v3914 = vunpack.c.h.b16 %v3488
    %v3915 = vunpack.c.l.b16 %v3489
    %v3916 = vunpack.c.h.b16 %v3489
    %v3917 = vunpack.c.l.b16 %v3490
    %v3918 = vunpack.c.h.b16 %v3490
    %v3919 = vunpack.c.l.b16 %v3491
    %v3920 = vunpack.c.h.b16 %v3491
    %v3921 = vunpack.c.l.b16 %v3492
    %v3922 = vunpack.c.h.b16 %v3492
    %v3923 = vunpack.c.l.b16 %v3493
    %v3924 = vunpack.c.h.b16 %v3493
    %v3925 = vunpack.c.l.b16 %v3494
    %v3926 = vunpack.c.h.b16 %v3494
    %v3927 = vunpack.c.l.b16 %v3495
    %v3928 = vunpack.c.h.b16 %v3495
    %v3929 = vunpack.c.l.b16 %v3496
    %v3930 = vunpack.c.h.b16 %v3496
    %v3931 = vunpack.c.l.b16 %v3497
    %v3932 = vunpack.c.h.b16 %v3497
    %v3933 = vunpack.c.l.b16 %v3498
    %v3934 = vunpack.c.h.b16 %v3498
    %v3935 = vunpack.c.l.b16 %v3499
    %v3936 = vunpack.c.h.b16 %v3499
    %v3937 = vunpack.c.l.b16 %v3500
    %v3938 = vunpack.c.h.b16 %v3500
    %v3939 = vunpack.c.l.b16 %v3501
    %v3940 = vunpack.c.h.b16 %v3501
    %v3941 = vunpack.c.l.b16 %v3502
    %v3942 = vunpack.c.h.b16 %v3502
    %v3943 = vunpack.c.l.b16 %v3503
    %v3944 = vunpack.c.h.b16 %v3503
    %v3945 = vunpack.c.l.b16 %v3504
    %v3946 = vunpack.c.h.b16 %v3504
    %v3947 = vunpack.c.l.b16 %v3505
    %v3948 = vunpack.c.h.b16 %v3505
    %v3949 = vunpack.c.l.b16 %v3506
    %v3950 = vunpack.c.h.b16 %v3506
    %v3951 = vunpack.c.l.b16 %v3507
    %v3952 = vunpack.c.h.b16 %v3507
    %v3953 = vunpack.c.l.b16 %v3508
    %v3954 = vunpack.c.h.b16 %v3508
    %v3955 = vunpack.c.l.b16 %v3509
    %v3956 = vunpack.c.h.b16 %v3509
    %v3957 = vunpack.c.l.b16 %v3510
    %v3958 = vunpack.c.h.b16 %v3510
    %v3959 = vunpack.c.l.b16 %v3511
    %v3960 = vunpack.c.h.b16 %v3511
    %v3961 = vunpack.c.l.b16 %v3512
    %v3962 = vunpack.c.h.b16 %v3512
    %v3963 = vunpack.c.l.b16 %v3513
    %v3964 = vunpack.c.h.b16 %v3513
    %v3965 = vunpack.c.l.b16 %v3514
    %v3966 = vunpack.c.h.b16 %v3514
    %v3967 = vunpack.c.l.b16 %v3515
    %v3968 = vunpack.c.h.b16 %v3515
    %v3969 = vunpack.c.l.b16 %v3516
    %v3970 = vunpack.c.h.b16 %v3516
    %v3971 = vunpack.c.l.b16 %v3517
    %v3972 = vunpack.c.h.b16 %v3517
    %v3973 = vunpack.c.l.b16 %v3518
    %v3974 = vunpack.c.h.b16 %v3518
    %v3975 = vunpack.c.l.b16 %v3519
    %v3976 = vunpack.c.h.b16 %v3519
    %v3977 = vunpack.c.l.b16 %v3520
    %v3978 = vunpack.c.h.b16 %v3520
    %v3979 = vunpack.c.l.b16 %v3521
    %v3980 = vunpack.c.h.b16 %v3521
    %v3981 = vunpack.c.l.b16 %v3522
    %v3982 = vunpack.c.h.b16 %v3522
    %v3983 = vunpack.c.l.b16 %v3523
    %v3984 = vunpack.c.h.b16 %v3523
    %v3985 = vunpack.c.l.b16 %v3524
    %v3986 = vunpack.c.h.b16 %v3524
    %v3987 = vunpack.c.l.b16 %v3525
    %v3988 = vunpack.c.h.b16 %v3525
    %v3989 = vunpack.c.l.b16 %v3526
    %v3990 = vunpack.c.h.b16 %v3526
    %v3991 = vunpack.c.l.b16 %v3527
    %v3992 = vunpack.c.h.b16 %v3527
    %v3993 = vunpack.c.l.b16 %v3528
    %v3994 = vunpack.c.h.b16 %v3528
    %v3995 = vunpack.c.l.b16 %v3529
    %v3996 = vunpack.c.h.b16 %v3529
    %v3997 = vunpack.c.l.b16 %v3530
    %v3998 = vunpack.c.h.b16 %v3530
    %v3999 = vunpack.c.l.b16 %v3531
    %v4000 = vunpack.c.h.b16 %v3531
    %v4001 = vunpack.c.l.b16 %v3532
    %v4002 = vunpack.c.h.b16 %v3532
    %v4003 = vunpack.c.l.b16 %v3533
    %v4004 = vunpack.c.h.b16 %v3533
    %v4005 = vunpack.c.l.b16 %v3534
    %v4006 = vunpack.c.h.b16 %v3534
    %v4007 = vunpack.c.l.b16 %v3535
    %v4008 = vunpack.c.h.b16 %v3535
    %v4009 = vunpack.c.l.b16 %v3536
    %v4010 = vunpack.c.h.b16 %v3536
    %v4011 = vunpack.c.l.b16 %v3537
    %v4012 = vunpack.c.h.b16 %v3537
    %v4013 = vunpack.c.l.b16 %v3538
    %v4014 = vunpack.c.h.b16 %v3538
    %v4015 = vunpack.c.l.b16 %v3539
    %v4016 = vunpack.c.h.b16 %v3539
    %v4017 = vunpack.c.l.b16 %v3540
    %v4018 = vunpack.c.h.b16 %v3540
    %v4019 = vunpack.c.l.b16 %v3541
    %v4020 = vunpack.c.h.b16 %v3541
    %v4021 = vunpack.c.l.b16 %v3542
    %v4022 = vunpack.c.h.b16 %v3542
    %v4023 = vunpack.c.l.b16 %v3543
    %v4024 = vunpack.c.h.b16 %v3543
    %v4025 = vunpack.c.l.b16 %v3544
    %v4026 = vunpack.c.h.b16 %v3544
    %v4027 = vunpack.c.l.b16 %v3545
    %v4028 = vunpack.c.h.b16 %v3545
    %v4029 = vunpack.c.l.b16 %v3546
    %v4030 = vunpack.c.h.b16 %v3546
    %v4031 = vunpack.c.l.b16 %v3547
    %v4032 = vunpack.c.h.b16 %v3547
    %v4033 = vunpack.c.l.b16 %v3548
    %v4034 = vunpack.c.h.b16 %v3548
    %v4035 = vunpack.c.l.b16 %v3549
    %v4036 = vunpack.c.h.b16 %v3549
    %v4037 = vunpack.c.l.b16 %v3550
    %v4038 = vunpack.c.h.b16 %v3550
    %v4039 = vpack.c.b16 %v3757, %v3751
    %v4040 = vpack.c.b16 %v3758, %v3752
    %v4041 = vpack.c.b16 %v3759, %v3753
    %v4042 = vpack.c.b16 %v3760, %v3754
    %v4043 = vpack.c.b16 %v3761, %v3755
    %v4044 = vpack.c.b16 %v3762, %v3756
    %v4045 = vpack.c.b16 %v3769, %v3763
    %v4046 = vpack.c.b16 %v3770, %v3764
    %v4047 = vpack.c.b16 %v3771, %v3765
    %v4048 = vpack.c.b16 %v3772, %v3766
    %v4049 = vpack.c.b16 %v3773, %v3767
    %v4050 = vpack.c.b16 %v3774, %v3768
    %v4051 = vpack.c.b16 %v3781, %v3775
    %v4052 = vpack.c.b16 %v3782, %v3776
    %v4053 = vpack.c.b16 %v3783, %v3777
    %v4054 = vpack.c.b16 %v3784, %v3778
    %v4055 = vpack.c.b16 %v3785, %v3779
    %v4056 = vpack.c.b16 %v3786, %v3780
    %v4057 = vpack.c.b16 %v3793, %v3787
    %v4058 = vpack.c.b16 %v3794, %v3788
    %v4059 = vpack.c.b16 %v3795, %v3789
    %v4060 = vpack.c.b16 %v3796, %v3790
    %v4061 = vpack.c.b16 %v3797, %v3791
    %v4062 = vpack.c.b16 %v3798, %v3792
    %v4063 = vpack.c.b16 %v3805, %v3799
    %v4064 = vpack.c.b16 %v3806, %v3800
    %v4065 = vpack.c.b16 %v3807, %v3801
    %v4066 = vpack.c.b16 %v3808, %v3802
    %v4067 = vpack.c.b16 %v3809, %v3803
    %v4068 = vpack.c.b16 %v3810, %v3804
    %v4069 = vpack.c.b16 %v3817, %v3811
    %v4070 = vpack.c.b16 %v3818, %v3812
    %v4071 = vpack.c.b16 %v3819, %v3813
    %v4072 = vpack.c.b16 %v3820, %v3814
    %v4073 = vpack.c.b16 %v3821, %v3815
    %v4074 = vpack.c.b16 %v3822, %v3816
    %v4075 = vpack.c.b16 %v3829, %v3823
    %v4076 = vpack.c.b16 %v3830, %v3824
    %v4077 = vpack.c.b16 %v3831, %v3825
    %v4078 = vpack.c.b16 %v3832, %v3826
    %v4079 = vpack.c.b16 %v3833, %v3827
    %v4080 = vpack.c.b16 %v3834, %v3828
    %v4081 = vpack.c.b16 %v3841, %v3835
    %v4082 = vpack.c.b16 %v3842, %v3836
    %v4083 = vpack.c.b16 %v3843, %v3837
    %v4084 = vpack.c.b16 %v3844, %v3838
    %v4085 = vpack.c.b16 %v3845, %v3839
    %v4086 = vpack.c.b16 %v3846, %v3840
    %v4087 = vpack.c.b16 %v3853, %v3847
    %v4088 = vpack.c.b16 %v3854, %v3848
    %v4089 = vpack.c.b16 %v3855, %v3849
    %v4090 = vpack.c.b16 %v3856, %v3850
    %v4091 = vpack.c.b16 %v3857, %v3851
    %v4092 = vpack.c.b16 %v3858, %v3852
    %v4093 = vpack.c.b16 %v3865, %v3859
    %v4094 = vpack.c.b16 %v3866, %v3860
    %v4095 = vpack.c.b16 %v3867, %v3861
    %v4096 = vpack.c.b16 %v3868, %v3862
    %v4097 = vpack.c.b16 %v3869, %v3863
    %v4098 = vpack.c.b16 %v3870, %v3864
    %v4099 = vpack.c.b16 %v3877, %v3871
    %v4100 = vpack.c.b16 %v3878, %v3872
    %v4101 = vpack.c.b16 %v3879, %v3873
    %v4102 = vpack.c.b16 %v3880, %v3874
    %v4103 = vpack.c.b16 %v3881, %v3875
    %v4104 = vpack.c.b16 %v3882, %v3876
    %v4105 = vpack.c.b16 %v3889, %v3883
    %v4106 = vpack.c.b16 %v3890, %v3884
    %v4107 = vpack.c.b16 %v3891, %v3885
    %v4108 = vpack.c.b16 %v3892, %v3886
    %v4109 = vpack.c.b16 %v3893, %v3887
    %v4110 = vpack.c.b16 %v3894, %v3888
    %v4111 = vpack.c.b16 %v3901, %v3895
    %v4112 = vpack.c.b16 %v3902, %v3896
    %v4113 = vpack.c.b16 %v3903, %v3897
    %v4114 = vpack.c.b16 %v3904, %v3898
    %v4115 = vpack.c.b16 %v3905, %v3899
    %v4116 = vpack.c.b16 %v3906, %v3900
    %v4117 = vpack.c.b16 %v3913, %v3907
    %v4118 = vpack.c.b16 %v3914, %v3908
    %v4119 = vpack.c.b16 %v3915, %v3909
    %v4120 = vpack.c.b16 %v3916, %v3910
    %v4121 = vpack.c.b16 %v3917, %v3911
    %v4122 = vpack.c.b16 %v3918, %v3912
    %v4123 = vpack.c.b16 %v3925, %v3919
    %v4124 = vpack.c.b16 %v3926, %v3920
    %v4125 = vpack.c.b16 %v3927, %v3921
    %v4126 = vpack.c.b16 %v3928, %v3922
    %v4127 = vpack.c.b16 %v3929, %v3923
    %v4128 = vpack.c.b16 %v3930, %v3924
    %v4129 = vpack.c.b16 %v3937, %v3931
    %v4130 = vpack.c.b16 %v3938, %v3932
    %v4131 = vpack.c.b16 %v3939, %v3933
    %v4132 = vpack.c.b16 %v3940, %v3934
    %v4133 = vpack.c.b16 %v3941, %v3935
    %v4134 = vpack.c.b16 %v3942, %v3936
    %v4135 = vpack.c.b16 %v3949, %v3943
    %v4136 = vpack.c.b16 %v3950, %v3944
    %v4137 = vpack.c.b16 %v3951, %v3945
    %v4138 = vpack.c.b16 %v3952, %v3946
    %v4139 = vpack.c.b16 %v3953, %v3947
    %v4140 = vpack.c.b16 %v3954, %v3948
    %v4141 = vpack.c.b16 %v3961, %v3955
    %v4142 = vpack.c.b16 %v3962, %v3956
    %v4143 = vpack.c.b16 %v3963, %v3957
    %v4144 = vpack.c.b16 %v3964, %v3958
    %v4145 = vpack.c.b16 %v3965, %v3959
    %v4146 = vpack.c.b16 %v3966, %v3960
    %v4147 = vpack.c.b16 %v3973, %v3967
    %v4148 = vpack.c.b16 %v3974, %v3968
    %v4149 = vpack.c.b16 %v3975, %v3969
    %v4150 = vpack.c.b16 %v3976, %v3970
    %v4151 = vpack.c.b16 %v3977, %v3971
    %v4152 = vpack.c.b16 %v3978, %v3972
    %v4153 = vpack.c.b16 %v3985, %v3979
    %v4154 = vpack.c.b16 %v3986, %v3980
    %v4155 = vpack.c.b16 %v3987, %v3981
    %v4156 = vpack.c.b16 %v3988, %v3982
    %v4157 = vpack.c.b16 %v3989, %v3983
    %v4158 = vpack.c.b16 %v3990, %v3984
    %v4159 = vpack.c.b16 %v3997, %v3991
    %v4160 = vpack.c.b16 %v3998, %v3992
    %v4161 = vpack.c.b16 %v3999, %v3993
    %v4162 = vpack.c.b16 %v4000, %v3994
    %v4163 = vpack.c.b16 %v4001, %v3995
    %v4164 = vpack.c.b16 %v4002, %v3996
    %v4165 = vpack.c.b16 %v4009, %v4003
    %v4166 = vpack.c.b16 %v4010, %v4004
    %v4167 = vpack.c.b16 %v4011, %v4005
    %v4168 = vpack.c.b16 %v4012, %v4006
    %v4169 = vpack.c.b16 %v4013, %v4007
    %v4170 = vpack.c.b16 %v4014, %v4008
    %v4171 = vpack.c.b16 %v4021, %v4015
    %v4172 = vpack.c.b16 %v4022, %v4016
    %v4173 = vpack.c.b16 %v4023, %v4017
    %v4174 = vpack.c.b16 %v4024, %v4018
    %v4175 = vpack.c.b16 %v4025, %v4019
    %v4176 = vpack.c.b16 %v4026, %v4020
    %v4177 = vpack.c.b16 %v4033, %v4027
    %v4178 = vpack.c.b16 %v4034, %v4028
    %v4179 = vpack.c.b16 %v4035, %v4029
    %v4180 = vpack.c.b16 %v4036, %v4030
    %v4181 = vpack.c.b16 %v4037, %v4031
    %v4182 = vpack.c.b16 %v4038, %v4032
    %4327 = vmatprep.subr.bf16.mxu0 %v4082
    %4328 = vmatpush1.bf16.msra.mxu0 %v4081
    %4329 = vmatprep.subr.bf16.mxu0 %v4076
    %4330 = vmatpush1.bf16.msra.mxu0 %v4075
    %4331 = vmatprep.subr.bf16.mxu0 %v4070
    %4332 = vmatpush1.bf16.msra.mxu0 %v4069
    %4333 = vmatprep.subr.bf16.mxu0 %v4064
    %4334 = vmatpush1.bf16.msra.mxu0 %v4063
    %4335 = vmatprep.subr.bf16.mxu0 %v4058
    %4336 = vmatpush1.bf16.msra.mxu0 %v4057
    %4337 = vmatprep.subr.bf16.mxu0 %v4052
    %4338 = vmatpush1.bf16.msra.mxu0 %v4051
    %4339 = vmatprep.subr.bf16.mxu0 %v4046
    %4340 = vmatpush1.bf16.msra.mxu0 %v4045
    %4341 = vmatprep.subr.bf16.mxu0 %v4040
    %4342 = vmatpush1.bf16.msra.mxu0 %v4039
    %4343 = vmatprep.subr.bf16.mxu0 %v4130
    %4344 = vmatpush2.bf16.msra.mxu0 %v4129
    %4345 = vmatprep.subr.bf16.mxu0 %v4124
    %4346 = vmatpush2.bf16.msra.mxu0 %v4123
    %4347 = vmatprep.subr.bf16.mxu0 %v4118
    %4348 = vmatpush2.bf16.msra.mxu0 %v4117
    %4349 = vmatprep.subr.bf16.mxu0 %v4112
    %4350 = vmatpush2.bf16.msra.mxu0 %v4111
    %4351 = vmatprep.subr.bf16.mxu0 %v4106
    %4352 = vmatpush2.bf16.msra.mxu0 %v4105
    %4353 = vmatprep.subr.bf16.mxu0 %v4100
    %4354 = vmatpush2.bf16.msra.mxu0 %v4099
    %4355 = vmatprep.subr.bf16.mxu0 %v4094
    %4356 = vmatpush2.bf16.msra.mxu0 %v4093
    %4357 = vmatprep.subr.bf16.mxu0 %v4088
    %4358 = vmatpush2.bf16.msra.mxu0 %v4087
    %4359 = vmatprep.mubr.bf16.mxu0 %v3602
    %4360 = vmatmul.mubr.bf16.gmra.mxu0 %v3601
    %v4361 = vpop.f32.mrf.mxu0
    %v4362 = vadd.f32 %v3556, %v4361
    %v4363 = vpop.f32.mrf.mxu0
    %v4364 = vadd.f32 %v3560, %v4363
    %v4365 = vpop.f32.mrf.mxu0
    %v4366 = vpop.f32.mrf.mxu0
    %4367 = vdwg.mxu0
    %4368 = vmatprep.subr.bf16.mxu0 %v4178
    %4369 = vmatpush1.bf16.msra.mxu0 %v4177
    %4370 = vmatprep.subr.bf16.mxu0 %v4172
    %4371 = vmatpush1.bf16.msra.mxu0 %v4171
    %4372 = vmatprep.subr.bf16.mxu0 %v4166
    %4373 = vmatpush1.bf16.msra.mxu0 %v4165
    %4374 = vmatprep.subr.bf16.mxu0 %v4160
    %4375 = vmatpush1.bf16.msra.mxu0 %v4159
    %4376 = vmatprep.subr.bf16.mxu0 %v4154
    %4377 = vmatpush1.bf16.msra.mxu0 %v4153
    %4378 = vmatprep.subr.bf16.mxu0 %v4148
    %4379 = vmatpush1.bf16.msra.mxu0 %v4147
    %4380 = vmatprep.subr.bf16.mxu0 %v4142
    %4381 = vmatpush1.bf16.msra.mxu0 %v4141
    %4382 = vmatprep.subr.bf16.mxu0 %v4136
    %4383 = vmatpush1.bf16.msra.mxu0 %v4135
    %4384 = vmatprep.subr.bf16.mxu0 0
    %4385 = vmatpush2.bf16.msra.mxu0 0
    %4386 = vmatprep.subr.bf16.mxu0 0
    %4387 = vmatpush2.bf16.msra.mxu0 0
    %4388 = vmatprep.subr.bf16.mxu0 0
    %4389 = vmatpush2.bf16.msra.mxu0 0
    %4390 = vmatprep.subr.bf16.mxu0 0
    %4391 = vmatpush2.bf16.msra.mxu0 0
    %4392 = vmatprep.subr.bf16.mxu0 0
    %4393 = vmatpush2.bf16.msra.mxu0 0
    %4394 = vmatprep.subr.bf16.mxu0 0
    %4395 = vmatpush2.bf16.msra.mxu0 0
    %4396 = vmatprep.subr.bf16.mxu0 0
    %4397 = vmatpush2.bf16.msra.mxu0 0
    %4398 = vmatprep.subr.bf16.mxu0 0
    %4399 = vmatpush2.bf16.msra.mxu0 0
    %4400 = vmatprep.mubr.bf16.mxu0 0
    %4401 = vmatmul.mubr.bf16.gmra.mxu0 %v3603
    %v4402 = vpop.f32.mrf.mxu0
    %v4403 = vadd.f32 %v4362, %v4402
    %v4404 = vpop.f32.mrf.mxu0
    %v4405 = vadd.f32 %v4364, %v4404
    %v4406 = vpop.f32.mrf.mxu0
    %v4407 = vpop.f32.mrf.mxu0
    %4408 = vdwg.mxu0
    %4409 = vmatprep.subr.bf16.mxu0 %v4084
    %4410 = vmatpush1.bf16.msra.mxu0 %v4083
    %4411 = vmatprep.subr.bf16.mxu0 %v4078
    %4412 = vmatpush1.bf16.msra.mxu0 %v4077
    %4413 = vmatprep.subr.bf16.mxu0 %v4072
    %4414 = vmatpush1.bf16.msra.mxu0 %v4071
    %4415 = vmatprep.subr.bf16.mxu0 %v4066
    %4416 = vmatpush1.bf16.msra.mxu0 %v4065
    %4417 = vmatprep.subr.bf16.mxu0 %v4060
    %4418 = vmatpush1.bf16.msra.mxu0 %v4059
    %4419 = vmatprep.subr.bf16.mxu0 %v4054
    %4420 = vmatpush1.bf16.msra.mxu0 %v4053
    %4421 = vmatprep.subr.bf16.mxu0 %v4048
    %4422 = vmatpush1.bf16.msra.mxu0 %v4047
    %4423 = vmatprep.subr.bf16.mxu0 %v4042
    %4424 = vmatpush1.bf16.msra.mxu0 %v4041
    %4425 = vmatprep.subr.bf16.mxu0 %v4132
    %4426 = vmatpush2.bf16.msra.mxu0 %v4131
    %4427 = vmatprep.subr.bf16.mxu0 %v4126
    %4428 = vmatpush2.bf16.msra.mxu0 %v4125
    %4429 = vmatprep.subr.bf16.mxu0 %v4120
    %4430 = vmatpush2.bf16.msra.mxu0 %v4119
    %4431 = vmatprep.subr.bf16.mxu0 %v4114
    %4432 = vmatpush2.bf16.msra.mxu0 %v4113
    %4433 = vmatprep.subr.bf16.mxu0 %v4108
    %4434 = vmatpush2.bf16.msra.mxu0 %v4107
    %4435 = vmatprep.subr.bf16.mxu0 %v4102
    %4436 = vmatpush2.bf16.msra.mxu0 %v4101
    %4437 = vmatprep.subr.bf16.mxu0 %v4096
    %4438 = vmatpush2.bf16.msra.mxu0 %v4095
    %4439 = vmatprep.subr.bf16.mxu0 %v4090
    %4440 = vmatpush2.bf16.msra.mxu0 %v4089
    %4441 = vmatprep.mubr.bf16.mxu0 %v3602
    %4442 = vmatmul.mubr.bf16.gmra.mxu0 %v3601
    %v4443 = vpop.f32.mrf.mxu0
    %v4444 = vadd.f32 %v3564, %v4443
    %v4445 = vpop.f32.mrf.mxu0
    %v4446 = vadd.f32 %v3568, %v4445
    %v4447 = vpop.f32.mrf.mxu0
    %v4448 = vpop.f32.mrf.mxu0
    %4449 = vdwg.mxu0
    %4450 = vmatprep.subr.bf16.mxu0 %v4180
    %4451 = vmatpush1.bf16.msra.mxu0 %v4179
    %4452 = vmatprep.subr.bf16.mxu0 %v4174
    %4453 = vmatpush1.bf16.msra.mxu0 %v4173
    %4454 = vmatprep.subr.bf16.mxu0 %v4168
    %4455 = vmatpush1.bf16.msra.mxu0 %v4167
    %4456 = vmatprep.subr.bf16.mxu0 %v4162
    %4457 = vmatpush1.bf16.msra.mxu0 %v4161
    %4458 = vmatprep.subr.bf16.mxu0 %v4156
    %4459 = vmatpush1.bf16.msra.mxu0 %v4155
    %4460 = vmatprep.subr.bf16.mxu0 %v4150
    %4461 = vmatpush1.bf16.msra.mxu0 %v4149
    %4462 = vmatprep.subr.bf16.mxu0 %v4144
    %4463 = vmatpush1.bf16.msra.mxu0 %v4143
    %4464 = vmatprep.subr.bf16.mxu0 %v4138
    %4465 = vmatpush1.bf16.msra.mxu0 %v4137
    %4466 = vmatprep.subr.bf16.mxu0 0
    %4467 = vmatpush2.bf16.msra.mxu0 0
    %4468 = vmatprep.subr.bf16.mxu0 0
    %4469 = vmatpush2.bf16.msra.mxu0 0
    %4470 = vmatprep.subr.bf16.mxu0 0
    %4471 = vmatpush2.bf16.msra.mxu0 0
    %4472 = vmatprep.subr.bf16.mxu0 0
    %4473 = vmatpush2.bf16.msra.mxu0 0
    %4474 = vmatprep.subr.bf16.mxu0 0
    %4475 = vmatpush2.bf16.msra.mxu0 0
    %4476 = vmatprep.subr.bf16.mxu0 0
    %4477 = vmatpush2.bf16.msra.mxu0 0
    %4478 = vmatprep.subr.bf16.mxu0 0
    %4479 = vmatpush2.bf16.msra.mxu0 0
    %4480 = vmatprep.subr.bf16.mxu0 0
    %4481 = vmatpush2.bf16.msra.mxu0 0
    %4482 = vmatprep.mubr.bf16.mxu0 0
    %4483 = vmatmul.mubr.bf16.gmra.mxu0 %v3603
    %v4484 = vpop.f32.mrf.mxu0
    %v4485 = vadd.f32 %v4444, %v4484
    %v4486 = vpop.f32.mrf.mxu0
    %v4487 = vadd.f32 %v4446, %v4486
    %v4488 = vpop.f32.mrf.mxu0
    %v4489 = vpop.f32.mrf.mxu0
    %4490 = vdwg.mxu0
    %4491 = vmatprep.subr.bf16.mxu0 %v4086
    %4492 = vmatpush1.bf16.msra.mxu0 %v4085
    %4493 = vmatprep.subr.bf16.mxu0 %v4080
    %4494 = vmatpush1.bf16.msra.mxu0 %v4079
    %4495 = vmatprep.subr.bf16.mxu0 %v4074
    %4496 = vmatpush1.bf16.msra.mxu0 %v4073
    %4497 = vmatprep.subr.bf16.mxu0 %v4068
    %4498 = vmatpush1.bf16.msra.mxu0 %v4067
    %4499 = vmatprep.subr.bf16.mxu0 %v4062
    %4500 = vmatpush1.bf16.msra.mxu0 %v4061
    %4501 = vmatprep.subr.bf16.mxu0 %v4056
    %4502 = vmatpush1.bf16.msra.mxu0 %v4055
    %4503 = vmatprep.subr.bf16.mxu0 %v4050
    %4504 = vmatpush1.bf16.msra.mxu0 %v4049
    %4505 = vmatprep.subr.bf16.mxu0 %v4044
    %4506 = vmatpush1.bf16.msra.mxu0 %v4043
    %4507 = vmatprep.subr.bf16.mxu0 %v4134
    %4508 = vmatpush2.bf16.msra.mxu0 %v4133
    %4509 = vmatprep.subr.bf16.mxu0 %v4128
    %4510 = vmatpush2.bf16.msra.mxu0 %v4127
    %4511 = vmatprep.subr.bf16.mxu0 %v4122
    %4512 = vmatpush2.bf16.msra.mxu0 %v4121
    %4513 = vmatprep.subr.bf16.mxu0 %v4116
    %4514 = vmatpush2.bf16.msra.mxu0 %v4115
    %4515 = vmatprep.subr.bf16.mxu0 %v4110
    %4516 = vmatpush2.bf16.msra.mxu0 %v4109
    %4517 = vmatprep.subr.bf16.mxu0 %v4104
    %4518 = vmatpush2.bf16.msra.mxu0 %v4103
    %4519 = vmatprep.subr.bf16.mxu0 %v4098
    %4520 = vmatpush2.bf16.msra.mxu0 %v4097
    %4521 = vmatprep.subr.bf16.mxu0 %v4092
    %4522 = vmatpush2.bf16.msra.mxu0 %v4091
    %4523 = vmatprep.mubr.bf16.mxu0 %v3602
    %4524 = vmatmul.mubr.bf16.gmra.mxu0 %v3601
    %v4525 = vpop.f32.mrf.mxu0
    %v4526 = vadd.f32 %v3572, %v4525
    %v4527 = vpop.f32.mrf.mxu0
    %v4528 = vadd.f32 %v3576, %v4527
    %v4529 = vpop.f32.mrf.mxu0
    %v4530 = vpop.f32.mrf.mxu0
    %4531 = vdwg.mxu0
    %4532 = vmatprep.subr.bf16.mxu0 %v4182
    %4533 = vmatpush1.bf16.msra.mxu0 %v4181
    %4534 = vmatprep.subr.bf16.mxu0 %v4176
    %4535 = vmatpush1.bf16.msra.mxu0 %v4175
    %4536 = vmatprep.subr.bf16.mxu0 %v4170
    %4537 = vmatpush1.bf16.msra.mxu0 %v4169
    %4538 = vmatprep.subr.bf16.mxu0 %v4164
    %4539 = vmatpush1.bf16.msra.mxu0 %v4163
    %4540 = vmatprep.subr.bf16.mxu0 %v4158
    %4541 = vmatpush1.bf16.msra.mxu0 %v4157
    %4542 = vmatprep.subr.bf16.mxu0 %v4152
    %4543 = vmatpush1.bf16.msra.mxu0 %v4151
    %4544 = vmatprep.subr.bf16.mxu0 %v4146
    %4545 = vmatpush1.bf16.msra.mxu0 %v4145
    %4546 = vmatprep.subr.bf16.mxu0 %v4140
    %4547 = vmatpush1.bf16.msra.mxu0 %v4139
    %4548 = vmatprep.subr.bf16.mxu0 0
    %4549 = vmatpush2.bf16.msra.mxu0 0
    %4550 = vmatprep.subr.bf16.mxu0 0
    %4551 = vmatpush2.bf16.msra.mxu0 0
    %4552 = vmatprep.subr.bf16.mxu0 0
    %4553 = vmatpush2.bf16.msra.mxu0 0
    %4554 = vmatprep.subr.bf16.mxu0 0
    %4555 = vmatpush2.bf16.msra.mxu0 0
    %4556 = vmatprep.subr.bf16.mxu0 0
    %4557 = vmatpush2.bf16.msra.mxu0 0
    %4558 = vmatprep.subr.bf16.mxu0 0
    %4559 = vmatpush2.bf16.msra.mxu0 0
    %4560 = vmatprep.subr.bf16.mxu0 0
    %4561 = vmatpush2.bf16.msra.mxu0 0
    %4562 = vmatprep.subr.bf16.mxu0 0
    %4563 = vmatpush2.bf16.msra.mxu0 0
    %4564 = vmatprep.mubr.bf16.mxu0 0
    %4565 = vmatmul.mubr.bf16.gmra.mxu0 %v3603
    %v4566 = vpop.f32.mrf.mxu0
    %v4567 = vadd.f32 %v4526, %v4566
    %v4568 = vpop.f32.mrf.mxu0
    %v4569 = vadd.f32 %v4528, %v4568
    %v4570 = vpop.f32.mrf.mxu0
    %v4571 = vpop.f32.mrf.mxu0
    %4572 = vdwg.mxu0
    %v4573 = vmul.f32 %v258, %v258
    %v4574 = vmul.f32 %v260, %v260
    %v4575 = vmul.f32 %v299, %v299
    %v4576 = vmul.f32 %v301, %v301
    %v4577 = vmul.f32 %v340, %v340
    %v4578 = vmul.f32 %v342, %v342
    %v4579 = vsel %vm3278, %v4573, 0.0
    %v4580 = vsel %vm3278, %v4574, 0.0
    %v4581 = vadd.f32 %v4579, %v4580
    %v4582 = vsel %vm3278, %v4575, 0.0
    %v4583 = vadd.f32 %v4581, %v4582
    %v4584 = vsel %vm3278, %v4576, 0.0
    %v4585 = vadd.f32 %v4583, %v4584
    %v4586 = vsel %vm3278, %v4577, 0.0
    %v4587 = vadd.f32 %v4585, %v4586
    %v4588 = vsel %vm3278, %v4578, 0.0
    %v4589 = vadd.f32 %v4587, %v4588
    %4590 = vadd.xlane.f32.xlu0 %v4589
    %v4591 = vpop.xlane.xlu0 %4590
    %v4592 = vadd.f32 %v4591, 1e-12
    %v4593 = vrsqrt.pop %v4592
    %v4594 = vmul.f32 %v258, %v4593
    %v4595 = vmul.f32 %v260, %v4593
    %v4596 = vmul.f32 %v299, %v4593
    %v4597 = vmul.f32 %v301, %v4593
    %v4598 = vmul.f32 %v340, %v4593
    %v4599 = vmul.f32 %v342, %v4593
    %v4600 = vmul.f32 %v4403, %v4403
    %v4601 = vmul.f32 %v4405, %v4405
    %v4602 = vmul.f32 %v4485, %v4485
    %v4603 = vmul.f32 %v4487, %v4487
    %v4604 = vmul.f32 %v4567, %v4567
    %v4605 = vmul.f32 %v4569, %v4569
    %v4606 = vsel %vm3278, %v4600, 0.0
    %v4607 = vsel %vm3278, %v4601, 0.0
    %v4608 = vadd.f32 %v4606, %v4607
    %v4609 = vsel %vm3278, %v4602, 0.0
    %v4610 = vadd.f32 %v4608, %v4609
    %v4611 = vsel %vm3278, %v4603, 0.0
    %v4612 = vadd.f32 %v4610, %v4611
    %v4613 = vsel %vm3278, %v4604, 0.0
    %v4614 = vadd.f32 %v4612, %v4613
    %v4615 = vsel %vm3278, %v4605, 0.0
    %v4616 = vadd.f32 %v4614, %v4615
    %4617 = vadd.xlane.f32.xlu0 %v4616
    %v4618 = vpop.xlane.xlu0 %4617
    %v4619 = vadd.f32 %v4618, 1e-12
    %v4620 = vrsqrt.pop %v4619
    %v4621 = vmul.f32 %v4403, %v4620
    %v4622 = vmul.f32 %v4405, %v4620
    %v4623 = vmul.f32 %v4485, %v4620
    %v4624 = vmul.f32 %v4487, %v4620
    %v4625 = vmul.f32 %v4567, %v4620
    %v4626 = vmul.f32 %v4569, %v4620
    %s4627 = sld [smem:[#allocation2]]
    %4628 = vmatprep.subr.mxu0 0.0
    %4629 = vmatpush1.xpose.msra.mxu0 0.0
    %4630 = vmatprep.subr.mxu0 0.0
    %4631 = vmatpush1.xpose.msra.mxu0 0.0
    %4632 = vmatprep.subr.mxu0 0.0
    %4633 = vmatpush1.xpose.msra.mxu0 0.0
    %4634 = vmatprep.subr.mxu0 0.0
    %4635 = vmatpush1.xpose.msra.mxu0 0.0
    %4636 = vmatprep.subr.mxu0 0.0
    %4637 = vmatpush1.xpose.msra.mxu0 0.0
    %4638 = vmatprep.subr.mxu0 0.0
    %4639 = vmatpush1.xpose.msra.mxu0 0.0
    %4640 = vmatprep.subr.mxu0 0.0
    %4641 = vmatpush1.xpose.msra.mxu0 0.0
    %4642 = vmatprep.subr.mxu0 0.0
    %4643 = vmatpush1.xpose.msra.mxu0 0.0
    %4644 = vmatprep.subr.mxu0 0.0
    %4645 = vmatpush1.xpose.msra.mxu0 0.0
    %4646 = vmatprep.subr.mxu0 0.0
    %4647 = vmatpush1.xpose.msra.mxu0 0.0
    %4648 = vmatprep.subr.mxu0 0.0
    %4649 = vmatpush1.xpose.msra.mxu0 0.0
    %4650 = vmatprep.subr.mxu0 0.0
    %4651 = vmatpush1.xpose.msra.mxu0 0.0
    %4652 = vmatprep.subr.mxu0 0.0
    %4653 = vmatpush1.xpose.msra.mxu0 0.0
    %4654 = vmatprep.subr.mxu0 0.0
    %4655 = vmatpush1.xpose.msra.mxu0 0.0
    %4656 = vmatprep.subr.mxu0 0.0
    %4657 = vmatpush1.xpose.msra.mxu0 0.0
    %4658 = vmatprep.subr.mxu0 %v4622
    %4659 = vmatpush1.xpose.msra.mxu0 %v4621
    %4660 = vmatprep.subr.mxu0 0.0
    %4661 = vmatpush2.xpose.msra.mxu0 0.0
    %4662 = vmatprep.subr.mxu0 0.0
    %4663 = vmatpush2.xpose.msra.mxu0 0.0
    %4664 = vmatprep.subr.mxu0 0.0
    %4665 = vmatpush2.xpose.msra.mxu0 0.0
    %4666 = vmatprep.subr.mxu0 0.0
    %4667 = vmatpush2.xpose.msra.mxu0 0.0
    %4668 = vmatprep.subr.mxu0 0.0
    %4669 = vmatpush2.xpose.msra.mxu0 0.0
    %4670 = vmatprep.subr.mxu0 0.0
    %4671 = vmatpush2.xpose.msra.mxu0 0.0
    %4672 = vmatprep.subr.mxu0 0.0
    %4673 = vmatpush2.xpose.msra.mxu0 0.0
    %4674 = vmatprep.subr.mxu0 0.0
    %4675 = vmatpush2.xpose.msra.mxu0 0.0
    %4676 = vmatprep.subr.mxu0 0.0
    %4677 = vmatpush2.xpose.msra.mxu0 0.0
    %4678 = vmatprep.subr.mxu0 0.0
    %4679 = vmatpush2.xpose.msra.mxu0 0.0
    %4680 = vmatprep.subr.mxu0 0.0
    %4681 = vmatpush2.xpose.msra.mxu0 0.0
    %4682 = vmatprep.subr.mxu0 0.0
    %4683 = vmatpush2.xpose.msra.mxu0 0.0
    %4684 = vmatprep.subr.mxu0 0.0
    %4685 = vmatpush2.xpose.msra.mxu0 0.0
    %4686 = vmatprep.subr.mxu0 0.0
    %4687 = vmatpush2.xpose.msra.mxu0 0.0
    %4688 = vmatprep.subr.mxu0 0.0
    %4689 = vmatpush2.xpose.msra.mxu0 0.0
    %4690 = vmatprep.subr.mxu0 0.0
    %4691 = vmatpush2.xpose.msra.mxu0 0.0
    %4692 = vmatprep.mubr.f32.mxu0 %v4595
    %4693 = vmatmul.mubr.f32.gmra.mxu0 %v4594
    %v4694 = vpop.f32.mrf.mxu0
    %v4695 = vadd.f32 0.0, %v4694
    %v4696 = vpop.f32.mrf.mxu0
    %4697 = vdwg.mxu0
    %4698 = vmatprep.subr.mxu0 0.0
    %4699 = vmatpush1.xpose.msra.mxu0 0.0
    %4700 = vmatprep.subr.mxu0 0.0
    %4701 = vmatpush1.xpose.msra.mxu0 0.0
    %4702 = vmatprep.subr.mxu0 0.0
    %4703 = vmatpush1.xpose.msra.mxu0 0.0
    %4704 = vmatprep.subr.mxu0 0.0
    %4705 = vmatpush1.xpose.msra.mxu0 0.0
    %4706 = vmatprep.subr.mxu0 0.0
    %4707 = vmatpush1.xpose.msra.mxu0 0.0
    %4708 = vmatprep.subr.mxu0 0.0
    %4709 = vmatpush1.xpose.msra.mxu0 0.0
    %4710 = vmatprep.subr.mxu0 0.0
    %4711 = vmatpush1.xpose.msra.mxu0 0.0
    %4712 = vmatprep.subr.mxu0 0.0
    %4713 = vmatpush1.xpose.msra.mxu0 0.0
    %4714 = vmatprep.subr.mxu0 0.0
    %4715 = vmatpush1.xpose.msra.mxu0 0.0
    %4716 = vmatprep.subr.mxu0 0.0
    %4717 = vmatpush1.xpose.msra.mxu0 0.0
    %4718 = vmatprep.subr.mxu0 0.0
    %4719 = vmatpush1.xpose.msra.mxu0 0.0
    %4720 = vmatprep.subr.mxu0 0.0
    %4721 = vmatpush1.xpose.msra.mxu0 0.0
    %4722 = vmatprep.subr.mxu0 0.0
    %4723 = vmatpush1.xpose.msra.mxu0 0.0
    %4724 = vmatprep.subr.mxu0 0.0
    %4725 = vmatpush1.xpose.msra.mxu0 0.0
    %4726 = vmatprep.subr.mxu0 0.0
    %4727 = vmatpush1.xpose.msra.mxu0 0.0
    %4728 = vmatprep.subr.mxu0 %v4624
    %4729 = vmatpush1.xpose.msra.mxu0 %v4623
    %4730 = vmatprep.subr.mxu0 0.0
    %4731 = vmatpush2.xpose.msra.mxu0 0.0
    %4732 = vmatprep.subr.mxu0 0.0
    %4733 = vmatpush2.xpose.msra.mxu0 0.0
    %4734 = vmatprep.subr.mxu0 0.0
    %4735 = vmatpush2.xpose.msra.mxu0 0.0
    %4736 = vmatprep.subr.mxu0 0.0
    %4737 = vmatpush2.xpose.msra.mxu0 0.0
    %4738 = vmatprep.subr.mxu0 0.0
    %4739 = vmatpush2.xpose.msra.mxu0 0.0
    %4740 = vmatprep.subr.mxu0 0.0
    %4741 = vmatpush2.xpose.msra.mxu0 0.0
    %4742 = vmatprep.subr.mxu0 0.0
    %4743 = vmatpush2.xpose.msra.mxu0 0.0
    %4744 = vmatprep.subr.mxu0 0.0
    %4745 = vmatpush2.xpose.msra.mxu0 0.0
    %4746 = vmatprep.subr.mxu0 0.0
    %4747 = vmatpush2.xpose.msra.mxu0 0.0
    %4748 = vmatprep.subr.mxu0 0.0
    %4749 = vmatpush2.xpose.msra.mxu0 0.0
    %4750 = vmatprep.subr.mxu0 0.0
    %4751 = vmatpush2.xpose.msra.mxu0 0.0
    %4752 = vmatprep.subr.mxu0 0.0
    %4753 = vmatpush2.xpose.msra.mxu0 0.0
    %4754 = vmatprep.subr.mxu0 0.0
    %4755 = vmatpush2.xpose.msra.mxu0 0.0
    %4756 = vmatprep.subr.mxu0 0.0
    %4757 = vmatpush2.xpose.msra.mxu0 0.0
    %4758 = vmatprep.subr.mxu0 0.0
    %4759 = vmatpush2.xpose.msra.mxu0 0.0
    %4760 = vmatprep.subr.mxu0 0.0
    %4761 = vmatpush2.xpose.msra.mxu0 0.0
    %4762 = vmatprep.mubr.f32.mxu0 %v4597
    %4763 = vmatmul.mubr.f32.gmra.mxu0 %v4596
    %v4764 = vpop.f32.mrf.mxu0
    %v4765 = vadd.f32 %v4695, %v4764
    %v4766 = vpop.f32.mrf.mxu0
    %4767 = vdwg.mxu0
    %4768 = vmatprep.subr.mxu0 0.0
    %4769 = vmatpush1.xpose.msra.mxu0 0.0
    %4770 = vmatprep.subr.mxu0 0.0
    %4771 = vmatpush1.xpose.msra.mxu0 0.0
    %4772 = vmatprep.subr.mxu0 0.0
    %4773 = vmatpush1.xpose.msra.mxu0 0.0
    %4774 = vmatprep.subr.mxu0 0.0
    %4775 = vmatpush1.xpose.msra.mxu0 0.0
    %4776 = vmatprep.subr.mxu0 0.0
    %4777 = vmatpush1.xpose.msra.mxu0 0.0
    %4778 = vmatprep.subr.mxu0 0.0
    %4779 = vmatpush1.xpose.msra.mxu0 0.0
    %4780 = vmatprep.subr.mxu0 0.0
    %4781 = vmatpush1.xpose.msra.mxu0 0.0
    %4782 = vmatprep.subr.mxu0 0.0
    %4783 = vmatpush1.xpose.msra.mxu0 0.0
    %4784 = vmatprep.subr.mxu0 0.0
    %4785 = vmatpush1.xpose.msra.mxu0 0.0
    %4786 = vmatprep.subr.mxu0 0.0
    %4787 = vmatpush1.xpose.msra.mxu0 0.0
    %4788 = vmatprep.subr.mxu0 0.0
    %4789 = vmatpush1.xpose.msra.mxu0 0.0
    %4790 = vmatprep.subr.mxu0 0.0
    %4791 = vmatpush1.xpose.msra.mxu0 0.0
    %4792 = vmatprep.subr.mxu0 0.0
    %4793 = vmatpush1.xpose.msra.mxu0 0.0
    %4794 = vmatprep.subr.mxu0 0.0
    %4795 = vmatpush1.xpose.msra.mxu0 0.0
    %4796 = vmatprep.subr.mxu0 0.0
    %4797 = vmatpush1.xpose.msra.mxu0 0.0
    %4798 = vmatprep.subr.mxu0 %v4626
    %4799 = vmatpush1.xpose.msra.mxu0 %v4625
    %4800 = vmatprep.subr.mxu0 0.0
    %4801 = vmatpush2.xpose.msra.mxu0 0.0
    %4802 = vmatprep.subr.mxu0 0.0
    %4803 = vmatpush2.xpose.msra.mxu0 0.0
    %4804 = vmatprep.subr.mxu0 0.0
    %4805 = vmatpush2.xpose.msra.mxu0 0.0
    %4806 = vmatprep.subr.mxu0 0.0
    %4807 = vmatpush2.xpose.msra.mxu0 0.0
    %4808 = vmatprep.subr.mxu0 0.0
    %4809 = vmatpush2.xpose.msra.mxu0 0.0
    %4810 = vmatprep.subr.mxu0 0.0
    %4811 = vmatpush2.xpose.msra.mxu0 0.0
    %4812 = vmatprep.subr.mxu0 0.0
    %4813 = vmatpush2.xpose.msra.mxu0 0.0
    %4814 = vmatprep.subr.mxu0 0.0
    %4815 = vmatpush2.xpose.msra.mxu0 0.0
    %4816 = vmatprep.subr.mxu0 0.0
    %4817 = vmatpush2.xpose.msra.mxu0 0.0
    %4818 = vmatprep.subr.mxu0 0.0
    %4819 = vmatpush2.xpose.msra.mxu0 0.0
    %4820 = vmatprep.subr.mxu0 0.0
    %4821 = vmatpush2.xpose.msra.mxu0 0.0
    %4822 = vmatprep.subr.mxu0 0.0
    %4823 = vmatpush2.xpose.msra.mxu0 0.0
    %4824 = vmatprep.subr.mxu0 0.0
    %4825 = vmatpush2.xpose.msra.mxu0 0.0
    %4826 = vmatprep.subr.mxu0 0.0
    %4827 = vmatpush2.xpose.msra.mxu0 0.0
    %4828 = vmatprep.subr.mxu0 0.0
    %4829 = vmatpush2.xpose.msra.mxu0 0.0
    %4830 = vmatprep.subr.mxu0 0.0
    %4831 = vmatpush2.xpose.msra.mxu0 0.0
    %4832 = vmatprep.mubr.f32.mxu0 %v4599
    %4833 = vmatmul.mubr.f32.gmra.mxu0 %v4598
    %v4834 = vpop.f32.mrf.mxu0
    %v4835 = vadd.f32 %v4765, %v4834
    %v4836 = vpop.f32.mrf.mxu0
    %4837 = vdwg.mxu0
    %v4838 = vstv %s4627
    %v4839 = vmul.f32 %v4838, %v4835
    %vm4840 = vcmask 9216
    %4841 = vst.msk [vmem:[%s14] sm:$0x3] %vm4840, %v4839
    // Predicated region
    $region66: #{forward.1} parent=1 // pred_check
      _
    $region67: #{forward.1} parent=1 // pred_check_branch
      %4843 = sbr.rel (0) target = $region69
    $region68: #{forward.1} parent=1 // pred_region
      _
    $region69: #{forward.1} parent=1 // pred_fallthru
      _
    // Predicated region
    $region70: #{forward.1} parent=1 // pred_check
      _
    $region71: #{forward.1} parent=1 // pred_check_branch
      %4845 = sbr.rel (0) target = $region73
    $region72: #{forward.1} parent=1 // pred_region
      _
    $region73: #{forward.1} parent=1 // pred_fallthru
      _
    %4846 = vsyncpa [#allocation4], 1
    %4847 = vsyncpa [#allocation6], 1

</llo_original>
